<compile_context>
chip_gen: v5e
topology: v5e:2x2
jax: 0.10.0
libtpu: 0.0.40
codegen_flags: <defaults>
</compile_context>

<pallas_src>
import jax
import jax.numpy as jnp
from jax.experimental import pallas as pl
from jax.experimental.pallas import tpu as pltpu

EPS = 1e-5
LANE = 128      # lane width (channels padded to a multiple of this)
SUBPACK = 16    # bf16 sublane packing (second-minor dim alignment)


def _round_up(v, m):
    return (v + m - 1) // m * m


# --------------------------------------------------------------------------
# in-kernel helpers
# --------------------------------------------------------------------------
def _zero_halo(pad_scr, H, W):
    """Zero only the 1-pixel halo of the (H+2, WPAD, CP) padded scratch."""
    WPAD, CP = pad_scr.shape[1], pad_scr.shape[2]
    zrow = jnp.zeros((1, WPAD, CP), pad_scr.dtype)
    pad_scr[0:1] = zrow
    pad_scr[H + 1:H + 2] = zrow
    zcol = jnp.zeros((H + 2, 1, CP), pad_scr.dtype)
    pad_scr[:, 0:1, :] = zcol
    pad_scr[:, W + 1:W + 2, :] = zcol


def _conv3x3(pad_scr, w_ref, H, W, CP):
    """3x3 conv as nine accumulating K=CP MXU matmuls (f32 accumulation)."""
    acc = jnp.zeros((H * W, CP), jnp.float32)
    for kh in range(3):
        row = pad_scr[kh:kh + H]                          # (H, WPAD, CP) bf16
        for kw in range(3):
            patch = row[:, kw:kw + W, :].reshape(H * W, CP)
            acc = acc + jnp.dot(patch, w_ref[kh * 3 + kw],
                                preferred_element_type=jnp.float32)
    return acc


# --------------------------------------------------------------------------
# pass 1: conv1 per image + per-image BN1 partial stats
# --------------------------------------------------------------------------
def conv_stats_kernel(x_ref, w_ref, y_ref, st_ref, pad_scr):
    _, H, W, CP = x_ref.shape
    _zero_halo(pad_scr, H, W)
    pad_scr[1:H + 1, 1:W + 1, :] = x_ref[0].astype(pad_scr.dtype)
    acc = _conv3x3(pad_scr, w_ref, H, W, CP)
    y_ref[0] = acc.reshape(H, W, CP).astype(y_ref.dtype)
    st_ref[0, 0:1, :] = jnp.sum(acc, axis=0, keepdims=True)
    st_ref[0, 1:2, :] = jnp.sum(acc * acc, axis=0, keepdims=True)


# --------------------------------------------------------------------------
# pass 2: bn1 + relu + conv2 per image + per-image BN2 partial stats
# --------------------------------------------------------------------------
def bn_relu_conv_stats_kernel(y1_ref, sc_ref, bi_ref, w_ref, y2_ref, st_ref,
                              pad_scr):
    _, H, W, CP = y1_ref.shape
    _zero_halo(pad_scr, H, W)
    a = y1_ref[0].astype(jnp.float32)
    a = jnp.maximum(a * sc_ref[...] + bi_ref[...], 0.0)     # bn1 + relu (f32)
    pad_scr[1:H + 1, 1:W + 1, :] = a.astype(pad_scr.dtype)
    acc = _conv3x3(pad_scr, w_ref, H, W, CP)
    y2_ref[0] = acc.reshape(H, W, CP).astype(y2_ref.dtype)
    st_ref[0, 0:1, :] = jnp.sum(acc, axis=0, keepdims=True)
    st_ref[0, 1:2, :] = jnp.sum(acc * acc, axis=0, keepdims=True)


# --------------------------------------------------------------------------
# pass 3: bn2 + residual add + relu
# --------------------------------------------------------------------------
def bn_add_relu_kernel(y2_ref, sc_ref, bi_ref, x_ref, o_ref):
    y = y2_ref[0].astype(jnp.float32)
    o_ref[0] = jnp.maximum(y * sc_ref[...] + bi_ref[...] + x_ref[0], 0.0)


# --------------------------------------------------------------------------
# wrapper
# --------------------------------------------------------------------------
def basic_block(x_nchw, w1_oihw, w2_oihw, gamma1, beta1, gamma2, beta2):
    """NCHW in -> NCHW out; all heavy compute in Pallas kernels."""
    N, Cin, H, W = x_nchw.shape
    Cout = w1_oihw.shape[0]
    assert Cin == Cout, "stride=1 / downsample=None requires inplanes == planes"
    C = Cout
    CP = _round_up(C, LANE)                 # lane-dense channel pad
    WPAD = _round_up(W + 2, SUBPACK)        # sublane-aligned padded width
    M = N * H * W                           # BN reduction size (whole batch)

    # Layout glue (would be kept NHWC across a full network): NCHW -> NHWC,
    # channel-pad to CP. Padded channels are zero and stay zero end to end.
    x = jnp.transpose(x_nchw, (0, 2, 3, 1)).astype(jnp.float32)
    x = jnp.pad(x, ((0, 0), (0, 0), (0, 0), (0, CP - Cin)))

    def prep_w(w_oihw):
        w = jnp.transpose(w_oihw, (2, 3, 1, 0)).astype(jnp.float32)   # HWIO
        w = jnp.pad(w, ((0, 0), (0, 0), (0, CP - Cin), (0, CP - Cout)))
        return w.reshape(9, CP, CP).astype(jnp.bfloat16)   # [kh*3+kw, cin, cout]

    w1 = prep_w(w1_oihw)
    w2 = prep_w(w2_oihw)
    g1 = jnp.pad(gamma1.astype(jnp.float32), (0, CP - C), constant_values=1.0)
    b1 = jnp.pad(beta1.astype(jnp.float32), (0, CP - C))
    g2 = jnp.pad(gamma2.astype(jnp.float32), (0, CP - C), constant_values=1.0)
    b2 = jnp.pad(beta2.astype(jnp.float32), (0, CP - C))

    img_spec = pl.BlockSpec((1, H, W, CP), lambda n: (n, 0, 0, 0))
    w_spec = pl.BlockSpec((9, CP, CP), lambda n: (0, 0, 0))
    st_spec = pl.BlockSpec((1, 2, CP), lambda n: (n, 0, 0))
    vec_spec = pl.BlockSpec((1, CP), lambda n: (0, 0))

    # VMEM budget per conv pass: double-buffered blocks + weights + padded
    # scratch + implicit f32 conv accumulator / patch temps, with margin.
    blk = H * W * CP
    conv_vmem = int(1.5 * (2 * blk * 4            # input image block (f32/bf16)
                           + 2 * 9 * CP * CP * 2  # weights
                           + 2 * blk * 2          # bf16 output block
                           + 2 * 2 * CP * 4       # stats block
                           + (H + 2) * WPAD * CP * 2   # padded scratch
                           + 2 * blk * 4)) + (2 << 20)  # f32 acc + patch temps
    conv_params = pltpu.CompilerParams(
        dimension_semantics=("parallel",),
        vmem_limit_bytes=int(min(conv_vmem, 100 << 20)),
    )
    # Advisory cost with the REAL channel count (padded lanes are dead work).
    conv_flops = N * (2 * H * W * 9 * C * C + 4 * H * W * C)
    conv_bytes = N * (blk * 4 + blk * 2 + 2 * CP * 4) + 9 * CP * CP * 2
    conv_cost = pl.CostEstimate(flops=int(conv_flops), transcendentals=0,
                                bytes_accessed=int(conv_bytes))

    # ---- pass 1: conv1 + BN1 partial stats (per-image, batch-parallel) ----
    y1, st1 = pl.pallas_call(
        conv_stats_kernel,
        grid=(N,),
        in_specs=[img_spec, w_spec],
        out_specs=(img_spec, st_spec),
        out_shape=(jax.ShapeDtypeStruct((N, H, W, CP), jnp.bfloat16),
                   jax.ShapeDtypeStruct((N, 2, CP), jnp.float32)),
        scratch_shapes=[pltpu.VMEM((H + 2, WPAD, CP), jnp.bfloat16)],
        compiler_params=conv_params,
        cost_estimate=conv_cost,
    )(x, w1)

    # Per-channel BN fold (O(C) work, parameter-scale) done between passes.
    def fold(stats, g, b):
        s = jnp.sum(stats, axis=0)                      # (2, CP)
        mean = s[0] / M
        var = jnp.maximum(s[1] / M - mean * mean, 0.0)  # biased variance
        scale = g * jax.lax.rsqrt(var + EPS)
        bias = b - mean * scale
        return scale.reshape(1, CP), bias.reshape(1, CP)

    sc1, bi1 = fold(st1, g1, b1)

    # ---- pass 2: bn1 + relu + conv2 + BN2 partial stats ----
    y2, st2 = pl.pallas_call(
        bn_relu_conv_stats_kernel,
        grid=(N,),
        in_specs=[img_spec, vec_spec, vec_spec, w_spec],
        out_specs=(img_spec, st_spec),
        out_shape=(jax.ShapeDtypeStruct((N, H, W, CP), jnp.bfloat16),
                   jax.ShapeDtypeStruct((N, 2, CP), jnp.float32)),
        scratch_shapes=[pltpu.VMEM((H + 2, WPAD, CP), jnp.bfloat16)],
        compiler_params=conv_params,
        cost_estimate=conv_cost,
    )(y1, sc1, bi1, w2)

    sc2, bi2 = fold(st2, g2, b2)

    # ---- pass 3: bn2 + residual + relu ----
    ew_vmem = int(1.5 * (2 * blk * 2 + 2 * blk * 4 + 2 * blk * 4
                         + 4 * CP * 4)) + (2 << 20)
    out_nhwc = pl.pallas_call(
        bn_add_relu_kernel,
        grid=(N,),
        in_specs=[img_spec, vec_spec, vec_spec, img_spec],
        out_specs=img_spec,
        out_shape=jax.ShapeDtypeStruct((N, H, W, CP), jnp.float32),
        compiler_params=pltpu.CompilerParams(
            dimension_semantics=("parallel",),
            vmem_limit_bytes=int(min(ew_vmem, 100 << 20))),
        cost_estimate=pl.CostEstimate(flops=int(4 * N * H * W * C),
                                      transcendentals=0,
                                      bytes_accessed=int(N * blk * 10)),
    )(y2, sc2, bi2, x)

    out = out_nhwc[..., :Cout]                          # drop padded channels
    return jnp.transpose(out, (0, 3, 1, 2))             # back to NCHW


# --------------------------------------------------------------------------
# pure-JAX f32 reference of the BasicBlock forward (training-mode BN)
# --------------------------------------------------------------------------
def _reference(x, w1, w2, g1, b1, g2, b2):
    def conv(a, w):
        return jax.lax.conv_general_dilated(
            a, w, window_strides=(1, 1), padding=((1, 1), (1, 1)),
            dimension_numbers=("NCHW", "OIHW", "NCHW"))

    def bn(a, g, b):
        mean = jnp.mean(a, axis=(0, 2, 3), keepdims=True)
        var = jnp.mean((a - mean) ** 2, axis=(0, 2, 3), keepdims=True)
        return ((a - mean) * jax.lax.rsqrt(var + EPS)
                * g.reshape(1, -1, 1, 1) + b.reshape(1, -1, 1, 1))

    out = jax.nn.relu(bn(conv(x, w1), g1, b1))
    out = bn(conv(out, w2), g2, b2)
    return jax.nn.relu(out + x)


if __name__ == "__main__":
    key = jax.random.PRNGKey(0)
    kx, k1, k2 = jax.random.split(key, 3)

    N, C, H, W = 2, 4, 16, 16        # inplanes = planes = 4, stride = 1
    x = jax.random.normal(kx, (N, C, H, W), dtype=jnp.float32)

    # conv3x3 weights, OIHW, bias=False (Kaiming-like scale, deterministic)
    fan_in = C * 3 * 3
    w1 = jax.random.normal(k1, (C, C, 3, 3), jnp.float32) * (2.0 / fan_in) ** 0.5
    w2 = jax.random.normal(k2, (C, C, 3, 3), jnp.float32) * (2.0 / fan_in) ** 0.5

    # BatchNorm2d default init: weight=1, bias=0
    gamma1 = jnp.ones((C,), jnp.float32)
    beta1 = jnp.zeros((C,), jnp.float32)
    gamma2 = jnp.ones((C,), jnp.float32)
    beta2 = jnp.zeros((C,), jnp.float32)

    out = basic_block(x, w1, w2, gamma1, beta1, gamma2, beta2)
    jax.block_until_ready(out)
    assert out.shape == (N, C, H, W)
    assert bool(jnp.all(jnp.isfinite(out)))

    # loose tolerance: kernel uses bf16 MXU inputs, reference is pure f32
    ref = _reference(x, w1, w2, gamma1, beta1, gamma2, beta2)
    err = float(jnp.max(jnp.abs(out - ref)))
    assert err < 1e-1, f"max abs error {err}"
    print("KERNEL_OK")
</pallas_src>

<mosaic_0001>
module attributes {stable_mosaic.version = 11 : i64} {
  func.func @conv_stats_kernel(%arg0: i32, %arg1: memref<1x16x16x128xf32, #tpu.memory_space<vmem>>, %arg2: memref<9x128x128xbf16, #tpu.memory_space<vmem>>, %arg3: memref<1x16x16x128xbf16, #tpu.memory_space<vmem>>, %arg4: memref<1x2x128xf32, #tpu.memory_space<vmem>>, %arg5: memref<18x32x128xbf16, #tpu.memory_space<vmem>>) attributes {dimension_semantics = [#tpu.dimension_semantics<parallel>], iteration_bounds = array<i64: 2>, scalar_prefetch = 0 : i64, scratch_operands = 1 : i64, tpu.core_type = #tpu.core_type<tc>, window_params = [{transform_indices = @transform_0, window_bounds = array<i64: 1, 16, 16, 128>}, {pipeline_mode = #tpu.pipeline_mode<synchronous>, transform_indices = @transform_1, window_bounds = array<i64: 9, 128, 128>}, {transform_indices = @transform_2, window_bounds = array<i64: 1, 16, 16, 128>}, {transform_indices = @transform_3, window_bounds = array<i64: 1, 2, 128>}]} {
    %cst = arith.constant 0.000000e+00 : bf16
    %0 = vector.broadcast %cst : bf16 to vector<1x32x128xbf16>
    %c0 = arith.constant 0 : index
    %c0_0 = arith.constant 0 : index
    %c0_1 = arith.constant 0 : index
    %1 = vector.load %arg5[%c0, %c0_0, %c0_1] : memref<18x32x128xbf16, #tpu.memory_space<vmem>>, vector<1x32x128xbf16>
    tpu.vector_store %arg5[%c0, %c0_0, %c0_1], %0 {strides = array<i32>} : memref<18x32x128xbf16, #tpu.memory_space<vmem>>, vector<1x32x128xbf16>,
    %c17 = arith.constant 17 : index
    %c0_2 = arith.constant 0 : index
    %c0_3 = arith.constant 0 : index
    %2 = vector.load %arg5[%c17, %c0_2, %c0_3] : memref<18x32x128xbf16, #tpu.memory_space<vmem>>, vector<1x32x128xbf16>
    tpu.vector_store %arg5[%c17, %c0_2, %c0_3], %0 {strides = array<i32>} : memref<18x32x128xbf16, #tpu.memory_space<vmem>>, vector<1x32x128xbf16>,
    %cst_4 = arith.constant 0.000000e+00 : bf16
    %3 = vector.broadcast %cst_4 : bf16 to vector<18x1x128xbf16>
    %c0_5 = arith.constant 0 : index
    %c0_6 = arith.constant 0 : index
    %c0_7 = arith.constant 0 : index
    %4 = vector.load %arg5[%c0_5, %c0_6, %c0_7] : memref<18x32x128xbf16, #tpu.memory_space<vmem>>, vector<18x1x128xbf16>
    tpu.vector_store %arg5[%c0_5, %c0_6, %c0_7], %3 {strides = array<i32>} : memref<18x32x128xbf16, #tpu.memory_space<vmem>>, vector<18x1x128xbf16>,
    %c0_8 = arith.constant 0 : index
    %c17_9 = arith.constant 17 : index
    %c0_10 = arith.constant 0 : index
    %5 = vector.load %arg5[%c0_8, %c17_9, %c0_10] : memref<18x32x128xbf16, #tpu.memory_space<vmem>>, vector<18x1x128xbf16>
    tpu.vector_store %arg5[%c0_8, %c17_9, %c0_10], %3 {strides = array<i32>} : memref<18x32x128xbf16, #tpu.memory_space<vmem>>, vector<18x1x128xbf16>,
    %c0_11 = arith.constant 0 : index
    %c0_12 = arith.constant 0 : index
    %c0_13 = arith.constant 0 : index
    %c0_14 = arith.constant 0 : index
    %6 = vector.load %arg1[%c0_11, %c0_12, %c0_13, %c0_14] : memref<1x16x16x128xf32, #tpu.memory_space<vmem>>, vector<1x16x16x128xf32>
    %7 = vector.shape_cast %6 : vector<1x16x16x128xf32> to vector<16x16x128xf32>
    %8 = arith.truncf %7 : vector<16x16x128xf32> to vector<16x16x128xbf16>
    %c1 = arith.constant 1 : index
    %c1_15 = arith.constant 1 : index
    %c0_16 = arith.constant 0 : index
    %9 = vector.load %arg5[%c1, %c1_15, %c0_16] : memref<18x32x128xbf16, #tpu.memory_space<vmem>>, vector<16x16x128xbf16>
    tpu.vector_store %arg5[%c1, %c1_15, %c0_16], %8 {strides = array<i32>} : memref<18x32x128xbf16, #tpu.memory_space<vmem>>, vector<16x16x128xbf16>,
    %cst_17 = arith.constant 0.000000e+00 : f32
    %10 = vector.broadcast %cst_17 : f32 to vector<256x128xf32>
    %c0_18 = arith.constant 0 : index
    %c0_19 = arith.constant 0 : index
    %c0_20 = arith.constant 0 : index
    %11 = vector.load %arg5[%c0_18, %c0_19, %c0_20] : memref<18x32x128xbf16, #tpu.memory_space<vmem>>, vector<16x32x128xbf16>
    %12 = vector.extract_strided_slice %11 {offsets = [0, 0, 0], sizes = [16, 16, 128], strides = [1, 1, 1]} : vector<16x32x128xbf16> to vector<16x16x128xbf16>
    %13 = vector.shape_cast %12 : vector<16x16x128xbf16> to vector<256x128xbf16>
    %c0_21 = arith.constant 0 : index
    %c0_22 = arith.constant 0 : index
    %c0_23 = arith.constant 0 : index
    %14 = vector.load %arg2[%c0_21, %c0_22, %c0_23] : memref<9x128x128xbf16, #tpu.memory_space<vmem>>, vector<1x128x128xbf16>
    %15 = vector.shape_cast %14 : vector<1x128x128xbf16> to vector<128x128xbf16>
    %cst_24 = arith.constant dense<0.000000e+00> : vector<256x128xf32>
    %16 = tpu.matmul %13, %15, %cst_24 {dimension_numbers = #tpu.dot_dimension_numbers<[1], [0], [0], [1], [0, 0, 1, 1], [], []>} : vector<256x128xbf16>, vector<128x128xbf16>, vector<256x128xf32> -> vector<256x128xf32>
    %17 = arith.addf %10, %16 : vector<256x128xf32>
    %18 = vector.extract_strided_slice %11 {offsets = [0, 1, 0], sizes = [16, 16, 128], strides = [1, 1, 1]} : vector<16x32x128xbf16> to vector<16x16x128xbf16>
    %19 = vector.shape_cast %18 : vector<16x16x128xbf16> to vector<256x128xbf16>
    %c1_25 = arith.constant 1 : index
    %c0_26 = arith.constant 0 : index
    %c0_27 = arith.constant 0 : index
    %20 = vector.load %arg2[%c1_25, %c0_26, %c0_27] : memref<9x128x128xbf16, #tpu.memory_space<vmem>>, vector<1x128x128xbf16>
    %21 = vector.shape_cast %20 : vector<1x128x128xbf16> to vector<128x128xbf16>
    %cst_28 = arith.constant dense<0.000000e+00> : vector<256x128xf32>
    %22 = tpu.matmul %19, %21, %cst_28 {dimension_numbers = #tpu.dot_dimension_numbers<[1], [0], [0], [1], [0, 0, 1, 1], [], []>} : vector<256x128xbf16>, vector<128x128xbf16>, vector<256x128xf32> -> vector<256x128xf32>
    %23 = arith.addf %17, %22 : vector<256x128xf32>
    %24 = vector.extract_strided_slice %11 {offsets = [0, 2, 0], sizes = [16, 16, 128], strides = [1, 1, 1]} : vector<16x32x128xbf16> to vector<16x16x128xbf16>
    %25 = vector.shape_cast %24 : vector<16x16x128xbf16> to vector<256x128xbf16>
    %c2 = arith.constant 2 : index
    %c0_29 = arith.constant 0 : index
    %c0_30 = arith.constant 0 : index
    %26 = vector.load %arg2[%c2, %c0_29, %c0_30] : memref<9x128x128xbf16, #tpu.memory_space<vmem>>, vector<1x128x128xbf16>
    %27 = vector.shape_cast %26 : vector<1x128x128xbf16> to vector<128x128xbf16>
    %cst_31 = arith.constant dense<0.000000e+00> : vector<256x128xf32>
    %28 = tpu.matmul %25, %27, %cst_31 {dimension_numbers = #tpu.dot_dimension_numbers<[1], [0], [0], [1], [0, 0, 1, 1], [], []>} : vector<256x128xbf16>, vector<128x128xbf16>, vector<256x128xf32> -> vector<256x128xf32>
    %29 = arith.addf %23, %28 : vector<256x128xf32>
    %c1_32 = arith.constant 1 : index
    %c0_33 = arith.constant 0 : index
    %c0_34 = arith.constant 0 : index
    %30 = vector.load %arg5[%c1_32, %c0_33, %c0_34] : memref<18x32x128xbf16, #tpu.memory_space<vmem>>, vector<16x32x128xbf16>
    %31 = vector.extract_strided_slice %30 {offsets = [0, 0, 0], sizes = [16, 16, 128], strides = [1, 1, 1]} : vector<16x32x128xbf16> to vector<16x16x128xbf16>
    %32 = vector.shape_cast %31 : vector<16x16x128xbf16> to vector<256x128xbf16>
    %c3 = arith.constant 3 : index
    %c0_35 = arith.constant 0 : index
    %c0_36 = arith.constant 0 : index
    %33 = vector.load %arg2[%c3, %c0_35, %c0_36] : memref<9x128x128xbf16, #tpu.memory_space<vmem>>, vector<1x128x128xbf16>
    %34 = vector.shape_cast %33 : vector<1x128x128xbf16> to vector<128x128xbf16>
    %cst_37 = arith.constant dense<0.000000e+00> : vector<256x128xf32>
    %35 = tpu.matmul %32, %34, %cst_37 {dimension_numbers = #tpu.dot_dimension_numbers<[1], [0], [0], [1], [0, 0, 1, 1], [], []>} : vector<256x128xbf16>, vector<128x128xbf16>, vector<256x128xf32> -> vector<256x128xf32>
    %36 = arith.addf %29, %35 : vector<256x128xf32>
    %37 = vector.extract_strided_slice %30 {offsets = [0, 1, 0], sizes = [16, 16, 128], strides = [1, 1, 1]} : vector<16x32x128xbf16> to vector<16x16x128xbf16>
    %38 = vector.shape_cast %37 : vector<16x16x128xbf16> to vector<256x128xbf16>
    %c4 = arith.constant 4 : index
    %c0_38 = arith.constant 0 : index
    %c0_39 = arith.constant 0 : index
    %39 = vector.load %arg2[%c4, %c0_38, %c0_39] : memref<9x128x128xbf16, #tpu.memory_space<vmem>>, vector<1x128x128xbf16>
    %40 = vector.shape_cast %39 : vector<1x128x128xbf16> to vector<128x128xbf16>
    %cst_40 = arith.constant dense<0.000000e+00> : vector<256x128xf32>
    %41 = tpu.matmul %38, %40, %cst_40 {dimension_numbers = #tpu.dot_dimension_numbers<[1], [0], [0], [1], [0, 0, 1, 1], [], []>} : vector<256x128xbf16>, vector<128x128xbf16>, vector<256x128xf32> -> vector<256x128xf32>
    %42 = arith.addf %36, %41 : vector<256x128xf32>
    %43 = vector.extract_strided_slice %30 {offsets = [0, 2, 0], sizes = [16, 16, 128], strides = [1, 1, 1]} : vector<16x32x128xbf16> to vector<16x16x128xbf16>
    %44 = vector.shape_cast %43 : vector<16x16x128xbf16> to vector<256x128xbf16>
    %c5 = arith.constant 5 : index
    %c0_41 = arith.constant 0 : index
    %c0_42 = arith.constant 0 : index
    %45 = vector.load %arg2[%c5, %c0_41, %c0_42] : memref<9x128x128xbf16, #tpu.memory_space<vmem>>, vector<1x128x128xbf16>
    %46 = vector.shape_cast %45 : vector<1x128x128xbf16> to vector<128x128xbf16>
    %cst_43 = arith.constant dense<0.000000e+00> : vector<256x128xf32>
    %47 = tpu.matmul %44, %46, %cst_43 {dimension_numbers = #tpu.dot_dimension_numbers<[1], [0], [0], [1], [0, 0, 1, 1], [], []>} : vector<256x128xbf16>, vector<128x128xbf16>, vector<256x128xf32> -> vector<256x128xf32>
    %48 = arith.addf %42, %47 : vector<256x128xf32>
    %c2_44 = arith.constant 2 : index
    %c0_45 = arith.constant 0 : index
    %c0_46 = arith.constant 0 : index
    %49 = vector.load %arg5[%c2_44, %c0_45, %c0_46] : memref<18x32x128xbf16, #tpu.memory_space<vmem>>, vector<16x32x128xbf16>
    %50 = vector.extract_strided_slice %49 {offsets = [0, 0, 0], sizes = [16, 16, 128], strides = [1, 1, 1]} : vector<16x32x128xbf16> to vector<16x16x128xbf16>
    %51 = vector.shape_cast %50 : vector<16x16x128xbf16> to vector<256x128xbf16>
    %c6 = arith.constant 6 : index
    %c0_47 = arith.constant 0 : index
    %c0_48 = arith.constant 0 : index
    %52 = vector.load %arg2[%c6, %c0_47, %c0_48] : memref<9x128x128xbf16, #tpu.memory_space<vmem>>, vector<1x128x128xbf16>
    %53 = vector.shape_cast %52 : vector<1x128x128xbf16> to vector<128x128xbf16>
    %cst_49 = arith.constant dense<0.000000e+00> : vector<256x128xf32>
    %54 = tpu.matmul %51, %53, %cst_49 {dimension_numbers = #tpu.dot_dimension_numbers<[1], [0], [0], [1], [0, 0, 1, 1], [], []>} : vector<256x128xbf16>, vector<128x128xbf16>, vector<256x128xf32> -> vector<256x128xf32>
    %55 = arith.addf %48, %54 : vector<256x128xf32>
    %56 = vector.extract_strided_slice %49 {offsets = [0, 1, 0], sizes = [16, 16, 128], strides = [1, 1, 1]} : vector<16x32x128xbf16> to vector<16x16x128xbf16>
    %57 = vector.shape_cast %56 : vector<16x16x128xbf16> to vector<256x128xbf16>
    %c7 = arith.constant 7 : index
    %c0_50 = arith.constant 0 : index
    %c0_51 = arith.constant 0 : index
    %58 = vector.load %arg2[%c7, %c0_50, %c0_51] : memref<9x128x128xbf16, #tpu.memory_space<vmem>>, vector<1x128x128xbf16>
    %59 = vector.shape_cast %58 : vector<1x128x128xbf16> to vector<128x128xbf16>
    %cst_52 = arith.constant dense<0.000000e+00> : vector<256x128xf32>
    %60 = tpu.matmul %57, %59, %cst_52 {dimension_numbers = #tpu.dot_dimension_numbers<[1], [0], [0], [1], [0, 0, 1, 1], [], []>} : vector<256x128xbf16>, vector<128x128xbf16>, vector<256x128xf32> -> vector<256x128xf32>
    %61 = arith.addf %55, %60 : vector<256x128xf32>
    %62 = vector.extract_strided_slice %49 {offsets = [0, 2, 0], sizes = [16, 16, 128], strides = [1, 1, 1]} : vector<16x32x128xbf16> to vector<16x16x128xbf16>
    %63 = vector.shape_cast %62 : vector<16x16x128xbf16> to vector<256x128xbf16>
    %c8 = arith.constant 8 : index
    %c0_53 = arith.constant 0 : index
    %c0_54 = arith.constant 0 : index
    %64 = vector.load %arg2[%c8, %c0_53, %c0_54] : memref<9x128x128xbf16, #tpu.memory_space<vmem>>, vector<1x128x128xbf16>
    %65 = vector.shape_cast %64 : vector<1x128x128xbf16> to vector<128x128xbf16>
    %cst_55 = arith.constant dense<0.000000e+00> : vector<256x128xf32>
    %66 = tpu.matmul %63, %65, %cst_55 {dimension_numbers = #tpu.dot_dimension_numbers<[1], [0], [0], [1], [0, 0, 1, 1], [], []>} : vector<256x128xbf16>, vector<128x128xbf16>, vector<256x128xf32> -> vector<256x128xf32>
    %67 = arith.addf %61, %66 : vector<256x128xf32>
    %68 = vector.shape_cast %67 : vector<256x128xf32> to vector<16x16x128xf32>
    %69 = arith.truncf %68 : vector<16x16x128xf32> to vector<16x16x128xbf16>
    %c0_56 = arith.constant 0 : index
    %c0_57 = arith.constant 0 : index
    %c0_58 = arith.constant 0 : index
    %c0_59 = arith.constant 0 : index
    %70 = vector.load %arg3[%c0_56, %c0_57, %c0_58, %c0_59] : memref<1x16x16x128xbf16, #tpu.memory_space<vmem>>, vector<1x16x16x128xbf16>
    %71 = vector.shape_cast %70 : vector<1x16x16x128xbf16> to vector<16x16x128xbf16>
    %72 = vector.shape_cast %69 : vector<16x16x128xbf16> to vector<1x16x16x128xbf16>
    tpu.vector_store %arg3[%c0_56, %c0_57, %c0_58, %c0_59], %72 {strides = array<i32>} : memref<1x16x16x128xbf16, #tpu.memory_space<vmem>>, vector<1x16x16x128xbf16>,
    %cst_60 = arith.constant dense<0.000000e+00> : vector<128xf32>
    %73 = vector.multi_reduction <add>, %67, %cst_60 [0] : vector<256x128xf32> to vector<128xf32>
    %74 = vector.shape_cast %73 : vector<128xf32> to vector<1x128xf32>
    %c0_61 = arith.constant 0 : index
    %c0_62 = arith.constant 0 : index
    %c0_63 = arith.constant 0 : index
    %75 = vector.load %arg4[%c0_61, %c0_62, %c0_63] : memref<1x2x128xf32, #tpu.memory_space<vmem>>, vector<1x1x128xf32>
    %76 = vector.shape_cast %75 : vector<1x1x128xf32> to vector<1x128xf32>
    %77 = vector.shape_cast %74 : vector<1x128xf32> to vector<1x1x128xf32>
    tpu.vector_store %arg4[%c0_61, %c0_62, %c0_63], %77 {strides = array<i32>} : memref<1x2x128xf32, #tpu.memory_space<vmem>>, vector<1x1x128xf32>,
    %78 = arith.mulf %67, %67 : vector<256x128xf32>
    %cst_64 = arith.constant dense<0.000000e+00> : vector<128xf32>
    %79 = vector.multi_reduction <add>, %78, %cst_64 [0] : vector<256x128xf32> to vector<128xf32>
    %80 = vector.shape_cast %79 : vector<128xf32> to vector<1x128xf32>
    %c0_65 = arith.constant 0 : index
    %c1_66 = arith.constant 1 : index
    %c0_67 = arith.constant 0 : index
    %81 = vector.load %arg4[%c0_65, %c1_66, %c0_67] : memref<1x2x128xf32, #tpu.memory_space<vmem>>, vector<1x1x128xf32>
    %82 = vector.shape_cast %81 : vector<1x1x128xf32> to vector<1x128xf32>
    %83 = vector.shape_cast %80 : vector<1x128xf32> to vector<1x1x128xf32>
    tpu.vector_store %arg4[%c0_65, %c1_66, %c0_67], %83 {strides = array<i32>} : memref<1x2x128xf32, #tpu.memory_space<vmem>>, vector<1x1x128xf32>,
    return
  }
  func.func @transform_0(%arg0: i32) -> (i32, i32, i32, i32) {
    %c0_i32 = arith.constant 0 : i32
    %c0_i32_0 = arith.constant 0 : i32
    %c0_i32_1 = arith.constant 0 : i32
    %c0_i32_2 = arith.constant 0 : i32
    return %arg0, %c0_i32, %c0_i32_0, %c0_i32_1 : i32, i32, i32, i32
  }
  func.func @transform_1(%arg0: i32) -> (i32, i32, i32) {
    %c0_i32 = arith.constant 0 : i32
    %c0_i32_0 = arith.constant 0 : i32
    %c0_i32_1 = arith.constant 0 : i32
    %c0_i32_2 = arith.constant 0 : i32
    return %c0_i32, %c0_i32_0, %c0_i32_1 : i32, i32, i32
  }
  func.func @transform_2(%arg0: i32) -> (i32, i32, i32, i32) {
    %c0_i32 = arith.constant 0 : i32
    %c0_i32_0 = arith.constant 0 : i32
    %c0_i32_1 = arith.constant 0 : i32
    %c0_i32_2 = arith.constant 0 : i32
    return %arg0, %c0_i32, %c0_i32_0, %c0_i32_1 : i32, i32, i32, i32
  }
  func.func @transform_3(%arg0: i32) -> (i32, i32, i32) {
    %c0_i32 = arith.constant 0 : i32
    %c0_i32_0 = arith.constant 0 : i32
    %c0_i32_1 = arith.constant 0 : i32
    return %arg0, %c0_i32, %c0_i32_0 : i32, i32, i32
  }
}

</mosaic_0001>

<llo_original>
// kernel: tpu_custom_call.1
$region0: #{tpu_custom_call.1}
  #allocation0 [shape = 'u32[]', space=smem, size = 0x4, offset = 0x4, fixed_abs, tag = 'smem constant byte address 0x4 - core index']
  #allocation1 [shape = 'u32[72,128]{1,0:T(1,128)}', space=vmem, size = 0x9000, scoped, tag = 'internal scratch']
  #allocation2 [shape = 'bf16[18,32,128]{2,1,0:T(8,128)(2,1)}', space=vmem, size = 0x24000, scoped, tag = 'scratch operand']
  %s0 = inlined_call_operand.hbm [shape: f32[2,16,16,128], index: 0, kind: input, shape index: {}]
  %s1 = inlined_call_operand.hbm [shape: bf16[9,128,128], index: 1, kind: input, shape index: {}]
  %s2 = inlined_call_operand.hbm [shape: bf16[2,16,16,128], index: 2, kind: output, shape index: {0}]
  %s3 = inlined_call_operand.hbm [shape: f32[2,2,128], index: 3, kind: output, shape index: {1}]
  %4 = xla_tuple %s2, %s3
  %s5 = sld [smem:[#allocation0]]
  $region57: #{tpu_custom_call.1} parent=0
    _
  %s7 = ssub.s32 1, %s5
  %s8 = scalar_select 0, %s7, %s5
  $region1: #{tpu_custom_call.1} parent=0
    #allocation3 [shape = 'u8[262144]{0}', space=vmem, size = 0x40000, scoped, tag = 'input window, operand 0']
    #allocation4 [shape = 's32[2]{0}', space=sflag, size = 0x8, scoped, tag = 'scoped memory for tpu_custom_call.1']
    #allocation5 [shape = 's32[2]{0}', space=sflag, size = 0x8, scoped, tag = 'scoped memory for tpu_custom_call.1']
    #allocation6 [shape = 'u8[294912]{0}', space=vmem, size = 0x48000, scoped, tag = 'input window, operand 1, single buffered']
    #allocation7 [shape = 's32[1]{0}', space=sflag, size = 0x4, scoped, tag = 'scoped memory for tpu_custom_call.1']
    #allocation8 [shape = 'u8[131072]{0}', space=vmem, size = 0x20000, scoped, tag = 'output window, operand 0']
    #allocation9 [shape = 'u8[2048]{0}', space=vmem, size = 0x800, scoped, tag = 'output window, operand 1']
    #allocation10 [shape = 's32[2]{0}', space=sflag, size = 0x8, scoped, tag = 'scoped memory for tpu_custom_call.1']
    %9 = vsyncpa [#allocation4], 0
    %s10 = scalar_lea.sflag [#allocation4], 1
    %11 = vsyncpa %s10, 0
    %12 = vsyncpa [#allocation7], 0
    %13 = vsyncpa [#allocation5], 0
    %s14 = scalar_lea.sflag [#allocation5], 1
    %15 = vsyncpa %s14, 0
    %16 = vsyncpa [#allocation10], 0
    %s17 = scalar_lea.sflag [#allocation10], 1
    %18 = vsyncpa %s17, 0
    loop: start=0, step=1, limit=4
    $region2: #{tpu_custom_call.1} parent=1 // loop_pre_header
      _
    $region3: #{tpu_custom_call.1} parent=1 // loop_header
      %s20 = sphi 0, %s24
      %p21 = scmp.ge.s32.totalorder %s20, 4
      %s30 = sphi 0, %s32
      %s33 = sphi 0, %s30
      %s34 = sphi 0, %s33
      %s50 = sphi 0, %s34
      %s54 = sphi 0, %s54
      %s56 = sphi 0, %s54
      %s57 = sphi 0, %s56
      %s71 = sphi 0, %s57
      %s77 = sphi 0, %s79
      %s80 = sphi 0, %s77
      %s81 = sphi 0, %s80
      %s97 = sphi 0, %s81
      %s103 = sphi 0, %s105
      %s106 = sphi 0, %s103
      %s107 = sphi 0, %s106
      %s123 = sphi 0, %s107
    $region4: #{tpu_custom_call.1} parent=1 // loop_header_branch
      %23 = sbr.rel (%p21) target = $region8
    $region5: #{tpu_custom_call.1} parent=1 // loop_body
      %s25 = ssub.s32 %s20, 1
      %s26 = ssub.s32 %s20, 2
      %s27 = sadd.s32 %s20, 1
      %s28 = ssub.s32 %s20, %s27
      %p29 = scmp.eq.s32.totalorder %s28, 0
      %s31 = sadd.s32 %s30, 1
      %s32 = scalar_select %p29, %s30, %s31
      %p35 = pneg %p29
      %p36 = scmp.eq.s32.totalorder %s20, 1
      %p37 = por %p35, %p36
      %p38 = scmp.ne.s32.totalorder %s30, %s33
      %p39 = scmp.eq.s32.totalorder %s20, 0
      %p40 = por %p38, %p39
      %p41 = scmp.ne.s32.totalorder %s30, %s33
      %p42 = scmp.eq.s32.totalorder %s25, 1
      %p43 = por %p41, %p42
      %p44 = scmp.ne.s32.totalorder %s33, %s34
      %p45 = scmp.eq.s32.totalorder %s25, 0
      %p46 = por %p44, %p45
      %p47 = scmp.ne.s32.totalorder %s33, %s34
      %p48 = scmp.eq.s32.totalorder %s26, 1
      %p49 = por %p47, %p48
      %p51 = scmp.ne.s32.totalorder %s34, %s50
      %p52 = scmp.eq.s32.totalorder %s26, 0
      %p53 = por %p51, %p52
      %s55 = sadd.s32 %s54, 1
      %p58 = scmp.eq.s32.totalorder %s20, 1
      %p59 = scmp.ne.s32.totalorder %s54, %s56
      %p60 = scmp.eq.s32.totalorder %s20, 0
      %p61 = por %p59, %p60
      %p62 = scmp.ne.s32.totalorder %s54, %s56
      %p63 = scmp.eq.s32.totalorder %s25, 1
      %p64 = por %p62, %p63
      %p65 = scmp.ne.s32.totalorder %s56, %s57
      %p66 = scmp.eq.s32.totalorder %s25, 0
      %p67 = por %p65, %p66
      %p68 = scmp.ne.s32.totalorder %s56, %s57
      %p69 = scmp.eq.s32.totalorder %s26, 1
      %p70 = por %p68, %p69
      %p72 = scmp.ne.s32.totalorder %s57, %s71
      %p73 = scmp.eq.s32.totalorder %s26, 0
      %p74 = por %p72, %p73
      %s75 = ssub.s32 %s20, %s27
      %p76 = scmp.eq.s32.totalorder %s75, 0
      %s78 = sadd.s32 %s77, 1
      %s79 = scalar_select %p76, %s77, %s78
      %p82 = pneg %p76
      %p83 = scmp.eq.s32.totalorder %s20, 1
      %p84 = por %p82, %p83
      %p85 = scmp.ne.s32.totalorder %s77, %s80
      %p86 = scmp.eq.s32.totalorder %s20, 0
      %p87 = por %p85, %p86
      %p88 = scmp.ne.s32.totalorder %s77, %s80
      %p89 = scmp.eq.s32.totalorder %s25, 1
      %p90 = por %p88, %p89
      %p91 = scmp.ne.s32.totalorder %s80, %s81
      %p92 = scmp.eq.s32.totalorder %s25, 0
      %p93 = por %p91, %p92
      %p94 = scmp.ne.s32.totalorder %s80, %s81
      %p95 = scmp.eq.s32.totalorder %s26, 1
      %p96 = por %p94, %p95
      %p98 = scmp.ne.s32.totalorder %s81, %s97
      %p99 = scmp.eq.s32.totalorder %s26, 0
      %p100 = por %p98, %p99
      %s101 = ssub.s32 %s20, %s27
      %p102 = scmp.eq.s32.totalorder %s101, 0
      %s104 = sadd.s32 %s103, 1
      %s105 = scalar_select %p102, %s103, %s104
      %p108 = pneg %p102
      %p109 = scmp.eq.s32.totalorder %s20, 1
      %p110 = por %p108, %p109
      %p111 = scmp.ne.s32.totalorder %s103, %s106
      %p112 = scmp.eq.s32.totalorder %s20, 0
      %p113 = por %p111, %p112
      %p114 = scmp.ne.s32.totalorder %s103, %s106
      %p115 = scmp.eq.s32.totalorder %s25, 1
      %p116 = por %p114, %p115
      %p117 = scmp.ne.s32.totalorder %s106, %s107
      %p118 = scmp.eq.s32.totalorder %s25, 0
      %p119 = por %p117, %p118
      %p120 = scmp.ne.s32.totalorder %s106, %s107
      %p121 = scmp.eq.s32.totalorder %s26, 1
      %p122 = por %p120, %p121
      %p124 = scmp.ne.s32.totalorder %s107, %s123
      %p125 = scmp.eq.s32.totalorder %s26, 0
      %p126 = por %p124, %p125
      %p127 = scmp.le.s32.totalorder 1, %s20
      %p128 = scmp.lt.s32.totalorder %s20, 3
      %p129 = pnand %p127, %p128
      %p130 = pneg %p129
      // Predicated region
      $region9: #{tpu_custom_call.1} parent=5 // pred_check
        _
      $region10: #{tpu_custom_call.1} parent=5 // pred_check_branch
        %132 = sbr.rel (%p129) target = $region12
      $region11: #{tpu_custom_call.1} parent=5 // pred_region
        %s133 = ssub.s32 %s20, 1
        // Predicated region
        $region13: #{tpu_custom_call.1} parent=11 // pred_check
          %p134 = pneg %p67
        $region14: #{tpu_custom_call.1} parent=11 // pred_check_branch
          %136 = sbr.rel (%p134) target = $region16
        $region15: #{tpu_custom_call.1} parent=11 // pred_region
          %138 = vsyncadd [#allocation7], 0
          %s139 = sshll.u32 %s1, 4
          %s140 = int_to_ptr.hbm [resolvable:$true] %s139
          %s141 = sshll.u32 [#allocation6], 4
          %s142 = int_to_ptr.vmem [resolvable:$true] %s141
          %147 = dma.hbm_to_vmem [thread:$0]  %s140, 9216, %s142, [#allocation7], 64, 64, 4
        $region16: #{tpu_custom_call.1} parent=11 // pred_fallthru
          _
      $region12: #{tpu_custom_call.1} parent=5 // pred_fallthru
        _
      %p148 = scmp.lt.s32.totalorder %s20, 2
      // Predicated region
      $region17: #{tpu_custom_call.1} parent=5 // pred_check
        %p149 = pneg %p148
      $region18: #{tpu_custom_call.1} parent=5 // pred_check_branch
        %151 = sbr.rel (%p149) target = $region20
      $region19: #{tpu_custom_call.1} parent=5 // pred_region
        // Predicated region
        $region21: #{tpu_custom_call.1} parent=19 // pred_check
          %p152 = pneg %p40
        $region22: #{tpu_custom_call.1} parent=19 // pred_check_branch
          %154 = sbr.rel (%p152) target = $region24
        $region23: #{tpu_custom_call.1} parent=19 // pred_region
          %s155 = sand.u32 %s30, 1
          %s156 = scalar_lea.sflag [#allocation4], %s155
          %s157 = sand.u32 %s30, 1
          %s158 = smul.addr %s157, 256
          %s159 = scalar_lea.vmem [#allocation3], %s158
          %161 = vsyncadd %s156, 0
          %s162 = smul.addr %s20, 32
          %s163 = smul.addr %s162, 8
          %s164 = scalar_lea.hbm %s0, %s163
          %s165 = sshll.u32 %s164, 4
          %s166 = int_to_ptr.hbm [resolvable:$true] %s165
          %s167 = sshll.u32 %s159, 4
          %s168 = int_to_ptr.vmem [resolvable:$true] %s167
          %173 = dma.hbm_to_vmem [thread:$0]  %s166, 4096, %s168, %s156, 128, 128, 8
        $region24: #{tpu_custom_call.1} parent=19 // pred_fallthru
          _
      $region20: #{tpu_custom_call.1} parent=5 // pred_fallthru
        _
      %p174 = scmp.le.s32.totalorder 1, %s20
      %p175 = scmp.lt.s32.totalorder %s20, 3
      %p176 = pnand %p174, %p175
      %p177 = pneg %p176
      // Predicated region
      $region25: #{tpu_custom_call.1} parent=5 // pred_check
        _
      $region26: #{tpu_custom_call.1} parent=5 // pred_check_branch
        %179 = sbr.rel (%p176) target = $region28
      $region27: #{tpu_custom_call.1} parent=5 // pred_region
        %s180 = ssub.s32 %s20, 1
        %s181 = sand.u32 %s33, 1
        %s182 = scalar_lea.sflag [#allocation4], %s181
        %s183 = sand.u32 %s33, 1
        %s184 = smul.addr %s183, 256
        %s185 = scalar_lea.vmem [#allocation3], %s184
        // Predicated region
        $region29: #{tpu_custom_call.1} parent=27 // pred_check
          %p186 = pneg %p46
        $region30: #{tpu_custom_call.1} parent=27 // pred_check_branch
          %188 = sbr.rel (%p186) target = $region32
        $region31: #{tpu_custom_call.1} parent=27 // pred_region
          %190 = dma.done %s182, 4096
        $region32: #{tpu_custom_call.1} parent=27 // pred_fallthru
          _
        // Predicated region
        $region33: #{tpu_custom_call.1} parent=27 // pred_check
          %p191 = pneg %p67
        $region34: #{tpu_custom_call.1} parent=27 // pred_check_branch
          %193 = sbr.rel (%p191) target = $region36
        $region35: #{tpu_custom_call.1} parent=27 // pred_region
          %195 = dma.done [#allocation7], 9216
        $region36: #{tpu_custom_call.1} parent=27 // pred_fallthru
          _
        %s196 = sand.u32 %s33, 1
        %s197 = scalar_lea.sflag [#allocation4], %s196
        %s198 = sand.u32 %s33, 1
        %s199 = smul.addr %s198, 256
        %s200 = scalar_lea.vmem [#allocation3], %s199
        %p201 = pneg %p46
        %p202 = pneg %p43
        %p203 = pneg %p67
        %p204 = pneg %p64
        %p205 = pneg %p93
        %p206 = pneg %p90
        %s207 = sand.u32 %s80, 1
        %s208 = scalar_lea.sflag [#allocation5], %s207
        %s209 = sand.u32 %s80, 1
        %s210 = smul.addr %s209, 128
        %s211 = scalar_lea.vmem [#allocation8], %s210
        %p212 = pneg %p119
        %p213 = pneg %p116
        %s214 = sand.u32 %s106, 1
        %s215 = scalar_lea.sflag [#allocation10], %s214
        %s216 = sand.u32 %s106, 1
        %s217 = smul.addr %s216, 2
        %s218 = scalar_lea.vmem [#allocation9], %s217
        %220 = vst [vmem:[#allocation2] sm:$0xf] 0
        %221 = vst [vmem:[#allocation2 + $0x4] sm:$0xf] 0
        %222 = vst [vmem:[#allocation2 + $0x8] sm:$0xf] 0
        %223 = vst [vmem:[#allocation2 + $0xc] sm:$0xf] 0
        %s224 = scalar_lea.vmem [#allocation2], 272
        %225 = vst [vmem:[%s224] sm:$0xf] 0
        %226 = vst [vmem:[%s224 + $0x4] sm:$0xf] 0
        %227 = vst [vmem:[%s224 + $0x8] sm:$0xf] 0
        %228 = vst [vmem:[%s224 + $0xc] sm:$0xf] 0
        %vm229 = vcmask 1040384
        %vm230 = vsmask.f32 256
        %vm231 = vmand %vm229, %vm230
        %v232 = vld [vmem:[#allocation2] sm:$0x1]
        %v233 = vsel %vm231, 0, %v232
        %234 = vst [vmem:[#allocation2] sm:$0x1] %v233
        %v235 = vld [vmem:[#allocation2 + $0x10] sm:$0x1]
        %v236 = vsel %vm231, 0, %v235
        %237 = vst [vmem:[#allocation2 + $0x10] sm:$0x1] %v236
        %v238 = vld [vmem:[#allocation2 + $0x20] sm:$0x1]
        %v239 = vsel %vm231, 0, %v238
        %240 = vst [vmem:[#allocation2 + $0x20] sm:$0x1] %v239
        %v241 = vld [vmem:[#allocation2 + $0x30] sm:$0x1]
        %v242 = vsel %vm231, 0, %v241
        %243 = vst [vmem:[#allocation2 + $0x30] sm:$0x1] %v242
        %v244 = vld [vmem:[#allocation2 + $0x40] sm:$0x1]
        %v245 = vsel %vm231, 0, %v244
        %246 = vst [vmem:[#allocation2 + $0x40] sm:$0x1] %v245
        %v247 = vld [vmem:[#allocation2 + $0x50] sm:$0x1]
        %v248 = vsel %vm231, 0, %v247
        %249 = vst [vmem:[#allocation2 + $0x50] sm:$0x1] %v248
        %v250 = vld [vmem:[#allocation2 + $0x60] sm:$0x1]
        %v251 = vsel %vm231, 0, %v250
        %252 = vst [vmem:[#allocation2 + $0x60] sm:$0x1] %v251
        %v253 = vld [vmem:[#allocation2 + $0x70] sm:$0x1]
        %v254 = vsel %vm231, 0, %v253
        %255 = vst [vmem:[#allocation2 + $0x70] sm:$0x1] %v254
        %v256 = vld [vmem:[#allocation2 + $0x80] sm:$0x1]
        %v257 = vsel %vm231, 0, %v256
        %258 = vst [vmem:[#allocation2 + $0x80] sm:$0x1] %v257
        %v259 = vld [vmem:[#allocation2 + $0x90] sm:$0x1]
        %v260 = vsel %vm231, 0, %v259
        %261 = vst [vmem:[#allocation2 + $0x90] sm:$0x1] %v260
        %v262 = vld [vmem:[#allocation2 + $0xa0] sm:$0x1]
        %v263 = vsel %vm231, 0, %v262
        %264 = vst [vmem:[#allocation2 + $0xa0] sm:$0x1] %v263
        %v265 = vld [vmem:[#allocation2 + $0xb0] sm:$0x1]
        %v266 = vsel %vm231, 0, %v265
        %267 = vst [vmem:[#allocation2 + $0xb0] sm:$0x1] %v266
        %v268 = vld [vmem:[#allocation2 + $0xc0] sm:$0x1]
        %v269 = vsel %vm231, 0, %v268
        %270 = vst [vmem:[#allocation2 + $0xc0] sm:$0x1] %v269
        %v271 = vld [vmem:[#allocation2 + $0xd0] sm:$0x1]
        %v272 = vsel %vm231, 0, %v271
        %273 = vst [vmem:[#allocation2 + $0xd0] sm:$0x1] %v272
        %v274 = vld [vmem:[#allocation2 + $0xe0] sm:$0x1]
        %v275 = vsel %vm231, 0, %v274
        %276 = vst [vmem:[#allocation2 + $0xe0] sm:$0x1] %v275
        %v277 = vld [vmem:[#allocation2 + $0xf0] sm:$0x1]
        %v278 = vsel %vm231, 0, %v277
        %279 = vst [vmem:[#allocation2 + $0xf0] sm:$0x1] %v278
        %v280 = vld [vmem:[#allocation2 + $0x100] sm:$0x1]
        %v281 = vsel %vm231, 0, %v280
        %282 = vst [vmem:[#allocation2 + $0x100] sm:$0x1] %v281
        %v283 = vld [vmem:[#allocation2 + $0x110] sm:$0x1]
        %v284 = vsel %vm231, 0, %v283
        %285 = vst [vmem:[#allocation2 + $0x110] sm:$0x1] %v284
        %vm286 = vsmask.f32 7938
        %vm287 = vmand %vm229, %vm286
        %v288 = vld [vmem:[#allocation2 + $0x8] sm:$0x1]
        %v289 = vsel %vm287, 0, %v288
        %290 = vst [vmem:[#allocation2 + $0x8] sm:$0x1] %v289
        %v291 = vld [vmem:[#allocation2 + $0x18] sm:$0x1]
        %v292 = vsel %vm287, 0, %v291
        %293 = vst [vmem:[#allocation2 + $0x18] sm:$0x1] %v292
        %v294 = vld [vmem:[#allocation2 + $0x28] sm:$0x1]
        %v295 = vsel %vm287, 0, %v294
        %296 = vst [vmem:[#allocation2 + $0x28] sm:$0x1] %v295
        %v297 = vld [vmem:[#allocation2 + $0x38] sm:$0x1]
        %v298 = vsel %vm287, 0, %v297
        %299 = vst [vmem:[#allocation2 + $0x38] sm:$0x1] %v298
        %v300 = vld [vmem:[#allocation2 + $0x48] sm:$0x1]
        %v301 = vsel %vm287, 0, %v300
        %302 = vst [vmem:[#allocation2 + $0x48] sm:$0x1] %v301
        %v303 = vld [vmem:[#allocation2 + $0x58] sm:$0x1]
        %v304 = vsel %vm287, 0, %v303
        %305 = vst [vmem:[#allocation2 + $0x58] sm:$0x1] %v304
        %v306 = vld [vmem:[#allocation2 + $0x68] sm:$0x1]
        %v307 = vsel %vm287, 0, %v306
        %308 = vst [vmem:[#allocation2 + $0x68] sm:$0x1] %v307
        %v309 = vld [vmem:[#allocation2 + $0x78] sm:$0x1]
        %v310 = vsel %vm287, 0, %v309
        %311 = vst [vmem:[#allocation2 + $0x78] sm:$0x1] %v310
        %v312 = vld [vmem:[#allocation2 + $0x88] sm:$0x1]
        %v313 = vsel %vm287, 0, %v312
        %314 = vst [vmem:[#allocation2 + $0x88] sm:$0x1] %v313
        %v315 = vld [vmem:[#allocation2 + $0x98] sm:$0x1]
        %v316 = vsel %vm287, 0, %v315
        %317 = vst [vmem:[#allocation2 + $0x98] sm:$0x1] %v316
        %v318 = vld [vmem:[#allocation2 + $0xa8] sm:$0x1]
        %v319 = vsel %vm287, 0, %v318
        %320 = vst [vmem:[#allocation2 + $0xa8] sm:$0x1] %v319
        %v321 = vld [vmem:[#allocation2 + $0xb8] sm:$0x1]
        %v322 = vsel %vm287, 0, %v321
        %323 = vst [vmem:[#allocation2 + $0xb8] sm:$0x1] %v322
        %v324 = vld [vmem:[#allocation2 + $0xc8] sm:$0x1]
        %v325 = vsel %vm287, 0, %v324
        %326 = vst [vmem:[#allocation2 + $0xc8] sm:$0x1] %v325
        %v327 = vld [vmem:[#allocation2 + $0xd8] sm:$0x1]
        %v328 = vsel %vm287, 0, %v327
        %329 = vst [vmem:[#allocation2 + $0xd8] sm:$0x1] %v328
        %v330 = vld [vmem:[#allocation2 + $0xe8] sm:$0x1]
        %v331 = vsel %vm287, 0, %v330
        %332 = vst [vmem:[#allocation2 + $0xe8] sm:$0x1] %v331
        %v333 = vld [vmem:[#allocation2 + $0xf8] sm:$0x1]
        %v334 = vsel %vm287, 0, %v333
        %335 = vst [vmem:[#allocation2 + $0xf8] sm:$0x1] %v334
        %v336 = vld [vmem:[#allocation2 + $0x108] sm:$0x1]
        %v337 = vsel %vm287, 0, %v336
        %338 = vst [vmem:[#allocation2 + $0x108] sm:$0x1] %v337
        %v339 = vld [vmem:[#allocation2 + $0x118] sm:$0x1]
        %v340 = vsel %vm287, 0, %v339
        %341 = vst [vmem:[#allocation2 + $0x118] sm:$0x1] %v340
        %v342 = vld [vmem:[%s185] sm:$0xff]
        %v343 = vld [vmem:[%s185 + $0x8] sm:$0xff]
        %v344 = vld [vmem:[%s185 + $0x10] sm:$0xff]
        %v345 = vld [vmem:[%s185 + $0x18] sm:$0xff]
        %v346 = vld [vmem:[%s185 + $0x20] sm:$0xff]
        %v347 = vld [vmem:[%s185 + $0x28] sm:$0xff]
        %v348 = vld [vmem:[%s185 + $0x30] sm:$0xff]
        %v349 = vld [vmem:[%s185 + $0x38] sm:$0xff]
        %v350 = vld [vmem:[%s185 + $0x40] sm:$0xff]
        %v351 = vld [vmem:[%s185 + $0x48] sm:$0xff]
        %v352 = vld [vmem:[%s185 + $0x50] sm:$0xff]
        %v353 = vld [vmem:[%s185 + $0x58] sm:$0xff]
        %v354 = vld [vmem:[%s185 + $0x60] sm:$0xff]
        %v355 = vld [vmem:[%s185 + $0x68] sm:$0xff]
        %v356 = vld [vmem:[%s185 + $0x70] sm:$0xff]
        %v357 = vld [vmem:[%s185 + $0x78] sm:$0xff]
        %v358 = vld [vmem:[%s185 + $0x80] sm:$0xff]
        %v359 = vld [vmem:[%s185 + $0x88] sm:$0xff]
        %v360 = vld [vmem:[%s185 + $0x90] sm:$0xff]
        %v361 = vld [vmem:[%s185 + $0x98] sm:$0xff]
        %v362 = vld [vmem:[%s185 + $0xa0] sm:$0xff]
        %v363 = vld [vmem:[%s185 + $0xa8] sm:$0xff]
        %v364 = vld [vmem:[%s185 + $0xb0] sm:$0xff]
        %v365 = vld [vmem:[%s185 + $0xb8] sm:$0xff]
        %v366 = vld [vmem:[%s185 + $0xc0] sm:$0xff]
        %v367 = vld [vmem:[%s185 + $0xc8] sm:$0xff]
        %v368 = vld [vmem:[%s185 + $0xd0] sm:$0xff]
        %v369 = vld [vmem:[%s185 + $0xd8] sm:$0xff]
        %v370 = vld [vmem:[%s185 + $0xe0] sm:$0xff]
        %v371 = vld [vmem:[%s185 + $0xe8] sm:$0xff]
        %v372 = vld [vmem:[%s185 + $0xf0] sm:$0xff]
        %v373 = vld [vmem:[%s185 + $0xf8] sm:$0xff]
        %v374 = vpack.c.bf16 %v342, %v342
        %v375 = vpack.c.bf16 %v343, %v343
        %v376 = vpack.c.bf16 %v344, %v344
        %v377 = vpack.c.bf16 %v345, %v345
        %v378 = vpack.c.bf16 %v346, %v346
        %v379 = vpack.c.bf16 %v347, %v347
        %v380 = vpack.c.bf16 %v348, %v348
        %v381 = vpack.c.bf16 %v349, %v349
        %v382 = vpack.c.bf16 %v350, %v350
        %v383 = vpack.c.bf16 %v351, %v351
        %v384 = vpack.c.bf16 %v352, %v352
        %v385 = vpack.c.bf16 %v353, %v353
        %v386 = vpack.c.bf16 %v354, %v354
        %v387 = vpack.c.bf16 %v355, %v355
        %v388 = vpack.c.bf16 %v356, %v356
        %v389 = vpack.c.bf16 %v357, %v357
        %v390 = vpack.c.bf16 %v358, %v358
        %v391 = vpack.c.bf16 %v359, %v359
        %v392 = vpack.c.bf16 %v360, %v360
        %v393 = vpack.c.bf16 %v361, %v361
        %v394 = vpack.c.bf16 %v362, %v362
        %v395 = vpack.c.bf16 %v363, %v363
        %v396 = vpack.c.bf16 %v364, %v364
        %v397 = vpack.c.bf16 %v365, %v365
        %v398 = vpack.c.bf16 %v366, %v366
        %v399 = vpack.c.bf16 %v367, %v367
        %v400 = vpack.c.bf16 %v368, %v368
        %v401 = vpack.c.bf16 %v369, %v369
        %v402 = vpack.c.bf16 %v370, %v370
        %v403 = vpack.c.bf16 %v371, %v371
        %v404 = vpack.c.bf16 %v372, %v372
        %v405 = vpack.c.bf16 %v373, %v373
        %vm406 = vsmask.f32 4368
        %vm407 = vmor %vm230, %vm406
        %v409 = vshrl.u32 %v374, 16
        %v411 = vrot.slane %v409, 7
        %v412 = vshll.u32 %v374, 16
        %v414 = vor.u32 %v411, %v412
        %v415 = vrot.slane %v411, 4
        %v417 = vshrl.u32 %v375, 16
        %v419 = vrot.slane %v417, 7
        %v420 = vshll.u32 %v375, 16
        %v422 = vor.u32 %v419, %v420
        %v423 = vsel %vm407, %v415, %v422
        %v424 = vrot.slane %v419, 4
        %v426 = vshrl.u32 %v376, 16
        %v428 = vrot.slane %v426, 7
        %v429 = vshll.u32 %v376, 16
        %v431 = vor.u32 %v428, %v429
        %v432 = vrot.slane %v428, 4
        %v434 = vshrl.u32 %v377, 16
        %v436 = vrot.slane %v434, 7
        %v437 = vshll.u32 %v377, 16
        %v439 = vor.u32 %v436, %v437
        %v440 = vsel %vm407, %v432, %v439
        %v441 = vrot.slane %v436, 4
        %v443 = vshrl.u32 %v378, 16
        %v445 = vrot.slane %v443, 7
        %v446 = vshll.u32 %v378, 16
        %v448 = vor.u32 %v445, %v446
        %v449 = vrot.slane %v445, 4
        %v451 = vshrl.u32 %v379, 16
        %v453 = vrot.slane %v451, 7
        %v454 = vshll.u32 %v379, 16
        %v456 = vor.u32 %v453, %v454
        %v457 = vsel %vm407, %v449, %v456
        %v458 = vrot.slane %v453, 4
        %v460 = vshrl.u32 %v380, 16
        %v462 = vrot.slane %v460, 7
        %v463 = vshll.u32 %v380, 16
        %v465 = vor.u32 %v462, %v463
        %v466 = vrot.slane %v462, 4
        %v468 = vshrl.u32 %v381, 16
        %v470 = vrot.slane %v468, 7
        %v471 = vshll.u32 %v381, 16
        %v473 = vor.u32 %v470, %v471
        %v474 = vsel %vm407, %v466, %v473
        %v475 = vrot.slane %v470, 4
        %v477 = vshrl.u32 %v382, 16
        %v479 = vrot.slane %v477, 7
        %v480 = vshll.u32 %v382, 16
        %v482 = vor.u32 %v479, %v480
        %v483 = vrot.slane %v479, 4
        %v485 = vshrl.u32 %v383, 16
        %v487 = vrot.slane %v485, 7
        %v488 = vshll.u32 %v383, 16
        %v490 = vor.u32 %v487, %v488
        %v491 = vsel %vm407, %v483, %v490
        %v492 = vrot.slane %v487, 4
        %v494 = vshrl.u32 %v384, 16
        %v496 = vrot.slane %v494, 7
        %v497 = vshll.u32 %v384, 16
        %v499 = vor.u32 %v496, %v497
        %v500 = vrot.slane %v496, 4
        %v502 = vshrl.u32 %v385, 16
        %v504 = vrot.slane %v502, 7
        %v505 = vshll.u32 %v385, 16
        %v507 = vor.u32 %v504, %v505
        %v508 = vsel %vm407, %v500, %v507
        %v509 = vrot.slane %v504, 4
        %v511 = vshrl.u32 %v386, 16
        %v513 = vrot.slane %v511, 7
        %v514 = vshll.u32 %v386, 16
        %v516 = vor.u32 %v513, %v514
        %v517 = vrot.slane %v513, 4
        %v519 = vshrl.u32 %v387, 16
        %v521 = vrot.slane %v519, 7
        %v522 = vshll.u32 %v387, 16
        %v524 = vor.u32 %v521, %v522
        %v525 = vsel %vm407, %v517, %v524
        %v526 = vrot.slane %v521, 4
        %v528 = vshrl.u32 %v388, 16
        %v530 = vrot.slane %v528, 7
        %v531 = vshll.u32 %v388, 16
        %v533 = vor.u32 %v530, %v531
        %v534 = vrot.slane %v530, 4
        %v536 = vshrl.u32 %v389, 16
        %v538 = vrot.slane %v536, 7
        %v539 = vshll.u32 %v389, 16
        %v541 = vor.u32 %v538, %v539
        %v542 = vsel %vm407, %v534, %v541
        %v543 = vrot.slane %v538, 4
        %v545 = vshrl.u32 %v390, 16
        %v547 = vrot.slane %v545, 7
        %v548 = vshll.u32 %v390, 16
        %v550 = vor.u32 %v547, %v548
        %v551 = vrot.slane %v547, 4
        %v553 = vshrl.u32 %v391, 16
        %v555 = vrot.slane %v553, 7
        %v556 = vshll.u32 %v391, 16
        %v558 = vor.u32 %v555, %v556
        %v559 = vsel %vm407, %v551, %v558
        %v560 = vrot.slane %v555, 4
        %v562 = vshrl.u32 %v392, 16
        %v564 = vrot.slane %v562, 7
        %v565 = vshll.u32 %v392, 16
        %v567 = vor.u32 %v564, %v565
        %v568 = vrot.slane %v564, 4
        %v570 = vshrl.u32 %v393, 16
        %v572 = vrot.slane %v570, 7
        %v573 = vshll.u32 %v393, 16
        %v575 = vor.u32 %v572, %v573
        %v576 = vsel %vm407, %v568, %v575
        %v577 = vrot.slane %v572, 4
        %v579 = vshrl.u32 %v394, 16
        %v581 = vrot.slane %v579, 7
        %v582 = vshll.u32 %v394, 16
        %v584 = vor.u32 %v581, %v582
        %v585 = vrot.slane %v581, 4
        %v587 = vshrl.u32 %v395, 16
        %v589 = vrot.slane %v587, 7
        %v590 = vshll.u32 %v395, 16
        %v592 = vor.u32 %v589, %v590
        %v593 = vsel %vm407, %v585, %v592
        %v594 = vrot.slane %v589, 4
        %v596 = vshrl.u32 %v396, 16
        %v598 = vrot.slane %v596, 7
        %v599 = vshll.u32 %v396, 16
        %v601 = vor.u32 %v598, %v599
        %v602 = vrot.slane %v598, 4
        %v604 = vshrl.u32 %v397, 16
        %v606 = vrot.slane %v604, 7
        %v607 = vshll.u32 %v397, 16
        %v609 = vor.u32 %v606, %v607
        %v610 = vsel %vm407, %v602, %v609
        %v611 = vrot.slane %v606, 4
        %v613 = vshrl.u32 %v398, 16
        %v615 = vrot.slane %v613, 7
        %v616 = vshll.u32 %v398, 16
        %v618 = vor.u32 %v615, %v616
        %v619 = vrot.slane %v615, 4
        %v621 = vshrl.u32 %v399, 16
        %v623 = vrot.slane %v621, 7
        %v624 = vshll.u32 %v399, 16
        %v626 = vor.u32 %v623, %v624
        %v627 = vsel %vm407, %v619, %v626
        %v628 = vrot.slane %v623, 4
        %v630 = vshrl.u32 %v400, 16
        %v632 = vrot.slane %v630, 7
        %v633 = vshll.u32 %v400, 16
        %v635 = vor.u32 %v632, %v633
        %v636 = vrot.slane %v632, 4
        %v638 = vshrl.u32 %v401, 16
        %v640 = vrot.slane %v638, 7
        %v641 = vshll.u32 %v401, 16
        %v643 = vor.u32 %v640, %v641
        %v644 = vsel %vm407, %v636, %v643
        %v645 = vrot.slane %v640, 4
        %v647 = vshrl.u32 %v402, 16
        %v649 = vrot.slane %v647, 7
        %v650 = vshll.u32 %v402, 16
        %v652 = vor.u32 %v649, %v650
        %v653 = vrot.slane %v649, 4
        %v655 = vshrl.u32 %v403, 16
        %v657 = vrot.slane %v655, 7
        %v658 = vshll.u32 %v403, 16
        %v660 = vor.u32 %v657, %v658
        %v661 = vsel %vm407, %v653, %v660
        %v662 = vrot.slane %v657, 4
        %v664 = vshrl.u32 %v404, 16
        %v666 = vrot.slane %v664, 7
        %v667 = vshll.u32 %v404, 16
        %v669 = vor.u32 %v666, %v667
        %v670 = vrot.slane %v666, 4
        %v672 = vshrl.u32 %v405, 16
        %v674 = vrot.slane %v672, 7
        %v675 = vshll.u32 %v405, 16
        %v677 = vor.u32 %v674, %v675
        %v678 = vsel %vm407, %v670, %v677
        %v679 = vrot.slane %v674, 4
        %s728 = scalar_lea.vmem [#allocation2], 16
        %vm729 = vcmask 1043456
        %vm730 = vmand %vm729, %vm286
        %v731 = vld [vmem:[%s728] sm:$0xf]
        %v732 = vsel %vm730, %v414, %v731
        %733 = vst [vmem:[%s728] sm:$0xf] %v732
        %734 = vst [vmem:[%s728 + $0x4] sm:$0xf] %v423
        %v735 = vld [vmem:[%s728 + $0x8] sm:$0x1]
        %v736 = vsel %vm231, %v424, %v735
        %737 = vst [vmem:[%s728 + $0x8] sm:$0x1] %v736
        %v738 = vld [vmem:[%s728 + $0x10] sm:$0xf]
        %v739 = vsel %vm730, %v431, %v738
        %740 = vst [vmem:[%s728 + $0x10] sm:$0xf] %v739
        %741 = vst [vmem:[%s728 + $0x14] sm:$0xf] %v440
        %v742 = vld [vmem:[%s728 + $0x18] sm:$0x1]
        %v743 = vsel %vm231, %v441, %v742
        %744 = vst [vmem:[%s728 + $0x18] sm:$0x1] %v743
        %v745 = vld [vmem:[%s728 + $0x20] sm:$0xf]
        %v746 = vsel %vm730, %v448, %v745
        %747 = vst [vmem:[%s728 + $0x20] sm:$0xf] %v746
        %748 = vst [vmem:[%s728 + $0x24] sm:$0xf] %v457
        %v749 = vld [vmem:[%s728 + $0x28] sm:$0x1]
        %v750 = vsel %vm231, %v458, %v749
        %751 = vst [vmem:[%s728 + $0x28] sm:$0x1] %v750
        %v752 = vld [vmem:[%s728 + $0x30] sm:$0xf]
        %v753 = vsel %vm730, %v465, %v752
        %754 = vst [vmem:[%s728 + $0x30] sm:$0xf] %v753
        %755 = vst [vmem:[%s728 + $0x34] sm:$0xf] %v474
        %v756 = vld [vmem:[%s728 + $0x38] sm:$0x1]
        %v757 = vsel %vm231, %v475, %v756
        %758 = vst [vmem:[%s728 + $0x38] sm:$0x1] %v757
        %v759 = vld [vmem:[%s728 + $0x40] sm:$0xf]
        %v760 = vsel %vm730, %v482, %v759
        %761 = vst [vmem:[%s728 + $0x40] sm:$0xf] %v760
        %762 = vst [vmem:[%s728 + $0x44] sm:$0xf] %v491
        %v763 = vld [vmem:[%s728 + $0x48] sm:$0x1]
        %v764 = vsel %vm231, %v492, %v763
        %765 = vst [vmem:[%s728 + $0x48] sm:$0x1] %v764
        %v766 = vld [vmem:[%s728 + $0x50] sm:$0xf]
        %v767 = vsel %vm730, %v499, %v766
        %768 = vst [vmem:[%s728 + $0x50] sm:$0xf] %v767
        %769 = vst [vmem:[%s728 + $0x54] sm:$0xf] %v508
        %v770 = vld [vmem:[%s728 + $0x58] sm:$0x1]
        %v771 = vsel %vm231, %v509, %v770
        %772 = vst [vmem:[%s728 + $0x58] sm:$0x1] %v771
        %v773 = vld [vmem:[%s728 + $0x60] sm:$0xf]
        %v774 = vsel %vm730, %v516, %v773
        %775 = vst [vmem:[%s728 + $0x60] sm:$0xf] %v774
        %776 = vst [vmem:[%s728 + $0x64] sm:$0xf] %v525
        %v777 = vld [vmem:[%s728 + $0x68] sm:$0x1]
        %v778 = vsel %vm231, %v526, %v777
        %779 = vst [vmem:[%s728 + $0x68] sm:$0x1] %v778
        %v780 = vld [vmem:[%s728 + $0x70] sm:$0xf]
        %v781 = vsel %vm730, %v533, %v780
        %782 = vst [vmem:[%s728 + $0x70] sm:$0xf] %v781
        %783 = vst [vmem:[%s728 + $0x74] sm:$0xf] %v542
        %v784 = vld [vmem:[%s728 + $0x78] sm:$0x1]
        %v785 = vsel %vm231, %v543, %v784
        %786 = vst [vmem:[%s728 + $0x78] sm:$0x1] %v785
        %v787 = vld [vmem:[%s728 + $0x80] sm:$0xf]
        %v788 = vsel %vm730, %v550, %v787
        %789 = vst [vmem:[%s728 + $0x80] sm:$0xf] %v788
        %790 = vst [vmem:[%s728 + $0x84] sm:$0xf] %v559
        %v791 = vld [vmem:[%s728 + $0x88] sm:$0x1]
        %v792 = vsel %vm231, %v560, %v791
        %793 = vst [vmem:[%s728 + $0x88] sm:$0x1] %v792
        %v794 = vld [vmem:[%s728 + $0x90] sm:$0xf]
        %v795 = vsel %vm730, %v567, %v794
        %796 = vst [vmem:[%s728 + $0x90] sm:$0xf] %v795
        %797 = vst [vmem:[%s728 + $0x94] sm:$0xf] %v576
        %v798 = vld [vmem:[%s728 + $0x98] sm:$0x1]
        %v799 = vsel %vm231, %v577, %v798
        %800 = vst [vmem:[%s728 + $0x98] sm:$0x1] %v799
        %v801 = vld [vmem:[%s728 + $0xa0] sm:$0xf]
        %v802 = vsel %vm730, %v584, %v801
        %803 = vst [vmem:[%s728 + $0xa0] sm:$0xf] %v802
        %804 = vst [vmem:[%s728 + $0xa4] sm:$0xf] %v593
        %v805 = vld [vmem:[%s728 + $0xa8] sm:$0x1]
        %v806 = vsel %vm231, %v594, %v805
        %807 = vst [vmem:[%s728 + $0xa8] sm:$0x1] %v806
        %v808 = vld [vmem:[%s728 + $0xb0] sm:$0xf]
        %v809 = vsel %vm730, %v601, %v808
        %810 = vst [vmem:[%s728 + $0xb0] sm:$0xf] %v809
        %811 = vst [vmem:[%s728 + $0xb4] sm:$0xf] %v610
        %v812 = vld [vmem:[%s728 + $0xb8] sm:$0x1]
        %v813 = vsel %vm231, %v611, %v812
        %814 = vst [vmem:[%s728 + $0xb8] sm:$0x1] %v813
        %v815 = vld [vmem:[%s728 + $0xc0] sm:$0xf]
        %v816 = vsel %vm730, %v618, %v815
        %817 = vst [vmem:[%s728 + $0xc0] sm:$0xf] %v816
        %818 = vst [vmem:[%s728 + $0xc4] sm:$0xf] %v627
        %v819 = vld [vmem:[%s728 + $0xc8] sm:$0x1]
        %v820 = vsel %vm231, %v628, %v819
        %821 = vst [vmem:[%s728 + $0xc8] sm:$0x1] %v820
        %v822 = vld [vmem:[%s728 + $0xd0] sm:$0xf]
        %v823 = vsel %vm730, %v635, %v822
        %824 = vst [vmem:[%s728 + $0xd0] sm:$0xf] %v823
        %825 = vst [vmem:[%s728 + $0xd4] sm:$0xf] %v644
        %v826 = vld [vmem:[%s728 + $0xd8] sm:$0x1]
        %v827 = vsel %vm231, %v645, %v826
        %828 = vst [vmem:[%s728 + $0xd8] sm:$0x1] %v827
        %v829 = vld [vmem:[%s728 + $0xe0] sm:$0xf]
        %v830 = vsel %vm730, %v652, %v829
        %831 = vst [vmem:[%s728 + $0xe0] sm:$0xf] %v830
        %832 = vst [vmem:[%s728 + $0xe4] sm:$0xf] %v661
        %v833 = vld [vmem:[%s728 + $0xe8] sm:$0x1]
        %v834 = vsel %vm231, %v662, %v833
        %835 = vst [vmem:[%s728 + $0xe8] sm:$0x1] %v834
        %v836 = vld [vmem:[%s728 + $0xf0] sm:$0xf]
        %v837 = vsel %vm730, %v669, %v836
        %838 = vst [vmem:[%s728 + $0xf0] sm:$0xf] %v837
        %839 = vst [vmem:[%s728 + $0xf4] sm:$0xf] %v678
        %v840 = vld [vmem:[%s728 + $0xf8] sm:$0x1]
        %v841 = vsel %vm231, %v679, %v840
        %842 = vst [vmem:[%s728 + $0xf8] sm:$0x1] %v841
        %v843 = vld [vmem:[#allocation2] sm:$0xf]
        %v844 = vld [vmem:[#allocation2 + $0x4] sm:$0xf]
        %v845 = vld [vmem:[#allocation2 + $0x8] sm:$0xf]
        %v846 = vld [vmem:[#allocation2 + $0x10] sm:$0xf]
        %v847 = vld [vmem:[#allocation2 + $0x14] sm:$0xf]
        %v848 = vld [vmem:[#allocation2 + $0x18] sm:$0xf]
        %v849 = vld [vmem:[#allocation2 + $0x20] sm:$0xf]
        %v850 = vld [vmem:[#allocation2 + $0x24] sm:$0xf]
        %v851 = vld [vmem:[#allocation2 + $0x28] sm:$0xf]
        %v852 = vld [vmem:[#allocation2 + $0x30] sm:$0xf]
        %v853 = vld [vmem:[#allocation2 + $0x34] sm:$0xf]
        %v854 = vld [vmem:[#allocation2 + $0x38] sm:$0xf]
        %v855 = vld [vmem:[#allocation2 + $0x40] sm:$0xf]
        %v856 = vld [vmem:[#allocation2 + $0x44] sm:$0xf]
        %v857 = vld [vmem:[#allocation2 + $0x48] sm:$0xf]
        %v858 = vld [vmem:[#allocation2 + $0x50] sm:$0xf]
        %v859 = vld [vmem:[#allocation2 + $0x54] sm:$0xf]
        %v860 = vld [vmem:[#allocation2 + $0x58] sm:$0xf]
        %v861 = vld [vmem:[#allocation2 + $0x60] sm:$0xf]
        %v862 = vld [vmem:[#allocation2 + $0x64] sm:$0xf]
        %v863 = vld [vmem:[#allocation2 + $0x68] sm:$0xf]
        %v864 = vld [vmem:[#allocation2 + $0x70] sm:$0xf]
        %v865 = vld [vmem:[#allocation2 + $0x74] sm:$0xf]
        %v866 = vld [vmem:[#allocation2 + $0x78] sm:$0xf]
        %v867 = vld [vmem:[#allocation2 + $0x80] sm:$0xf]
        %v868 = vld [vmem:[#allocation2 + $0x84] sm:$0xf]
        %v869 = vld [vmem:[#allocation2 + $0x88] sm:$0xf]
        %v870 = vld [vmem:[#allocation2 + $0x90] sm:$0xf]
        %v871 = vld [vmem:[#allocation2 + $0x94] sm:$0xf]
        %v872 = vld [vmem:[#allocation2 + $0x98] sm:$0xf]
        %v873 = vld [vmem:[#allocation2 + $0xa0] sm:$0xf]
        %v874 = vld [vmem:[#allocation2 + $0xa4] sm:$0xf]
        %v875 = vld [vmem:[#allocation2 + $0xa8] sm:$0xf]
        %v876 = vld [vmem:[#allocation2 + $0xb0] sm:$0xf]
        %v877 = vld [vmem:[#allocation2 + $0xb4] sm:$0xf]
        %v878 = vld [vmem:[#allocation2 + $0xb8] sm:$0xf]
        %v879 = vld [vmem:[#allocation2 + $0xc0] sm:$0xf]
        %v880 = vld [vmem:[#allocation2 + $0xc4] sm:$0xf]
        %v881 = vld [vmem:[#allocation2 + $0xc8] sm:$0xf]
        %v882 = vld [vmem:[#allocation2 + $0xd0] sm:$0xf]
        %v883 = vld [vmem:[#allocation2 + $0xd4] sm:$0xf]
        %v884 = vld [vmem:[#allocation2 + $0xd8] sm:$0xf]
        %v885 = vld [vmem:[#allocation2 + $0xe0] sm:$0xf]
        %v886 = vld [vmem:[#allocation2 + $0xe4] sm:$0xf]
        %v887 = vld [vmem:[#allocation2 + $0xe8] sm:$0xf]
        %v888 = vld [vmem:[#allocation2 + $0xf0] sm:$0xf]
        %v889 = vld [vmem:[#allocation2 + $0xf4] sm:$0xf]
        %v890 = vld [vmem:[#allocation2 + $0xf8] sm:$0xf]
        %v891 = vld [vmem:[#allocation6] sm:$0xf]
        %v892 = vld [vmem:[#allocation6 + $0x4] sm:$0xf]
        %v893 = vld [vmem:[#allocation6 + $0x8] sm:$0xf]
        %v894 = vld [vmem:[#allocation6 + $0xc] sm:$0xf]
        %v895 = vld [vmem:[#allocation6 + $0x10] sm:$0xf]
        %v896 = vld [vmem:[#allocation6 + $0x14] sm:$0xf]
        %v897 = vld [vmem:[#allocation6 + $0x18] sm:$0xf]
        %v898 = vld [vmem:[#allocation6 + $0x1c] sm:$0xf]
        %v899 = vld [vmem:[#allocation6 + $0x20] sm:$0xf]
        %v900 = vld [vmem:[#allocation6 + $0x24] sm:$0xf]
        %v901 = vld [vmem:[#allocation6 + $0x28] sm:$0xf]
        %v902 = vld [vmem:[#allocation6 + $0x2c] sm:$0xf]
        %v903 = vld [vmem:[#allocation6 + $0x30] sm:$0xf]
        %v904 = vld [vmem:[#allocation6 + $0x34] sm:$0xf]
        %v905 = vld [vmem:[#allocation6 + $0x38] sm:$0xf]
        %v906 = vld [vmem:[#allocation6 + $0x3c] sm:$0xf]
        %vm907 = vsmask.f32 3328
        %vm908 = vsmask.f32 7440
        %vm909 = vmor %vm907, %vm908
        %v911 = vshrl.u32 %v843, 16
        %v913 = vrot.slane %v911, 4
        %v914 = vshll.u32 %v843, 16
        %v916 = vrot.slane %v914, 5
        %v917 = vor.u32 %v913, %v916
        %v918 = vrot.slane %v917, 4
        %v920 = vshll.u32 %v844, 16
        %v922 = vrot.slane %v920, 5
        %v923 = vsel %vm909, %v918, %v922
        %v924 = vshrl.u32 %v844, 16
        %v926 = vrot.slane %v924, 4
        %v927 = vor.u32 %v926, %v922
        %v928 = vrot.slane %v927, 4
        %v930 = vshll.u32 %v845, 16
        %v932 = vrot.slane %v930, 5
        %v933 = vsel %vm909, %v928, %v932
        %v935 = vshrl.u32 %v846, 16
        %v937 = vrot.slane %v935, 4
        %v938 = vshll.u32 %v846, 16
        %v940 = vrot.slane %v938, 5
        %v941 = vor.u32 %v937, %v940
        %v942 = vrot.slane %v941, 4
        %v944 = vshll.u32 %v847, 16
        %v946 = vrot.slane %v944, 5
        %v947 = vsel %vm909, %v942, %v946
        %v948 = vshrl.u32 %v847, 16
        %v950 = vrot.slane %v948, 4
        %v951 = vor.u32 %v950, %v946
        %v952 = vrot.slane %v951, 4
        %v954 = vshll.u32 %v848, 16
        %v956 = vrot.slane %v954, 5
        %v957 = vsel %vm909, %v952, %v956
        %v959 = vshrl.u32 %v849, 16
        %v961 = vrot.slane %v959, 4
        %v962 = vshll.u32 %v849, 16
        %v964 = vrot.slane %v962, 5
        %v965 = vor.u32 %v961, %v964
        %v966 = vrot.slane %v965, 4
        %v968 = vshll.u32 %v850, 16
        %v970 = vrot.slane %v968, 5
        %v971 = vsel %vm909, %v966, %v970
        %v972 = vshrl.u32 %v850, 16
        %v974 = vrot.slane %v972, 4
        %v975 = vor.u32 %v974, %v970
        %v976 = vrot.slane %v975, 4
        %v978 = vshll.u32 %v851, 16
        %v980 = vrot.slane %v978, 5
        %v981 = vsel %vm909, %v976, %v980
        %v983 = vshrl.u32 %v852, 16
        %v985 = vrot.slane %v983, 4
        %v986 = vshll.u32 %v852, 16
        %v988 = vrot.slane %v986, 5
        %v989 = vor.u32 %v985, %v988
        %v990 = vrot.slane %v989, 4
        %v992 = vshll.u32 %v853, 16
        %v994 = vrot.slane %v992, 5
        %v995 = vsel %vm909, %v990, %v994
        %v996 = vshrl.u32 %v853, 16
        %v998 = vrot.slane %v996, 4
        %v999 = vor.u32 %v998, %v994
        %v1000 = vrot.slane %v999, 4
        %v1002 = vshll.u32 %v854, 16
        %v1004 = vrot.slane %v1002, 5
        %v1005 = vsel %vm909, %v1000, %v1004
        %v1007 = vshrl.u32 %v855, 16
        %v1009 = vrot.slane %v1007, 4
        %v1010 = vshll.u32 %v855, 16
        %v1012 = vrot.slane %v1010, 5
        %v1013 = vor.u32 %v1009, %v1012
        %v1014 = vrot.slane %v1013, 4
        %v1016 = vshll.u32 %v856, 16
        %v1018 = vrot.slane %v1016, 5
        %v1019 = vsel %vm909, %v1014, %v1018
        %v1020 = vshrl.u32 %v856, 16
        %v1022 = vrot.slane %v1020, 4
        %v1023 = vor.u32 %v1022, %v1018
        %v1024 = vrot.slane %v1023, 4
        %v1026 = vshll.u32 %v857, 16
        %v1028 = vrot.slane %v1026, 5
        %v1029 = vsel %vm909, %v1024, %v1028
        %v1031 = vshrl.u32 %v858, 16
        %v1033 = vrot.slane %v1031, 4
        %v1034 = vshll.u32 %v858, 16
        %v1036 = vrot.slane %v1034, 5
        %v1037 = vor.u32 %v1033, %v1036
        %v1038 = vrot.slane %v1037, 4
        %v1040 = vshll.u32 %v859, 16
        %v1042 = vrot.slane %v1040, 5
        %v1043 = vsel %vm909, %v1038, %v1042
        %v1044 = vshrl.u32 %v859, 16
        %v1046 = vrot.slane %v1044, 4
        %v1047 = vor.u32 %v1046, %v1042
        %v1048 = vrot.slane %v1047, 4
        %v1050 = vshll.u32 %v860, 16
        %v1052 = vrot.slane %v1050, 5
        %v1053 = vsel %vm909, %v1048, %v1052
        %v1055 = vshrl.u32 %v861, 16
        %v1057 = vrot.slane %v1055, 4
        %v1058 = vshll.u32 %v861, 16
        %v1060 = vrot.slane %v1058, 5
        %v1061 = vor.u32 %v1057, %v1060
        %v1062 = vrot.slane %v1061, 4
        %v1064 = vshll.u32 %v862, 16
        %v1066 = vrot.slane %v1064, 5
        %v1067 = vsel %vm909, %v1062, %v1066
        %v1068 = vshrl.u32 %v862, 16
        %v1070 = vrot.slane %v1068, 4
        %v1071 = vor.u32 %v1070, %v1066
        %v1072 = vrot.slane %v1071, 4
        %v1074 = vshll.u32 %v863, 16
        %v1076 = vrot.slane %v1074, 5
        %v1077 = vsel %vm909, %v1072, %v1076
        %v1079 = vshrl.u32 %v864, 16
        %v1081 = vrot.slane %v1079, 4
        %v1082 = vshll.u32 %v864, 16
        %v1084 = vrot.slane %v1082, 5
        %v1085 = vor.u32 %v1081, %v1084
        %v1086 = vrot.slane %v1085, 4
        %v1088 = vshll.u32 %v865, 16
        %v1090 = vrot.slane %v1088, 5
        %v1091 = vsel %vm909, %v1086, %v1090
        %v1092 = vshrl.u32 %v865, 16
        %v1094 = vrot.slane %v1092, 4
        %v1095 = vor.u32 %v1094, %v1090
        %v1096 = vrot.slane %v1095, 4
        %v1098 = vshll.u32 %v866, 16
        %v1100 = vrot.slane %v1098, 5
        %v1101 = vsel %vm909, %v1096, %v1100
        %v1103 = vshrl.u32 %v867, 16
        %v1105 = vrot.slane %v1103, 4
        %v1106 = vshll.u32 %v867, 16
        %v1108 = vrot.slane %v1106, 5
        %v1109 = vor.u32 %v1105, %v1108
        %v1110 = vrot.slane %v1109, 4
        %v1112 = vshll.u32 %v868, 16
        %v1114 = vrot.slane %v1112, 5
        %v1115 = vsel %vm909, %v1110, %v1114
        %v1116 = vshrl.u32 %v868, 16
        %v1118 = vrot.slane %v1116, 4
        %v1119 = vor.u32 %v1118, %v1114
        %v1120 = vrot.slane %v1119, 4
        %v1122 = vshll.u32 %v869, 16
        %v1124 = vrot.slane %v1122, 5
        %v1125 = vsel %vm909, %v1120, %v1124
        %v1127 = vshrl.u32 %v870, 16
        %v1129 = vrot.slane %v1127, 4
        %v1130 = vshll.u32 %v870, 16
        %v1132 = vrot.slane %v1130, 5
        %v1133 = vor.u32 %v1129, %v1132
        %v1134 = vrot.slane %v1133, 4
        %v1136 = vshll.u32 %v871, 16
        %v1138 = vrot.slane %v1136, 5
        %v1139 = vsel %vm909, %v1134, %v1138
        %v1140 = vshrl.u32 %v871, 16
        %v1142 = vrot.slane %v1140, 4
        %v1143 = vor.u32 %v1142, %v1138
        %v1144 = vrot.slane %v1143, 4
        %v1146 = vshll.u32 %v872, 16
        %v1148 = vrot.slane %v1146, 5
        %v1149 = vsel %vm909, %v1144, %v1148
        %v1151 = vshrl.u32 %v873, 16
        %v1153 = vrot.slane %v1151, 4
        %v1154 = vshll.u32 %v873, 16
        %v1156 = vrot.slane %v1154, 5
        %v1157 = vor.u32 %v1153, %v1156
        %v1158 = vrot.slane %v1157, 4
        %v1160 = vshll.u32 %v874, 16
        %v1162 = vrot.slane %v1160, 5
        %v1163 = vsel %vm909, %v1158, %v1162
        %v1164 = vshrl.u32 %v874, 16
        %v1166 = vrot.slane %v1164, 4
        %v1167 = vor.u32 %v1166, %v1162
        %v1168 = vrot.slane %v1167, 4
        %v1170 = vshll.u32 %v875, 16
        %v1172 = vrot.slane %v1170, 5
        %v1173 = vsel %vm909, %v1168, %v1172
        %v1175 = vshrl.u32 %v876, 16
        %v1177 = vrot.slane %v1175, 4
        %v1178 = vshll.u32 %v876, 16
        %v1180 = vrot.slane %v1178, 5
        %v1181 = vor.u32 %v1177, %v1180
        %v1182 = vrot.slane %v1181, 4
        %v1184 = vshll.u32 %v877, 16
        %v1186 = vrot.slane %v1184, 5
        %v1187 = vsel %vm909, %v1182, %v1186
        %v1188 = vshrl.u32 %v877, 16
        %v1190 = vrot.slane %v1188, 4
        %v1191 = vor.u32 %v1190, %v1186
        %v1192 = vrot.slane %v1191, 4
        %v1194 = vshll.u32 %v878, 16
        %v1196 = vrot.slane %v1194, 5
        %v1197 = vsel %vm909, %v1192, %v1196
        %v1199 = vshrl.u32 %v879, 16
        %v1201 = vrot.slane %v1199, 4
        %v1202 = vshll.u32 %v879, 16
        %v1204 = vrot.slane %v1202, 5
        %v1205 = vor.u32 %v1201, %v1204
        %v1206 = vrot.slane %v1205, 4
        %v1208 = vshll.u32 %v880, 16
        %v1210 = vrot.slane %v1208, 5
        %v1211 = vsel %vm909, %v1206, %v1210
        %v1212 = vshrl.u32 %v880, 16
        %v1214 = vrot.slane %v1212, 4
        %v1215 = vor.u32 %v1214, %v1210
        %v1216 = vrot.slane %v1215, 4
        %v1218 = vshll.u32 %v881, 16
        %v1220 = vrot.slane %v1218, 5
        %v1221 = vsel %vm909, %v1216, %v1220
        %v1223 = vshrl.u32 %v882, 16
        %v1225 = vrot.slane %v1223, 4
        %v1226 = vshll.u32 %v882, 16
        %v1228 = vrot.slane %v1226, 5
        %v1229 = vor.u32 %v1225, %v1228
        %v1230 = vrot.slane %v1229, 4
        %v1232 = vshll.u32 %v883, 16
        %v1234 = vrot.slane %v1232, 5
        %v1235 = vsel %vm909, %v1230, %v1234
        %v1236 = vshrl.u32 %v883, 16
        %v1238 = vrot.slane %v1236, 4
        %v1239 = vor.u32 %v1238, %v1234
        %v1240 = vrot.slane %v1239, 4
        %v1242 = vshll.u32 %v884, 16
        %v1244 = vrot.slane %v1242, 5
        %v1245 = vsel %vm909, %v1240, %v1244
        %v1247 = vshrl.u32 %v885, 16
        %v1249 = vrot.slane %v1247, 4
        %v1250 = vshll.u32 %v885, 16
        %v1252 = vrot.slane %v1250, 5
        %v1253 = vor.u32 %v1249, %v1252
        %v1254 = vrot.slane %v1253, 4
        %v1256 = vshll.u32 %v886, 16
        %v1258 = vrot.slane %v1256, 5
        %v1259 = vsel %vm909, %v1254, %v1258
        %v1260 = vshrl.u32 %v886, 16
        %v1262 = vrot.slane %v1260, 4
        %v1263 = vor.u32 %v1262, %v1258
        %v1264 = vrot.slane %v1263, 4
        %v1266 = vshll.u32 %v887, 16
        %v1268 = vrot.slane %v1266, 5
        %v1269 = vsel %vm909, %v1264, %v1268
        %v1271 = vshrl.u32 %v888, 16
        %v1273 = vrot.slane %v1271, 4
        %v1274 = vshll.u32 %v888, 16
        %v1276 = vrot.slane %v1274, 5
        %v1277 = vor.u32 %v1273, %v1276
        %v1278 = vrot.slane %v1277, 4
        %v1280 = vshll.u32 %v889, 16
        %v1282 = vrot.slane %v1280, 5
        %v1283 = vsel %vm909, %v1278, %v1282
        %v1284 = vshrl.u32 %v889, 16
        %v1286 = vrot.slane %v1284, 4
        %v1287 = vor.u32 %v1286, %v1282
        %v1288 = vrot.slane %v1287, 4
        %v1290 = vshll.u32 %v890, 16
        %v1292 = vrot.slane %v1290, 5
        %v1293 = vsel %vm909, %v1288, %v1292
        %s1294 = scalar_lea.vmem [#allocation6], 64
        %v1295 = vld [vmem:[%s1294] sm:$0xf]
        %v1296 = vld [vmem:[%s1294 + $0x4] sm:$0xf]
        %v1297 = vld [vmem:[%s1294 + $0x8] sm:$0xf]
        %v1298 = vld [vmem:[%s1294 + $0xc] sm:$0xf]
        %v1299 = vld [vmem:[%s1294 + $0x10] sm:$0xf]
        %v1300 = vld [vmem:[%s1294 + $0x14] sm:$0xf]
        %v1301 = vld [vmem:[%s1294 + $0x18] sm:$0xf]
        %v1302 = vld [vmem:[%s1294 + $0x1c] sm:$0xf]
        %v1303 = vld [vmem:[%s1294 + $0x20] sm:$0xf]
        %v1304 = vld [vmem:[%s1294 + $0x24] sm:$0xf]
        %v1305 = vld [vmem:[%s1294 + $0x28] sm:$0xf]
        %v1306 = vld [vmem:[%s1294 + $0x2c] sm:$0xf]
        %v1307 = vld [vmem:[%s1294 + $0x30] sm:$0xf]
        %v1308 = vld [vmem:[%s1294 + $0x34] sm:$0xf]
        %v1309 = vld [vmem:[%s1294 + $0x38] sm:$0xf]
        %v1310 = vld [vmem:[%s1294 + $0x3c] sm:$0xf]
        %v1311 = vunpack.c.l.b16 %v923
        %v1312 = vunpack.c.l.b16 %v933
        %v1313 = vunpack.c.l.b16 %v947
        %v1314 = vunpack.c.l.b16 %v957
        %v1315 = vunpack.c.l.b16 %v971
        %v1316 = vunpack.c.l.b16 %v981
        %v1317 = vunpack.c.l.b16 %v995
        %v1318 = vunpack.c.l.b16 %v1005
        %v1319 = vunpack.c.l.b16 %v1019
        %v1320 = vunpack.c.l.b16 %v1029
        %v1321 = vunpack.c.l.b16 %v1043
        %v1322 = vunpack.c.l.b16 %v1053
        %v1323 = vunpack.c.l.b16 %v1067
        %v1324 = vunpack.c.l.b16 %v1077
        %v1325 = vunpack.c.l.b16 %v1091
        %v1326 = vunpack.c.l.b16 %v1101
        %v1327 = vunpack.c.l.b16 %v1115
        %v1328 = vunpack.c.l.b16 %v1125
        %v1329 = vunpack.c.l.b16 %v1139
        %v1330 = vunpack.c.l.b16 %v1149
        %v1331 = vunpack.c.l.b16 %v1163
        %v1332 = vunpack.c.l.b16 %v1173
        %v1333 = vunpack.c.l.b16 %v1187
        %v1334 = vunpack.c.l.b16 %v1197
        %v1335 = vunpack.c.l.b16 %v1211
        %v1336 = vunpack.c.l.b16 %v1221
        %v1337 = vunpack.c.l.b16 %v1235
        %v1338 = vunpack.c.l.b16 %v1245
        %v1339 = vunpack.c.l.b16 %v1259
        %v1340 = vunpack.c.l.b16 %v1269
        %v1341 = vunpack.c.l.b16 %v1283
        %v1342 = vunpack.c.l.b16 %v1293
        %v1343 = vpack.c.b16 %v1312, %v1311
        %v1344 = vpack.c.b16 %v1314, %v1313
        %v1345 = vpack.c.b16 %v1316, %v1315
        %v1346 = vpack.c.b16 %v1318, %v1317
        %v1347 = vpack.c.b16 %v1320, %v1319
        %v1348 = vpack.c.b16 %v1322, %v1321
        %v1349 = vpack.c.b16 %v1324, %v1323
        %v1350 = vpack.c.b16 %v1326, %v1325
        %v1351 = vpack.c.b16 %v1328, %v1327
        %v1352 = vpack.c.b16 %v1330, %v1329
        %v1353 = vpack.c.b16 %v1332, %v1331
        %v1354 = vpack.c.b16 %v1334, %v1333
        %v1355 = vpack.c.b16 %v1336, %v1335
        %v1356 = vpack.c.b16 %v1338, %v1337
        %v1357 = vpack.c.b16 %v1340, %v1339
        %v1358 = vpack.c.b16 %v1342, %v1341
        %v1391 = vunpack.c.l.b16 %v1295
        %v1392 = vunpack.c.l.b16 %v1296
        %v1393 = vunpack.c.l.b16 %v1297
        %v1394 = vunpack.c.l.b16 %v1298
        %v1395 = vunpack.c.l.b16 %v1299
        %v1396 = vunpack.c.l.b16 %v1300
        %v1397 = vunpack.c.l.b16 %v1301
        %v1398 = vunpack.c.l.b16 %v1302
        %v1399 = vunpack.c.l.b16 %v1303
        %v1400 = vunpack.c.l.b16 %v1304
        %v1401 = vunpack.c.l.b16 %v1305
        %v1402 = vunpack.c.l.b16 %v1306
        %v1403 = vunpack.c.l.b16 %v1307
        %v1404 = vunpack.c.l.b16 %v1308
        %v1405 = vunpack.c.l.b16 %v1309
        %v1406 = vunpack.c.l.b16 %v1310
        %v1407 = vpack.c.b16 %v1392, %v1391
        %v1408 = vpack.c.b16 %v1394, %v1393
        %v1409 = vpack.c.b16 %v1396, %v1395
        %v1410 = vpack.c.b16 %v1398, %v1397
        %v1411 = vpack.c.b16 %v1400, %v1399
        %v1412 = vpack.c.b16 %v1402, %v1401
        %v1413 = vpack.c.b16 %v1404, %v1403
        %v1414 = vpack.c.b16 %v1406, %v1405
        %1423 = vmatpush.bf16.msra.mxu0 %v1414
        %1424 = vmatpush.bf16.msra.mxu0 %v1413
        %1425 = vmatpush.bf16.msra.mxu0 %v1412
        %1426 = vmatpush.bf16.msra.mxu0 %v1411
        %1427 = vmatpush.bf16.msra.mxu0 %v1410
        %1428 = vmatpush.bf16.msra.mxu0 %v1409
        %1429 = vmatpush.bf16.msra.mxu0 %v1408
        %1430 = vmatpush.bf16.msra.mxu0 %v1407
        %1431 = vmatmul.bf16.gmra.mxu0 %v1343
        %v1432 = vpop.f32.mrf.mxu0
        %v1433 = vadd.f32 0.0, %v1432
        %v1434 = vpop.f32.mrf.mxu0
        %v1435 = vadd.f32 0.0, %v1434
        %1436 = vmatmul.bf16.gmra.mxu0 %v1344
        %v1437 = vpop.f32.mrf.mxu0
        %v1438 = vadd.f32 0.0, %v1437
        %v1439 = vpop.f32.mrf.mxu0
        %v1440 = vadd.f32 0.0, %v1439
        %1441 = vmatmul.bf16.gmra.mxu0 %v1345
        %v1442 = vpop.f32.mrf.mxu0
        %v1443 = vadd.f32 0.0, %v1442
        %v1444 = vpop.f32.mrf.mxu0
        %v1445 = vadd.f32 0.0, %v1444
        %1446 = vmatmul.bf16.gmra.mxu0 %v1346
        %v1447 = vpop.f32.mrf.mxu0
        %v1448 = vadd.f32 0.0, %v1447
        %v1449 = vpop.f32.mrf.mxu0
        %v1450 = vadd.f32 0.0, %v1449
        %1451 = vmatmul.bf16.gmra.mxu0 %v1347
        %v1452 = vpop.f32.mrf.mxu0
        %v1453 = vadd.f32 0.0, %v1452
        %v1454 = vpop.f32.mrf.mxu0
        %v1455 = vadd.f32 0.0, %v1454
        %1456 = vmatmul.bf16.gmra.mxu0 %v1348
        %v1457 = vpop.f32.mrf.mxu0
        %v1458 = vadd.f32 0.0, %v1457
        %v1459 = vpop.f32.mrf.mxu0
        %v1460 = vadd.f32 0.0, %v1459
        %1461 = vmatmul.bf16.gmra.mxu0 %v1349
        %v1462 = vpop.f32.mrf.mxu0
        %v1463 = vadd.f32 0.0, %v1462
        %v1464 = vpop.f32.mrf.mxu0
        %v1465 = vadd.f32 0.0, %v1464
        %1466 = vmatmul.bf16.gmra.mxu0 %v1350
        %v1467 = vpop.f32.mrf.mxu0
        %v1468 = vadd.f32 0.0, %v1467
        %v1469 = vpop.f32.mrf.mxu0
        %v1470 = vadd.f32 0.0, %v1469
        %1471 = vmatmul.bf16.gmra.mxu0 %v1351
        %v1472 = vpop.f32.mrf.mxu0
        %v1473 = vadd.f32 0.0, %v1472
        %v1474 = vpop.f32.mrf.mxu0
        %v1475 = vadd.f32 0.0, %v1474
        %1476 = vmatmul.bf16.gmra.mxu0 %v1352
        %v1477 = vpop.f32.mrf.mxu0
        %v1478 = vadd.f32 0.0, %v1477
        %v1479 = vpop.f32.mrf.mxu0
        %v1480 = vadd.f32 0.0, %v1479
        %1481 = vmatmul.bf16.gmra.mxu0 %v1353
        %v1482 = vpop.f32.mrf.mxu0
        %v1483 = vadd.f32 0.0, %v1482
        %v1484 = vpop.f32.mrf.mxu0
        %v1485 = vadd.f32 0.0, %v1484
        %1486 = vmatmul.bf16.gmra.mxu0 %v1354
        %v1487 = vpop.f32.mrf.mxu0
        %v1488 = vadd.f32 0.0, %v1487
        %v1489 = vpop.f32.mrf.mxu0
        %v1490 = vadd.f32 0.0, %v1489
        %1491 = vmatmul.bf16.gmra.mxu0 %v1355
        %v1492 = vpop.f32.mrf.mxu0
        %v1493 = vadd.f32 0.0, %v1492
        %v1494 = vpop.f32.mrf.mxu0
        %v1495 = vadd.f32 0.0, %v1494
        %1496 = vmatmul.bf16.gmra.mxu0 %v1356
        %v1497 = vpop.f32.mrf.mxu0
        %v1498 = vadd.f32 0.0, %v1497
        %v1499 = vpop.f32.mrf.mxu0
        %v1500 = vadd.f32 0.0, %v1499
        %1501 = vmatmul.bf16.gmra.mxu0 %v1357
        %v1502 = vpop.f32.mrf.mxu0
        %v1503 = vadd.f32 0.0, %v1502
        %v1504 = vpop.f32.mrf.mxu0
        %v1505 = vadd.f32 0.0, %v1504
        %1506 = vmatmul.bf16.gmra.mxu0 %v1358
        %v1507 = vpop.f32.mrf.mxu0
        %v1508 = vadd.f32 0.0, %v1507
        %v1509 = vpop.f32.mrf.mxu0
        %v1510 = vadd.f32 0.0, %v1509
        %1511 = vdwg.mxu0
        %v1544 = vunpack.c.l.b16 %v843
        %v1545 = vunpack.c.l.b16 %v844
        %v1546 = vunpack.c.l.b16 %v846
        %v1547 = vunpack.c.l.b16 %v847
        %v1548 = vunpack.c.l.b16 %v849
        %v1549 = vunpack.c.l.b16 %v850
        %v1550 = vunpack.c.l.b16 %v852
        %v1551 = vunpack.c.l.b16 %v853
        %v1552 = vunpack.c.l.b16 %v855
        %v1553 = vunpack.c.l.b16 %v856
        %v1554 = vunpack.c.l.b16 %v858
        %v1555 = vunpack.c.l.b16 %v859
        %v1556 = vunpack.c.l.b16 %v861
        %v1557 = vunpack.c.l.b16 %v862
        %v1558 = vunpack.c.l.b16 %v864
        %v1559 = vunpack.c.l.b16 %v865
        %v1560 = vunpack.c.l.b16 %v867
        %v1561 = vunpack.c.l.b16 %v868
        %v1562 = vunpack.c.l.b16 %v870
        %v1563 = vunpack.c.l.b16 %v871
        %v1564 = vunpack.c.l.b16 %v873
        %v1565 = vunpack.c.l.b16 %v874
        %v1566 = vunpack.c.l.b16 %v876
        %v1567 = vunpack.c.l.b16 %v877
        %v1568 = vunpack.c.l.b16 %v879
        %v1569 = vunpack.c.l.b16 %v880
        %v1570 = vunpack.c.l.b16 %v882
        %v1571 = vunpack.c.l.b16 %v883
        %v1572 = vunpack.c.l.b16 %v885
        %v1573 = vunpack.c.l.b16 %v886
        %v1574 = vunpack.c.l.b16 %v888
        %v1575 = vunpack.c.l.b16 %v889
        %v1576 = vpack.c.b16 %v1545, %v1544
        %v1577 = vpack.c.b16 %v1547, %v1546
        %v1578 = vpack.c.b16 %v1549, %v1548
        %v1579 = vpack.c.b16 %v1551, %v1550
        %v1580 = vpack.c.b16 %v1553, %v1552
        %v1581 = vpack.c.b16 %v1555, %v1554
        %v1582 = vpack.c.b16 %v1557, %v1556
        %v1583 = vpack.c.b16 %v1559, %v1558
        %v1584 = vpack.c.b16 %v1561, %v1560
        %v1585 = vpack.c.b16 %v1563, %v1562
        %v1586 = vpack.c.b16 %v1565, %v1564
        %v1587 = vpack.c.b16 %v1567, %v1566
        %v1588 = vpack.c.b16 %v1569, %v1568
        %v1589 = vpack.c.b16 %v1571, %v1570
        %v1590 = vpack.c.b16 %v1573, %v1572
        %v1591 = vpack.c.b16 %v1575, %v1574
        %v1624 = vunpack.c.l.b16 %v891
        %v1625 = vunpack.c.l.b16 %v892
        %v1626 = vunpack.c.l.b16 %v893
        %v1627 = vunpack.c.l.b16 %v894
        %v1628 = vunpack.c.l.b16 %v895
        %v1629 = vunpack.c.l.b16 %v896
        %v1630 = vunpack.c.l.b16 %v897
        %v1631 = vunpack.c.l.b16 %v898
        %v1632 = vunpack.c.l.b16 %v899
        %v1633 = vunpack.c.l.b16 %v900
        %v1634 = vunpack.c.l.b16 %v901
        %v1635 = vunpack.c.l.b16 %v902
        %v1636 = vunpack.c.l.b16 %v903
        %v1637 = vunpack.c.l.b16 %v904
        %v1638 = vunpack.c.l.b16 %v905
        %v1639 = vunpack.c.l.b16 %v906
        %v1640 = vpack.c.b16 %v1625, %v1624
        %v1641 = vpack.c.b16 %v1627, %v1626
        %v1642 = vpack.c.b16 %v1629, %v1628
        %v1643 = vpack.c.b16 %v1631, %v1630
        %v1644 = vpack.c.b16 %v1633, %v1632
        %v1645 = vpack.c.b16 %v1635, %v1634
        %v1646 = vpack.c.b16 %v1637, %v1636
        %v1647 = vpack.c.b16 %v1639, %v1638
        %1656 = vmatpush.bf16.msra.mxu0 %v1647
        %1657 = vmatpush.bf16.msra.mxu0 %v1646
        %1658 = vmatpush.bf16.msra.mxu0 %v1645
        %1659 = vmatpush.bf16.msra.mxu0 %v1644
        %1660 = vmatpush.bf16.msra.mxu0 %v1643
        %1661 = vmatpush.bf16.msra.mxu0 %v1642
        %1662 = vmatpush.bf16.msra.mxu0 %v1641
        %1663 = vmatpush.bf16.msra.mxu0 %v1640
        %1664 = vmatmul.bf16.gmra.mxu0 %v1576
        %v1665 = vpop.f32.mrf.mxu0
        %v1666 = vadd.f32 %v1433, %v1665
        %v1667 = vpop.f32.mrf.mxu0
        %v1668 = vadd.f32 %v1435, %v1667
        %1669 = vmatmul.bf16.gmra.mxu0 %v1577
        %v1670 = vpop.f32.mrf.mxu0
        %v1671 = vadd.f32 %v1438, %v1670
        %v1672 = vpop.f32.mrf.mxu0
        %v1673 = vadd.f32 %v1440, %v1672
        %1674 = vmatmul.bf16.gmra.mxu0 %v1578
        %v1675 = vpop.f32.mrf.mxu0
        %v1676 = vadd.f32 %v1443, %v1675
        %v1677 = vpop.f32.mrf.mxu0
        %v1678 = vadd.f32 %v1445, %v1677
        %1679 = vmatmul.bf16.gmra.mxu0 %v1579
        %v1680 = vpop.f32.mrf.mxu0
        %v1681 = vadd.f32 %v1448, %v1680
        %v1682 = vpop.f32.mrf.mxu0
        %v1683 = vadd.f32 %v1450, %v1682
        %1684 = vmatmul.bf16.gmra.mxu0 %v1580
        %v1685 = vpop.f32.mrf.mxu0
        %v1686 = vadd.f32 %v1453, %v1685
        %v1687 = vpop.f32.mrf.mxu0
        %v1688 = vadd.f32 %v1455, %v1687
        %1689 = vmatmul.bf16.gmra.mxu0 %v1581
        %v1690 = vpop.f32.mrf.mxu0
        %v1691 = vadd.f32 %v1458, %v1690
        %v1692 = vpop.f32.mrf.mxu0
        %v1693 = vadd.f32 %v1460, %v1692
        %1694 = vmatmul.bf16.gmra.mxu0 %v1582
        %v1695 = vpop.f32.mrf.mxu0
        %v1696 = vadd.f32 %v1463, %v1695
        %v1697 = vpop.f32.mrf.mxu0
        %v1698 = vadd.f32 %v1465, %v1697
        %1699 = vmatmul.bf16.gmra.mxu0 %v1583
        %v1700 = vpop.f32.mrf.mxu0
        %v1701 = vadd.f32 %v1468, %v1700
        %v1702 = vpop.f32.mrf.mxu0
        %v1703 = vadd.f32 %v1470, %v1702
        %1704 = vmatmul.bf16.gmra.mxu0 %v1584
        %v1705 = vpop.f32.mrf.mxu0
        %v1706 = vadd.f32 %v1473, %v1705
        %v1707 = vpop.f32.mrf.mxu0
        %v1708 = vadd.f32 %v1475, %v1707
        %1709 = vmatmul.bf16.gmra.mxu0 %v1585
        %v1710 = vpop.f32.mrf.mxu0
        %v1711 = vadd.f32 %v1478, %v1710
        %v1712 = vpop.f32.mrf.mxu0
        %v1713 = vadd.f32 %v1480, %v1712
        %1714 = vmatmul.bf16.gmra.mxu0 %v1586
        %v1715 = vpop.f32.mrf.mxu0
        %v1716 = vadd.f32 %v1483, %v1715
        %v1717 = vpop.f32.mrf.mxu0
        %v1718 = vadd.f32 %v1485, %v1717
        %1719 = vmatmul.bf16.gmra.mxu0 %v1587
        %v1720 = vpop.f32.mrf.mxu0
        %v1721 = vadd.f32 %v1488, %v1720
        %v1722 = vpop.f32.mrf.mxu0
        %v1723 = vadd.f32 %v1490, %v1722
        %1724 = vmatmul.bf16.gmra.mxu0 %v1588
        %v1725 = vpop.f32.mrf.mxu0
        %v1726 = vadd.f32 %v1493, %v1725
        %v1727 = vpop.f32.mrf.mxu0
        %v1728 = vadd.f32 %v1495, %v1727
        %1729 = vmatmul.bf16.gmra.mxu0 %v1589
        %v1730 = vpop.f32.mrf.mxu0
        %v1731 = vadd.f32 %v1498, %v1730
        %v1732 = vpop.f32.mrf.mxu0
        %v1733 = vadd.f32 %v1500, %v1732
        %1734 = vmatmul.bf16.gmra.mxu0 %v1590
        %v1735 = vpop.f32.mrf.mxu0
        %v1736 = vadd.f32 %v1503, %v1735
        %v1737 = vpop.f32.mrf.mxu0
        %v1738 = vadd.f32 %v1505, %v1737
        %1739 = vmatmul.bf16.gmra.mxu0 %v1591
        %v1740 = vpop.f32.mrf.mxu0
        %v1741 = vadd.f32 %v1508, %v1740
        %v1742 = vpop.f32.mrf.mxu0
        %v1743 = vadd.f32 %v1510, %v1742
        %1744 = vdwg.mxu0
        %vm1761 = vcmask 1042432
        %vm1762 = vcmask 1046532
        %vm1763 = vmor %vm1761, %vm1762
        %v1764 = vrot.slane %v843, 5
        %v1765 = vrot.slane %v1764, 4
        %v1766 = vrot.slane %v844, 5
        %v1767 = vsel %vm1763, %v1765, %v1766
        %v1768 = vrot.slane %v1766, 4
        %v1769 = vrot.slane %v845, 5
        %v1770 = vsel %vm1763, %v1768, %v1769
        %v1771 = vrot.slane %v846, 5
        %v1772 = vrot.slane %v1771, 4
        %v1773 = vrot.slane %v847, 5
        %v1774 = vsel %vm1763, %v1772, %v1773
        %v1775 = vrot.slane %v1773, 4
        %v1776 = vrot.slane %v848, 5
        %v1777 = vsel %vm1763, %v1775, %v1776
        %v1778 = vrot.slane %v849, 5
        %v1779 = vrot.slane %v1778, 4
        %v1780 = vrot.slane %v850, 5
        %v1781 = vsel %vm1763, %v1779, %v1780
        %v1782 = vrot.slane %v1780, 4
        %v1783 = vrot.slane %v851, 5
        %v1784 = vsel %vm1763, %v1782, %v1783
        %v1785 = vrot.slane %v852, 5
        %v1786 = vrot.slane %v1785, 4
        %v1787 = vrot.slane %v853, 5
        %v1788 = vsel %vm1763, %v1786, %v1787
        %v1789 = vrot.slane %v1787, 4
        %v1790 = vrot.slane %v854, 5
        %v1791 = vsel %vm1763, %v1789, %v1790
        %v1792 = vrot.slane %v855, 5
        %v1793 = vrot.slane %v1792, 4
        %v1794 = vrot.slane %v856, 5
        %v1795 = vsel %vm1763, %v1793, %v1794
        %v1796 = vrot.slane %v1794, 4
        %v1797 = vrot.slane %v857, 5
        %v1798 = vsel %vm1763, %v1796, %v1797
        %v1799 = vrot.slane %v858, 5
        %v1800 = vrot.slane %v1799, 4
        %v1801 = vrot.slane %v859, 5
        %v1802 = vsel %vm1763, %v1800, %v1801
        %v1803 = vrot.slane %v1801, 4
        %v1804 = vrot.slane %v860, 5
        %v1805 = vsel %vm1763, %v1803, %v1804
        %v1806 = vrot.slane %v861, 5
        %v1807 = vrot.slane %v1806, 4
        %v1808 = vrot.slane %v862, 5
        %v1809 = vsel %vm1763, %v1807, %v1808
        %v1810 = vrot.slane %v1808, 4
        %v1811 = vrot.slane %v863, 5
        %v1812 = vsel %vm1763, %v1810, %v1811
        %v1813 = vrot.slane %v864, 5
        %v1814 = vrot.slane %v1813, 4
        %v1815 = vrot.slane %v865, 5
        %v1816 = vsel %vm1763, %v1814, %v1815
        %v1817 = vrot.slane %v1815, 4
        %v1818 = vrot.slane %v866, 5
        %v1819 = vsel %vm1763, %v1817, %v1818
        %v1820 = vrot.slane %v867, 5
        %v1821 = vrot.slane %v1820, 4
        %v1822 = vrot.slane %v868, 5
        %v1823 = vsel %vm1763, %v1821, %v1822
        %v1824 = vrot.slane %v1822, 4
        %v1825 = vrot.slane %v869, 5
        %v1826 = vsel %vm1763, %v1824, %v1825
        %v1827 = vrot.slane %v870, 5
        %v1828 = vrot.slane %v1827, 4
        %v1829 = vrot.slane %v871, 5
        %v1830 = vsel %vm1763, %v1828, %v1829
        %v1831 = vrot.slane %v1829, 4
        %v1832 = vrot.slane %v872, 5
        %v1833 = vsel %vm1763, %v1831, %v1832
        %v1834 = vrot.slane %v873, 5
        %v1835 = vrot.slane %v1834, 4
        %v1836 = vrot.slane %v874, 5
        %v1837 = vsel %vm1763, %v1835, %v1836
        %v1838 = vrot.slane %v1836, 4
        %v1839 = vrot.slane %v875, 5
        %v1840 = vsel %vm1763, %v1838, %v1839
        %v1841 = vrot.slane %v876, 5
        %v1842 = vrot.slane %v1841, 4
        %v1843 = vrot.slane %v877, 5
        %v1844 = vsel %vm1763, %v1842, %v1843
        %v1845 = vrot.slane %v1843, 4
        %v1846 = vrot.slane %v878, 5
        %v1847 = vsel %vm1763, %v1845, %v1846
        %v1848 = vrot.slane %v879, 5
        %v1849 = vrot.slane %v1848, 4
        %v1850 = vrot.slane %v880, 5
        %v1851 = vsel %vm1763, %v1849, %v1850
        %v1852 = vrot.slane %v1850, 4
        %v1853 = vrot.slane %v881, 5
        %v1854 = vsel %vm1763, %v1852, %v1853
        %v1855 = vrot.slane %v882, 5
        %v1856 = vrot.slane %v1855, 4
        %v1857 = vrot.slane %v883, 5
        %v1858 = vsel %vm1763, %v1856, %v1857
        %v1859 = vrot.slane %v1857, 4
        %v1860 = vrot.slane %v884, 5
        %v1861 = vsel %vm1763, %v1859, %v1860
        %v1862 = vrot.slane %v885, 5
        %v1863 = vrot.slane %v1862, 4
        %v1864 = vrot.slane %v886, 5
        %v1865 = vsel %vm1763, %v1863, %v1864
        %v1866 = vrot.slane %v1864, 4
        %v1867 = vrot.slane %v887, 5
        %v1868 = vsel %vm1763, %v1866, %v1867
        %v1869 = vrot.slane %v888, 5
        %v1870 = vrot.slane %v1869, 4
        %v1871 = vrot.slane %v889, 5
        %v1872 = vsel %vm1763, %v1870, %v1871
        %v1873 = vrot.slane %v1871, 4
        %v1874 = vrot.slane %v890, 5
        %v1875 = vsel %vm1763, %v1873, %v1874
        %s1876 = scalar_lea.vmem [#allocation6], 128
        %v1877 = vld [vmem:[%s1876] sm:$0xf]
        %v1878 = vld [vmem:[%s1876 + $0x4] sm:$0xf]
        %v1879 = vld [vmem:[%s1876 + $0x8] sm:$0xf]
        %v1880 = vld [vmem:[%s1876 + $0xc] sm:$0xf]
        %v1881 = vld [vmem:[%s1876 + $0x10] sm:$0xf]
        %v1882 = vld [vmem:[%s1876 + $0x14] sm:$0xf]
        %v1883 = vld [vmem:[%s1876 + $0x18] sm:$0xf]
        %v1884 = vld [vmem:[%s1876 + $0x1c] sm:$0xf]
        %v1885 = vld [vmem:[%s1876 + $0x20] sm:$0xf]
        %v1886 = vld [vmem:[%s1876 + $0x24] sm:$0xf]
        %v1887 = vld [vmem:[%s1876 + $0x28] sm:$0xf]
        %v1888 = vld [vmem:[%s1876 + $0x2c] sm:$0xf]
        %v1889 = vld [vmem:[%s1876 + $0x30] sm:$0xf]
        %v1890 = vld [vmem:[%s1876 + $0x34] sm:$0xf]
        %v1891 = vld [vmem:[%s1876 + $0x38] sm:$0xf]
        %v1892 = vld [vmem:[%s1876 + $0x3c] sm:$0xf]
        %v1893 = vunpack.c.l.b16 %v1767
        %v1894 = vunpack.c.l.b16 %v1770
        %v1895 = vunpack.c.l.b16 %v1774
        %v1896 = vunpack.c.l.b16 %v1777
        %v1897 = vunpack.c.l.b16 %v1781
        %v1898 = vunpack.c.l.b16 %v1784
        %v1899 = vunpack.c.l.b16 %v1788
        %v1900 = vunpack.c.l.b16 %v1791
        %v1901 = vunpack.c.l.b16 %v1795
        %v1902 = vunpack.c.l.b16 %v1798
        %v1903 = vunpack.c.l.b16 %v1802
        %v1904 = vunpack.c.l.b16 %v1805
        %v1905 = vunpack.c.l.b16 %v1809
        %v1906 = vunpack.c.l.b16 %v1812
        %v1907 = vunpack.c.l.b16 %v1816
        %v1908 = vunpack.c.l.b16 %v1819
        %v1909 = vunpack.c.l.b16 %v1823
        %v1910 = vunpack.c.l.b16 %v1826
        %v1911 = vunpack.c.l.b16 %v1830
        %v1912 = vunpack.c.l.b16 %v1833
        %v1913 = vunpack.c.l.b16 %v1837
        %v1914 = vunpack.c.l.b16 %v1840
        %v1915 = vunpack.c.l.b16 %v1844
        %v1916 = vunpack.c.l.b16 %v1847
        %v1917 = vunpack.c.l.b16 %v1851
        %v1918 = vunpack.c.l.b16 %v1854
        %v1919 = vunpack.c.l.b16 %v1858
        %v1920 = vunpack.c.l.b16 %v1861
        %v1921 = vunpack.c.l.b16 %v1865
        %v1922 = vunpack.c.l.b16 %v1868
        %v1923 = vunpack.c.l.b16 %v1872
        %v1924 = vunpack.c.l.b16 %v1875
        %v1925 = vpack.c.b16 %v1894, %v1893
        %v1926 = vpack.c.b16 %v1896, %v1895
        %v1927 = vpack.c.b16 %v1898, %v1897
        %v1928 = vpack.c.b16 %v1900, %v1899
        %v1929 = vpack.c.b16 %v1902, %v1901
        %v1930 = vpack.c.b16 %v1904, %v1903
        %v1931 = vpack.c.b16 %v1906, %v1905
        %v1932 = vpack.c.b16 %v1908, %v1907
        %v1933 = vpack.c.b16 %v1910, %v1909
        %v1934 = vpack.c.b16 %v1912, %v1911
        %v1935 = vpack.c.b16 %v1914, %v1913
        %v1936 = vpack.c.b16 %v1916, %v1915
        %v1937 = vpack.c.b16 %v1918, %v1917
        %v1938 = vpack.c.b16 %v1920, %v1919
        %v1939 = vpack.c.b16 %v1922, %v1921
        %v1940 = vpack.c.b16 %v1924, %v1923
        %v1973 = vunpack.c.l.b16 %v1877
        %v1974 = vunpack.c.l.b16 %v1878
        %v1975 = vunpack.c.l.b16 %v1879
        %v1976 = vunpack.c.l.b16 %v1880
        %v1977 = vunpack.c.l.b16 %v1881
        %v1978 = vunpack.c.l.b16 %v1882
        %v1979 = vunpack.c.l.b16 %v1883
        %v1980 = vunpack.c.l.b16 %v1884
        %v1981 = vunpack.c.l.b16 %v1885
        %v1982 = vunpack.c.l.b16 %v1886
        %v1983 = vunpack.c.l.b16 %v1887
        %v1984 = vunpack.c.l.b16 %v1888
        %v1985 = vunpack.c.l.b16 %v1889
        %v1986 = vunpack.c.l.b16 %v1890
        %v1987 = vunpack.c.l.b16 %v1891
        %v1988 = vunpack.c.l.b16 %v1892
        %v1989 = vpack.c.b16 %v1974, %v1973
        %v1990 = vpack.c.b16 %v1976, %v1975
        %v1991 = vpack.c.b16 %v1978, %v1977
        %v1992 = vpack.c.b16 %v1980, %v1979
        %v1993 = vpack.c.b16 %v1982, %v1981
        %v1994 = vpack.c.b16 %v1984, %v1983
        %v1995 = vpack.c.b16 %v1986, %v1985
        %v1996 = vpack.c.b16 %v1988, %v1987
        %2005 = vmatpush.bf16.msra.mxu0 %v1996
        %2006 = vmatpush.bf16.msra.mxu0 %v1995
        %2007 = vmatpush.bf16.msra.mxu0 %v1994
        %2008 = vmatpush.bf16.msra.mxu0 %v1993
        %2009 = vmatpush.bf16.msra.mxu0 %v1992
        %2010 = vmatpush.bf16.msra.mxu0 %v1991
        %2011 = vmatpush.bf16.msra.mxu0 %v1990
        %2012 = vmatpush.bf16.msra.mxu0 %v1989
        %2013 = vmatmul.bf16.gmra.mxu0 %v1925
        %v2014 = vpop.f32.mrf.mxu0
        %v2015 = vadd.f32 0.0, %v2014
        %v2016 = vpop.f32.mrf.mxu0
        %v2017 = vadd.f32 0.0, %v2016
        %2018 = vmatmul.bf16.gmra.mxu0 %v1926
        %v2019 = vpop.f32.mrf.mxu0
        %v2020 = vadd.f32 0.0, %v2019
        %v2021 = vpop.f32.mrf.mxu0
        %v2022 = vadd.f32 0.0, %v2021
        %2023 = vmatmul.bf16.gmra.mxu0 %v1927
        %v2024 = vpop.f32.mrf.mxu0
        %v2025 = vadd.f32 0.0, %v2024
        %v2026 = vpop.f32.mrf.mxu0
        %v2027 = vadd.f32 0.0, %v2026
        %2028 = vmatmul.bf16.gmra.mxu0 %v1928
        %v2029 = vpop.f32.mrf.mxu0
        %v2030 = vadd.f32 0.0, %v2029
        %v2031 = vpop.f32.mrf.mxu0
        %v2032 = vadd.f32 0.0, %v2031
        %2033 = vmatmul.bf16.gmra.mxu0 %v1929
        %v2034 = vpop.f32.mrf.mxu0
        %v2035 = vadd.f32 0.0, %v2034
        %v2036 = vpop.f32.mrf.mxu0
        %v2037 = vadd.f32 0.0, %v2036
        %2038 = vmatmul.bf16.gmra.mxu0 %v1930
        %v2039 = vpop.f32.mrf.mxu0
        %v2040 = vadd.f32 0.0, %v2039
        %v2041 = vpop.f32.mrf.mxu0
        %v2042 = vadd.f32 0.0, %v2041
        %2043 = vmatmul.bf16.gmra.mxu0 %v1931
        %v2044 = vpop.f32.mrf.mxu0
        %v2045 = vadd.f32 0.0, %v2044
        %v2046 = vpop.f32.mrf.mxu0
        %v2047 = vadd.f32 0.0, %v2046
        %2048 = vmatmul.bf16.gmra.mxu0 %v1932
        %v2049 = vpop.f32.mrf.mxu0
        %v2050 = vadd.f32 0.0, %v2049
        %v2051 = vpop.f32.mrf.mxu0
        %v2052 = vadd.f32 0.0, %v2051
        %2053 = vmatmul.bf16.gmra.mxu0 %v1933
        %v2054 = vpop.f32.mrf.mxu0
        %v2055 = vadd.f32 0.0, %v2054
        %v2056 = vpop.f32.mrf.mxu0
        %v2057 = vadd.f32 0.0, %v2056
        %2058 = vmatmul.bf16.gmra.mxu0 %v1934
        %v2059 = vpop.f32.mrf.mxu0
        %v2060 = vadd.f32 0.0, %v2059
        %v2061 = vpop.f32.mrf.mxu0
        %v2062 = vadd.f32 0.0, %v2061
        %2063 = vmatmul.bf16.gmra.mxu0 %v1935
        %v2064 = vpop.f32.mrf.mxu0
        %v2065 = vadd.f32 0.0, %v2064
        %v2066 = vpop.f32.mrf.mxu0
        %v2067 = vadd.f32 0.0, %v2066
        %2068 = vmatmul.bf16.gmra.mxu0 %v1936
        %v2069 = vpop.f32.mrf.mxu0
        %v2070 = vadd.f32 0.0, %v2069
        %v2071 = vpop.f32.mrf.mxu0
        %v2072 = vadd.f32 0.0, %v2071
        %2073 = vmatmul.bf16.gmra.mxu0 %v1937
        %v2074 = vpop.f32.mrf.mxu0
        %v2075 = vadd.f32 0.0, %v2074
        %v2076 = vpop.f32.mrf.mxu0
        %v2077 = vadd.f32 0.0, %v2076
        %2078 = vmatmul.bf16.gmra.mxu0 %v1938
        %v2079 = vpop.f32.mrf.mxu0
        %v2080 = vadd.f32 0.0, %v2079
        %v2081 = vpop.f32.mrf.mxu0
        %v2082 = vadd.f32 0.0, %v2081
        %2083 = vmatmul.bf16.gmra.mxu0 %v1939
        %v2084 = vpop.f32.mrf.mxu0
        %v2085 = vadd.f32 0.0, %v2084
        %v2086 = vpop.f32.mrf.mxu0
        %v2087 = vadd.f32 0.0, %v2086
        %2088 = vmatmul.bf16.gmra.mxu0 %v1940
        %v2089 = vpop.f32.mrf.mxu0
        %v2090 = vadd.f32 0.0, %v2089
        %v2091 = vpop.f32.mrf.mxu0
        %v2092 = vadd.f32 0.0, %v2091
        %2093 = vdwg.mxu0
        %v2094 = vadd.f32 %v1666, %v2015
        %v2095 = vadd.f32 %v1668, %v2017
        %v2096 = vadd.f32 %v1671, %v2020
        %v2097 = vadd.f32 %v1673, %v2022
        %v2098 = vadd.f32 %v1676, %v2025
        %v2099 = vadd.f32 %v1678, %v2027
        %v2100 = vadd.f32 %v1681, %v2030
        %v2101 = vadd.f32 %v1683, %v2032
        %v2102 = vadd.f32 %v1686, %v2035
        %v2103 = vadd.f32 %v1688, %v2037
        %v2104 = vadd.f32 %v1691, %v2040
        %v2105 = vadd.f32 %v1693, %v2042
        %v2106 = vadd.f32 %v1696, %v2045
        %v2107 = vadd.f32 %v1698, %v2047
        %v2108 = vadd.f32 %v1701, %v2050
        %v2109 = vadd.f32 %v1703, %v2052
        %v2110 = vadd.f32 %v1706, %v2055
        %v2111 = vadd.f32 %v1708, %v2057
        %v2112 = vadd.f32 %v1711, %v2060
        %v2113 = vadd.f32 %v1713, %v2062
        %v2114 = vadd.f32 %v1716, %v2065
        %v2115 = vadd.f32 %v1718, %v2067
        %v2116 = vadd.f32 %v1721, %v2070
        %v2117 = vadd.f32 %v1723, %v2072
        %v2118 = vadd.f32 %v1726, %v2075
        %v2119 = vadd.f32 %v1728, %v2077
        %v2120 = vadd.f32 %v1731, %v2080
        %v2121 = vadd.f32 %v1733, %v2082
        %v2122 = vadd.f32 %v1736, %v2085
        %v2123 = vadd.f32 %v1738, %v2087
        %v2124 = vadd.f32 %v1741, %v2090
        %v2125 = vadd.f32 %v1743, %v2092
        %v2126 = vld [vmem:[%s728] sm:$0xf]
        %v2127 = vld [vmem:[%s728 + $0x4] sm:$0xf]
        %v2128 = vld [vmem:[%s728 + $0x8] sm:$0xf]
        %v2129 = vld [vmem:[%s728 + $0x10] sm:$0xf]
        %v2130 = vld [vmem:[%s728 + $0x14] sm:$0xf]
        %v2131 = vld [vmem:[%s728 + $0x18] sm:$0xf]
        %v2132 = vld [vmem:[%s728 + $0x20] sm:$0xf]
        %v2133 = vld [vmem:[%s728 + $0x24] sm:$0xf]
        %v2134 = vld [vmem:[%s728 + $0x28] sm:$0xf]
        %v2135 = vld [vmem:[%s728 + $0x30] sm:$0xf]
        %v2136 = vld [vmem:[%s728 + $0x34] sm:$0xf]
        %v2137 = vld [vmem:[%s728 + $0x38] sm:$0xf]
        %v2138 = vld [vmem:[%s728 + $0x40] sm:$0xf]
        %v2139 = vld [vmem:[%s728 + $0x44] sm:$0xf]
        %v2140 = vld [vmem:[%s728 + $0x48] sm:$0xf]
        %v2141 = vld [vmem:[%s728 + $0x50] sm:$0xf]
        %v2142 = vld [vmem:[%s728 + $0x54] sm:$0xf]
        %v2143 = vld [vmem:[%s728 + $0x58] sm:$0xf]
        %v2144 = vld [vmem:[%s728 + $0x60] sm:$0xf]
        %v2145 = vld [vmem:[%s728 + $0x64] sm:$0xf]
        %v2146 = vld [vmem:[%s728 + $0x68] sm:$0xf]
        %v2147 = vld [vmem:[%s728 + $0x70] sm:$0xf]
        %v2148 = vld [vmem:[%s728 + $0x74] sm:$0xf]
        %v2149 = vld [vmem:[%s728 + $0x78] sm:$0xf]
        %v2150 = vld [vmem:[%s728 + $0x80] sm:$0xf]
        %v2151 = vld [vmem:[%s728 + $0x84] sm:$0xf]
        %v2152 = vld [vmem:[%s728 + $0x88] sm:$0xf]
        %v2153 = vld [vmem:[%s728 + $0x90] sm:$0xf]
        %v2154 = vld [vmem:[%s728 + $0x94] sm:$0xf]
        %v2155 = vld [vmem:[%s728 + $0x98] sm:$0xf]
        %v2156 = vld [vmem:[%s728 + $0xa0] sm:$0xf]
        %v2157 = vld [vmem:[%s728 + $0xa4] sm:$0xf]
        %v2158 = vld [vmem:[%s728 + $0xa8] sm:$0xf]
        %v2159 = vld [vmem:[%s728 + $0xb0] sm:$0xf]
        %v2160 = vld [vmem:[%s728 + $0xb4] sm:$0xf]
        %v2161 = vld [vmem:[%s728 + $0xb8] sm:$0xf]
        %v2162 = vld [vmem:[%s728 + $0xc0] sm:$0xf]
        %v2163 = vld [vmem:[%s728 + $0xc4] sm:$0xf]
        %v2164 = vld [vmem:[%s728 + $0xc8] sm:$0xf]
        %v2165 = vld [vmem:[%s728 + $0xd0] sm:$0xf]
        %v2166 = vld [vmem:[%s728 + $0xd4] sm:$0xf]
        %v2167 = vld [vmem:[%s728 + $0xd8] sm:$0xf]
        %v2168 = vld [vmem:[%s728 + $0xe0] sm:$0xf]
        %v2169 = vld [vmem:[%s728 + $0xe4] sm:$0xf]
        %v2170 = vld [vmem:[%s728 + $0xe8] sm:$0xf]
        %v2171 = vld [vmem:[%s728 + $0xf0] sm:$0xf]
        %v2172 = vld [vmem:[%s728 + $0xf4] sm:$0xf]
        %v2173 = vld [vmem:[%s728 + $0xf8] sm:$0xf]
        %s2174 = scalar_lea.vmem [#allocation6], 192
        %v2175 = vld [vmem:[%s2174] sm:$0xf]
        %v2176 = vld [vmem:[%s2174 + $0x4] sm:$0xf]
        %v2177 = vld [vmem:[%s2174 + $0x8] sm:$0xf]
        %v2178 = vld [vmem:[%s2174 + $0xc] sm:$0xf]
        %v2179 = vld [vmem:[%s2174 + $0x10] sm:$0xf]
        %v2180 = vld [vmem:[%s2174 + $0x14] sm:$0xf]
        %v2181 = vld [vmem:[%s2174 + $0x18] sm:$0xf]
        %v2182 = vld [vmem:[%s2174 + $0x1c] sm:$0xf]
        %v2183 = vld [vmem:[%s2174 + $0x20] sm:$0xf]
        %v2184 = vld [vmem:[%s2174 + $0x24] sm:$0xf]
        %v2185 = vld [vmem:[%s2174 + $0x28] sm:$0xf]
        %v2186 = vld [vmem:[%s2174 + $0x2c] sm:$0xf]
        %v2187 = vld [vmem:[%s2174 + $0x30] sm:$0xf]
        %v2188 = vld [vmem:[%s2174 + $0x34] sm:$0xf]
        %v2189 = vld [vmem:[%s2174 + $0x38] sm:$0xf]
        %v2190 = vld [vmem:[%s2174 + $0x3c] sm:$0xf]
        %v2223 = vunpack.c.l.b16 %v2126
        %v2224 = vunpack.c.l.b16 %v2127
        %v2225 = vunpack.c.l.b16 %v2129
        %v2226 = vunpack.c.l.b16 %v2130
        %v2227 = vunpack.c.l.b16 %v2132
        %v2228 = vunpack.c.l.b16 %v2133
        %v2229 = vunpack.c.l.b16 %v2135
        %v2230 = vunpack.c.l.b16 %v2136
        %v2231 = vunpack.c.l.b16 %v2138
        %v2232 = vunpack.c.l.b16 %v2139
        %v2233 = vunpack.c.l.b16 %v2141
        %v2234 = vunpack.c.l.b16 %v2142
        %v2235 = vunpack.c.l.b16 %v2144
        %v2236 = vunpack.c.l.b16 %v2145
        %v2237 = vunpack.c.l.b16 %v2147
        %v2238 = vunpack.c.l.b16 %v2148
        %v2239 = vunpack.c.l.b16 %v2150
        %v2240 = vunpack.c.l.b16 %v2151
        %v2241 = vunpack.c.l.b16 %v2153
        %v2242 = vunpack.c.l.b16 %v2154
        %v2243 = vunpack.c.l.b16 %v2156
        %v2244 = vunpack.c.l.b16 %v2157
        %v2245 = vunpack.c.l.b16 %v2159
        %v2246 = vunpack.c.l.b16 %v2160
        %v2247 = vunpack.c.l.b16 %v2162
        %v2248 = vunpack.c.l.b16 %v2163
        %v2249 = vunpack.c.l.b16 %v2165
        %v2250 = vunpack.c.l.b16 %v2166
        %v2251 = vunpack.c.l.b16 %v2168
        %v2252 = vunpack.c.l.b16 %v2169
        %v2253 = vunpack.c.l.b16 %v2171
        %v2254 = vunpack.c.l.b16 %v2172
        %v2255 = vpack.c.b16 %v2224, %v2223
        %v2256 = vpack.c.b16 %v2226, %v2225
        %v2257 = vpack.c.b16 %v2228, %v2227
        %v2258 = vpack.c.b16 %v2230, %v2229
        %v2259 = vpack.c.b16 %v2232, %v2231
        %v2260 = vpack.c.b16 %v2234, %v2233
        %v2261 = vpack.c.b16 %v2236, %v2235
        %v2262 = vpack.c.b16 %v2238, %v2237
        %v2263 = vpack.c.b16 %v2240, %v2239
        %v2264 = vpack.c.b16 %v2242, %v2241
        %v2265 = vpack.c.b16 %v2244, %v2243
        %v2266 = vpack.c.b16 %v2246, %v2245
        %v2267 = vpack.c.b16 %v2248, %v2247
        %v2268 = vpack.c.b16 %v2250, %v2249
        %v2269 = vpack.c.b16 %v2252, %v2251
        %v2270 = vpack.c.b16 %v2254, %v2253
        %v2303 = vunpack.c.l.b16 %v2175
        %v2304 = vunpack.c.l.b16 %v2176
        %v2305 = vunpack.c.l.b16 %v2177
        %v2306 = vunpack.c.l.b16 %v2178
        %v2307 = vunpack.c.l.b16 %v2179
        %v2308 = vunpack.c.l.b16 %v2180
        %v2309 = vunpack.c.l.b16 %v2181
        %v2310 = vunpack.c.l.b16 %v2182
        %v2311 = vunpack.c.l.b16 %v2183
        %v2312 = vunpack.c.l.b16 %v2184
        %v2313 = vunpack.c.l.b16 %v2185
        %v2314 = vunpack.c.l.b16 %v2186
        %v2315 = vunpack.c.l.b16 %v2187
        %v2316 = vunpack.c.l.b16 %v2188
        %v2317 = vunpack.c.l.b16 %v2189
        %v2318 = vunpack.c.l.b16 %v2190
        %v2319 = vpack.c.b16 %v2304, %v2303
        %v2320 = vpack.c.b16 %v2306, %v2305
        %v2321 = vpack.c.b16 %v2308, %v2307
        %v2322 = vpack.c.b16 %v2310, %v2309
        %v2323 = vpack.c.b16 %v2312, %v2311
        %v2324 = vpack.c.b16 %v2314, %v2313
        %v2325 = vpack.c.b16 %v2316, %v2315
        %v2326 = vpack.c.b16 %v2318, %v2317
        %2335 = vmatpush.bf16.msra.mxu0 %v2326
        %2336 = vmatpush.bf16.msra.mxu0 %v2325
        %2337 = vmatpush.bf16.msra.mxu0 %v2324
        %2338 = vmatpush.bf16.msra.mxu0 %v2323
        %2339 = vmatpush.bf16.msra.mxu0 %v2322
        %2340 = vmatpush.bf16.msra.mxu0 %v2321
        %2341 = vmatpush.bf16.msra.mxu0 %v2320
        %2342 = vmatpush.bf16.msra.mxu0 %v2319
        %2343 = vmatmul.bf16.gmra.mxu0 %v2255
        %v2344 = vpop.f32.mrf.mxu0
        %v2345 = vadd.f32 0.0, %v2344
        %v2346 = vpop.f32.mrf.mxu0
        %v2347 = vadd.f32 0.0, %v2346
        %2348 = vmatmul.bf16.gmra.mxu0 %v2256
        %v2349 = vpop.f32.mrf.mxu0
        %v2350 = vadd.f32 0.0, %v2349
        %v2351 = vpop.f32.mrf.mxu0
        %v2352 = vadd.f32 0.0, %v2351
        %2353 = vmatmul.bf16.gmra.mxu0 %v2257
        %v2354 = vpop.f32.mrf.mxu0
        %v2355 = vadd.f32 0.0, %v2354
        %v2356 = vpop.f32.mrf.mxu0
        %v2357 = vadd.f32 0.0, %v2356
        %2358 = vmatmul.bf16.gmra.mxu0 %v2258
        %v2359 = vpop.f32.mrf.mxu0
        %v2360 = vadd.f32 0.0, %v2359
        %v2361 = vpop.f32.mrf.mxu0
        %v2362 = vadd.f32 0.0, %v2361
        %2363 = vmatmul.bf16.gmra.mxu0 %v2259
        %v2364 = vpop.f32.mrf.mxu0
        %v2365 = vadd.f32 0.0, %v2364
        %v2366 = vpop.f32.mrf.mxu0
        %v2367 = vadd.f32 0.0, %v2366
        %2368 = vmatmul.bf16.gmra.mxu0 %v2260
        %v2369 = vpop.f32.mrf.mxu0
        %v2370 = vadd.f32 0.0, %v2369
        %v2371 = vpop.f32.mrf.mxu0
        %v2372 = vadd.f32 0.0, %v2371
        %2373 = vmatmul.bf16.gmra.mxu0 %v2261
        %v2374 = vpop.f32.mrf.mxu0
        %v2375 = vadd.f32 0.0, %v2374
        %v2376 = vpop.f32.mrf.mxu0
        %v2377 = vadd.f32 0.0, %v2376
        %2378 = vmatmul.bf16.gmra.mxu0 %v2262
        %v2379 = vpop.f32.mrf.mxu0
        %v2380 = vadd.f32 0.0, %v2379
        %v2381 = vpop.f32.mrf.mxu0
        %v2382 = vadd.f32 0.0, %v2381
        %2383 = vmatmul.bf16.gmra.mxu0 %v2263
        %v2384 = vpop.f32.mrf.mxu0
        %v2385 = vadd.f32 0.0, %v2384
        %v2386 = vpop.f32.mrf.mxu0
        %v2387 = vadd.f32 0.0, %v2386
        %2388 = vmatmul.bf16.gmra.mxu0 %v2264
        %v2389 = vpop.f32.mrf.mxu0
        %v2390 = vadd.f32 0.0, %v2389
        %v2391 = vpop.f32.mrf.mxu0
        %v2392 = vadd.f32 0.0, %v2391
        %2393 = vmatmul.bf16.gmra.mxu0 %v2265
        %v2394 = vpop.f32.mrf.mxu0
        %v2395 = vadd.f32 0.0, %v2394
        %v2396 = vpop.f32.mrf.mxu0
        %v2397 = vadd.f32 0.0, %v2396
        %2398 = vmatmul.bf16.gmra.mxu0 %v2266
        %v2399 = vpop.f32.mrf.mxu0
        %v2400 = vadd.f32 0.0, %v2399
        %v2401 = vpop.f32.mrf.mxu0
        %v2402 = vadd.f32 0.0, %v2401
        %2403 = vmatmul.bf16.gmra.mxu0 %v2267
        %v2404 = vpop.f32.mrf.mxu0
        %v2405 = vadd.f32 0.0, %v2404
        %v2406 = vpop.f32.mrf.mxu0
        %v2407 = vadd.f32 0.0, %v2406
        %2408 = vmatmul.bf16.gmra.mxu0 %v2268
        %v2409 = vpop.f32.mrf.mxu0
        %v2410 = vadd.f32 0.0, %v2409
        %v2411 = vpop.f32.mrf.mxu0
        %v2412 = vadd.f32 0.0, %v2411
        %2413 = vmatmul.bf16.gmra.mxu0 %v2269
        %v2414 = vpop.f32.mrf.mxu0
        %v2415 = vadd.f32 0.0, %v2414
        %v2416 = vpop.f32.mrf.mxu0
        %v2417 = vadd.f32 0.0, %v2416
        %2418 = vmatmul.bf16.gmra.mxu0 %v2270
        %v2419 = vpop.f32.mrf.mxu0
        %v2420 = vadd.f32 0.0, %v2419
        %v2421 = vpop.f32.mrf.mxu0
        %v2422 = vadd.f32 0.0, %v2421
        %2423 = vdwg.mxu0
        %v2424 = vadd.f32 %v2094, %v2345
        %v2425 = vadd.f32 %v2095, %v2347
        %v2426 = vadd.f32 %v2096, %v2350
        %v2427 = vadd.f32 %v2097, %v2352
        %v2428 = vadd.f32 %v2098, %v2355
        %v2429 = vadd.f32 %v2099, %v2357
        %v2430 = vadd.f32 %v2100, %v2360
        %v2431 = vadd.f32 %v2101, %v2362
        %v2432 = vadd.f32 %v2102, %v2365
        %v2433 = vadd.f32 %v2103, %v2367
        %v2434 = vadd.f32 %v2104, %v2370
        %v2435 = vadd.f32 %v2105, %v2372
        %v2436 = vadd.f32 %v2106, %v2375
        %v2437 = vadd.f32 %v2107, %v2377
        %v2438 = vadd.f32 %v2108, %v2380
        %v2439 = vadd.f32 %v2109, %v2382
        %v2440 = vadd.f32 %v2110, %v2385
        %v2441 = vadd.f32 %v2111, %v2387
        %v2442 = vadd.f32 %v2112, %v2390
        %v2443 = vadd.f32 %v2113, %v2392
        %v2444 = vadd.f32 %v2114, %v2395
        %v2445 = vadd.f32 %v2115, %v2397
        %v2446 = vadd.f32 %v2116, %v2400
        %v2447 = vadd.f32 %v2117, %v2402
        %v2448 = vadd.f32 %v2118, %v2405
        %v2449 = vadd.f32 %v2119, %v2407
        %v2450 = vadd.f32 %v2120, %v2410
        %v2451 = vadd.f32 %v2121, %v2412
        %v2452 = vadd.f32 %v2122, %v2415
        %v2453 = vadd.f32 %v2123, %v2417
        %v2454 = vadd.f32 %v2124, %v2420
        %v2455 = vadd.f32 %v2125, %v2422
        %v2457 = vshrl.u32 %v2126, 16
        %v2459 = vrot.slane %v2457, 4
        %v2460 = vshll.u32 %v2126, 16
        %v2462 = vrot.slane %v2460, 5
        %v2463 = vor.u32 %v2459, %v2462
        %v2464 = vrot.slane %v2463, 4
        %v2466 = vshll.u32 %v2127, 16
        %v2468 = vrot.slane %v2466, 5
        %v2469 = vsel %vm909, %v2464, %v2468
        %v2470 = vshrl.u32 %v2127, 16
        %v2472 = vrot.slane %v2470, 4
        %v2473 = vor.u32 %v2472, %v2468
        %v2474 = vrot.slane %v2473, 4
        %v2476 = vshll.u32 %v2128, 16
        %v2478 = vrot.slane %v2476, 5
        %v2479 = vsel %vm909, %v2474, %v2478
        %v2481 = vshrl.u32 %v2129, 16
        %v2483 = vrot.slane %v2481, 4
        %v2484 = vshll.u32 %v2129, 16
        %v2486 = vrot.slane %v2484, 5
        %v2487 = vor.u32 %v2483, %v2486
        %v2488 = vrot.slane %v2487, 4
        %v2490 = vshll.u32 %v2130, 16
        %v2492 = vrot.slane %v2490, 5
        %v2493 = vsel %vm909, %v2488, %v2492
        %v2494 = vshrl.u32 %v2130, 16
        %v2496 = vrot.slane %v2494, 4
        %v2497 = vor.u32 %v2496, %v2492
        %v2498 = vrot.slane %v2497, 4
        %v2500 = vshll.u32 %v2131, 16
        %v2502 = vrot.slane %v2500, 5
        %v2503 = vsel %vm909, %v2498, %v2502
        %v2505 = vshrl.u32 %v2132, 16
        %v2507 = vrot.slane %v2505, 4
        %v2508 = vshll.u32 %v2132, 16
        %v2510 = vrot.slane %v2508, 5
        %v2511 = vor.u32 %v2507, %v2510
        %v2512 = vrot.slane %v2511, 4
        %v2514 = vshll.u32 %v2133, 16
        %v2516 = vrot.slane %v2514, 5
        %v2517 = vsel %vm909, %v2512, %v2516
        %v2518 = vshrl.u32 %v2133, 16
        %v2520 = vrot.slane %v2518, 4
        %v2521 = vor.u32 %v2520, %v2516
        %v2522 = vrot.slane %v2521, 4
        %v2524 = vshll.u32 %v2134, 16
        %v2526 = vrot.slane %v2524, 5
        %v2527 = vsel %vm909, %v2522, %v2526
        %v2529 = vshrl.u32 %v2135, 16
        %v2531 = vrot.slane %v2529, 4
        %v2532 = vshll.u32 %v2135, 16
        %v2534 = vrot.slane %v2532, 5
        %v2535 = vor.u32 %v2531, %v2534
        %v2536 = vrot.slane %v2535, 4
        %v2538 = vshll.u32 %v2136, 16
        %v2540 = vrot.slane %v2538, 5
        %v2541 = vsel %vm909, %v2536, %v2540
        %v2542 = vshrl.u32 %v2136, 16
        %v2544 = vrot.slane %v2542, 4
        %v2545 = vor.u32 %v2544, %v2540
        %v2546 = vrot.slane %v2545, 4
        %v2548 = vshll.u32 %v2137, 16
        %v2550 = vrot.slane %v2548, 5
        %v2551 = vsel %vm909, %v2546, %v2550
        %v2553 = vshrl.u32 %v2138, 16
        %v2555 = vrot.slane %v2553, 4
        %v2556 = vshll.u32 %v2138, 16
        %v2558 = vrot.slane %v2556, 5
        %v2559 = vor.u32 %v2555, %v2558
        %v2560 = vrot.slane %v2559, 4
        %v2562 = vshll.u32 %v2139, 16
        %v2564 = vrot.slane %v2562, 5
        %v2565 = vsel %vm909, %v2560, %v2564
        %v2566 = vshrl.u32 %v2139, 16
        %v2568 = vrot.slane %v2566, 4
        %v2569 = vor.u32 %v2568, %v2564
        %v2570 = vrot.slane %v2569, 4
        %v2572 = vshll.u32 %v2140, 16
        %v2574 = vrot.slane %v2572, 5
        %v2575 = vsel %vm909, %v2570, %v2574
        %v2577 = vshrl.u32 %v2141, 16
        %v2579 = vrot.slane %v2577, 4
        %v2580 = vshll.u32 %v2141, 16
        %v2582 = vrot.slane %v2580, 5
        %v2583 = vor.u32 %v2579, %v2582
        %v2584 = vrot.slane %v2583, 4
        %v2586 = vshll.u32 %v2142, 16
        %v2588 = vrot.slane %v2586, 5
        %v2589 = vsel %vm909, %v2584, %v2588
        %v2590 = vshrl.u32 %v2142, 16
        %v2592 = vrot.slane %v2590, 4
        %v2593 = vor.u32 %v2592, %v2588
        %v2594 = vrot.slane %v2593, 4
        %v2596 = vshll.u32 %v2143, 16
        %v2598 = vrot.slane %v2596, 5
        %v2599 = vsel %vm909, %v2594, %v2598
        %v2601 = vshrl.u32 %v2144, 16
        %v2603 = vrot.slane %v2601, 4
        %v2604 = vshll.u32 %v2144, 16
        %v2606 = vrot.slane %v2604, 5
        %v2607 = vor.u32 %v2603, %v2606
        %v2608 = vrot.slane %v2607, 4
        %v2610 = vshll.u32 %v2145, 16
        %v2612 = vrot.slane %v2610, 5
        %v2613 = vsel %vm909, %v2608, %v2612
        %v2614 = vshrl.u32 %v2145, 16
        %v2616 = vrot.slane %v2614, 4
        %v2617 = vor.u32 %v2616, %v2612
        %v2618 = vrot.slane %v2617, 4
        %v2620 = vshll.u32 %v2146, 16
        %v2622 = vrot.slane %v2620, 5
        %v2623 = vsel %vm909, %v2618, %v2622
        %v2625 = vshrl.u32 %v2147, 16
        %v2627 = vrot.slane %v2625, 4
        %v2628 = vshll.u32 %v2147, 16
        %v2630 = vrot.slane %v2628, 5
        %v2631 = vor.u32 %v2627, %v2630
        %v2632 = vrot.slane %v2631, 4
        %v2634 = vshll.u32 %v2148, 16
        %v2636 = vrot.slane %v2634, 5
        %v2637 = vsel %vm909, %v2632, %v2636
        %v2638 = vshrl.u32 %v2148, 16
        %v2640 = vrot.slane %v2638, 4
        %v2641 = vor.u32 %v2640, %v2636
        %v2642 = vrot.slane %v2641, 4
        %v2644 = vshll.u32 %v2149, 16
        %v2646 = vrot.slane %v2644, 5
        %v2647 = vsel %vm909, %v2642, %v2646
        %v2649 = vshrl.u32 %v2150, 16
        %v2651 = vrot.slane %v2649, 4
        %v2652 = vshll.u32 %v2150, 16
        %v2654 = vrot.slane %v2652, 5
        %v2655 = vor.u32 %v2651, %v2654
        %v2656 = vrot.slane %v2655, 4
        %v2658 = vshll.u32 %v2151, 16
        %v2660 = vrot.slane %v2658, 5
        %v2661 = vsel %vm909, %v2656, %v2660
        %v2662 = vshrl.u32 %v2151, 16
        %v2664 = vrot.slane %v2662, 4
        %v2665 = vor.u32 %v2664, %v2660
        %v2666 = vrot.slane %v2665, 4
        %v2668 = vshll.u32 %v2152, 16
        %v2670 = vrot.slane %v2668, 5
        %v2671 = vsel %vm909, %v2666, %v2670
        %v2673 = vshrl.u32 %v2153, 16
        %v2675 = vrot.slane %v2673, 4
        %v2676 = vshll.u32 %v2153, 16
        %v2678 = vrot.slane %v2676, 5
        %v2679 = vor.u32 %v2675, %v2678
        %v2680 = vrot.slane %v2679, 4
        %v2682 = vshll.u32 %v2154, 16
        %v2684 = vrot.slane %v2682, 5
        %v2685 = vsel %vm909, %v2680, %v2684
        %v2686 = vshrl.u32 %v2154, 16
        %v2688 = vrot.slane %v2686, 4
        %v2689 = vor.u32 %v2688, %v2684
        %v2690 = vrot.slane %v2689, 4
        %v2692 = vshll.u32 %v2155, 16
        %v2694 = vrot.slane %v2692, 5
        %v2695 = vsel %vm909, %v2690, %v2694
        %v2697 = vshrl.u32 %v2156, 16
        %v2699 = vrot.slane %v2697, 4
        %v2700 = vshll.u32 %v2156, 16
        %v2702 = vrot.slane %v2700, 5
        %v2703 = vor.u32 %v2699, %v2702
        %v2704 = vrot.slane %v2703, 4
        %v2706 = vshll.u32 %v2157, 16
        %v2708 = vrot.slane %v2706, 5
        %v2709 = vsel %vm909, %v2704, %v2708
        %v2710 = vshrl.u32 %v2157, 16
        %v2712 = vrot.slane %v2710, 4
        %v2713 = vor.u32 %v2712, %v2708
        %v2714 = vrot.slane %v2713, 4
        %v2716 = vshll.u32 %v2158, 16
        %v2718 = vrot.slane %v2716, 5
        %v2719 = vsel %vm909, %v2714, %v2718
        %v2721 = vshrl.u32 %v2159, 16
        %v2723 = vrot.slane %v2721, 4
        %v2724 = vshll.u32 %v2159, 16
        %v2726 = vrot.slane %v2724, 5
        %v2727 = vor.u32 %v2723, %v2726
        %v2728 = vrot.slane %v2727, 4
        %v2730 = vshll.u32 %v2160, 16
        %v2732 = vrot.slane %v2730, 5
        %v2733 = vsel %vm909, %v2728, %v2732
        %v2734 = vshrl.u32 %v2160, 16
        %v2736 = vrot.slane %v2734, 4
        %v2737 = vor.u32 %v2736, %v2732
        %v2738 = vrot.slane %v2737, 4
        %v2740 = vshll.u32 %v2161, 16
        %v2742 = vrot.slane %v2740, 5
        %v2743 = vsel %vm909, %v2738, %v2742
        %v2745 = vshrl.u32 %v2162, 16
        %v2747 = vrot.slane %v2745, 4
        %v2748 = vshll.u32 %v2162, 16
        %v2750 = vrot.slane %v2748, 5
        %v2751 = vor.u32 %v2747, %v2750
        %v2752 = vrot.slane %v2751, 4
        %v2754 = vshll.u32 %v2163, 16
        %v2756 = vrot.slane %v2754, 5
        %v2757 = vsel %vm909, %v2752, %v2756
        %v2758 = vshrl.u32 %v2163, 16
        %v2760 = vrot.slane %v2758, 4
        %v2761 = vor.u32 %v2760, %v2756
        %v2762 = vrot.slane %v2761, 4
        %v2764 = vshll.u32 %v2164, 16
        %v2766 = vrot.slane %v2764, 5
        %v2767 = vsel %vm909, %v2762, %v2766
        %v2769 = vshrl.u32 %v2165, 16
        %v2771 = vrot.slane %v2769, 4
        %v2772 = vshll.u32 %v2165, 16
        %v2774 = vrot.slane %v2772, 5
        %v2775 = vor.u32 %v2771, %v2774
        %v2776 = vrot.slane %v2775, 4
        %v2778 = vshll.u32 %v2166, 16
        %v2780 = vrot.slane %v2778, 5
        %v2781 = vsel %vm909, %v2776, %v2780
        %v2782 = vshrl.u32 %v2166, 16
        %v2784 = vrot.slane %v2782, 4
        %v2785 = vor.u32 %v2784, %v2780
        %v2786 = vrot.slane %v2785, 4
        %v2788 = vshll.u32 %v2167, 16
        %v2790 = vrot.slane %v2788, 5
        %v2791 = vsel %vm909, %v2786, %v2790
        %v2793 = vshrl.u32 %v2168, 16
        %v2795 = vrot.slane %v2793, 4
        %v2796 = vshll.u32 %v2168, 16
        %v2798 = vrot.slane %v2796, 5
        %v2799 = vor.u32 %v2795, %v2798
        %v2800 = vrot.slane %v2799, 4
        %v2802 = vshll.u32 %v2169, 16
        %v2804 = vrot.slane %v2802, 5
        %v2805 = vsel %vm909, %v2800, %v2804
        %v2806 = vshrl.u32 %v2169, 16
        %v2808 = vrot.slane %v2806, 4
        %v2809 = vor.u32 %v2808, %v2804
        %v2810 = vrot.slane %v2809, 4
        %v2812 = vshll.u32 %v2170, 16
        %v2814 = vrot.slane %v2812, 5
        %v2815 = vsel %vm909, %v2810, %v2814
        %v2817 = vshrl.u32 %v2171, 16
        %v2819 = vrot.slane %v2817, 4
        %v2820 = vshll.u32 %v2171, 16
        %v2822 = vrot.slane %v2820, 5
        %v2823 = vor.u32 %v2819, %v2822
        %v2824 = vrot.slane %v2823, 4
        %v2826 = vshll.u32 %v2172, 16
        %v2828 = vrot.slane %v2826, 5
        %v2829 = vsel %vm909, %v2824, %v2828
        %v2830 = vshrl.u32 %v2172, 16
        %v2832 = vrot.slane %v2830, 4
        %v2833 = vor.u32 %v2832, %v2828
        %v2834 = vrot.slane %v2833, 4
        %v2836 = vshll.u32 %v2173, 16
        %v2838 = vrot.slane %v2836, 5
        %v2839 = vsel %vm909, %v2834, %v2838
        %s2840 = scalar_lea.vmem [#allocation6], 256
        %v2841 = vld [vmem:[%s2840] sm:$0xf]
        %v2842 = vld [vmem:[%s2840 + $0x4] sm:$0xf]
        %v2843 = vld [vmem:[%s2840 + $0x8] sm:$0xf]
        %v2844 = vld [vmem:[%s2840 + $0xc] sm:$0xf]
        %v2845 = vld [vmem:[%s2840 + $0x10] sm:$0xf]
        %v2846 = vld [vmem:[%s2840 + $0x14] sm:$0xf]
        %v2847 = vld [vmem:[%s2840 + $0x18] sm:$0xf]
        %v2848 = vld [vmem:[%s2840 + $0x1c] sm:$0xf]
        %v2849 = vld [vmem:[%s2840 + $0x20] sm:$0xf]
        %v2850 = vld [vmem:[%s2840 + $0x24] sm:$0xf]
        %v2851 = vld [vmem:[%s2840 + $0x28] sm:$0xf]
        %v2852 = vld [vmem:[%s2840 + $0x2c] sm:$0xf]
        %v2853 = vld [vmem:[%s2840 + $0x30] sm:$0xf]
        %v2854 = vld [vmem:[%s2840 + $0x34] sm:$0xf]
        %v2855 = vld [vmem:[%s2840 + $0x38] sm:$0xf]
        %v2856 = vld [vmem:[%s2840 + $0x3c] sm:$0xf]
        %v2857 = vunpack.c.l.b16 %v2469
        %v2858 = vunpack.c.l.b16 %v2479
        %v2859 = vunpack.c.l.b16 %v2493
        %v2860 = vunpack.c.l.b16 %v2503
        %v2861 = vunpack.c.l.b16 %v2517
        %v2862 = vunpack.c.l.b16 %v2527
        %v2863 = vunpack.c.l.b16 %v2541
        %v2864 = vunpack.c.l.b16 %v2551
        %v2865 = vunpack.c.l.b16 %v2565
        %v2866 = vunpack.c.l.b16 %v2575
        %v2867 = vunpack.c.l.b16 %v2589
        %v2868 = vunpack.c.l.b16 %v2599
        %v2869 = vunpack.c.l.b16 %v2613
        %v2870 = vunpack.c.l.b16 %v2623
        %v2871 = vunpack.c.l.b16 %v2637
        %v2872 = vunpack.c.l.b16 %v2647
        %v2873 = vunpack.c.l.b16 %v2661
        %v2874 = vunpack.c.l.b16 %v2671
        %v2875 = vunpack.c.l.b16 %v2685
        %v2876 = vunpack.c.l.b16 %v2695
        %v2877 = vunpack.c.l.b16 %v2709
        %v2878 = vunpack.c.l.b16 %v2719
        %v2879 = vunpack.c.l.b16 %v2733
        %v2880 = vunpack.c.l.b16 %v2743
        %v2881 = vunpack.c.l.b16 %v2757
        %v2882 = vunpack.c.l.b16 %v2767
        %v2883 = vunpack.c.l.b16 %v2781
        %v2884 = vunpack.c.l.b16 %v2791
        %v2885 = vunpack.c.l.b16 %v2805
        %v2886 = vunpack.c.l.b16 %v2815
        %v2887 = vunpack.c.l.b16 %v2829
        %v2888 = vunpack.c.l.b16 %v2839
        %v2889 = vpack.c.b16 %v2858, %v2857
        %v2890 = vpack.c.b16 %v2860, %v2859
        %v2891 = vpack.c.b16 %v2862, %v2861
        %v2892 = vpack.c.b16 %v2864, %v2863
        %v2893 = vpack.c.b16 %v2866, %v2865
        %v2894 = vpack.c.b16 %v2868, %v2867
        %v2895 = vpack.c.b16 %v2870, %v2869
        %v2896 = vpack.c.b16 %v2872, %v2871
        %v2897 = vpack.c.b16 %v2874, %v2873
        %v2898 = vpack.c.b16 %v2876, %v2875
        %v2899 = vpack.c.b16 %v2878, %v2877
        %v2900 = vpack.c.b16 %v2880, %v2879
        %v2901 = vpack.c.b16 %v2882, %v2881
        %v2902 = vpack.c.b16 %v2884, %v2883
        %v2903 = vpack.c.b16 %v2886, %v2885
        %v2904 = vpack.c.b16 %v2888, %v2887
        %v2937 = vunpack.c.l.b16 %v2841
        %v2938 = vunpack.c.l.b16 %v2842
        %v2939 = vunpack.c.l.b16 %v2843
        %v2940 = vunpack.c.l.b16 %v2844
        %v2941 = vunpack.c.l.b16 %v2845
        %v2942 = vunpack.c.l.b16 %v2846
        %v2943 = vunpack.c.l.b16 %v2847
        %v2944 = vunpack.c.l.b16 %v2848
        %v2945 = vunpack.c.l.b16 %v2849
        %v2946 = vunpack.c.l.b16 %v2850
        %v2947 = vunpack.c.l.b16 %v2851
        %v2948 = vunpack.c.l.b16 %v2852
        %v2949 = vunpack.c.l.b16 %v2853
        %v2950 = vunpack.c.l.b16 %v2854
        %v2951 = vunpack.c.l.b16 %v2855
        %v2952 = vunpack.c.l.b16 %v2856
        %v2953 = vpack.c.b16 %v2938, %v2937
        %v2954 = vpack.c.b16 %v2940, %v2939
        %v2955 = vpack.c.b16 %v2942, %v2941
        %v2956 = vpack.c.b16 %v2944, %v2943
        %v2957 = vpack.c.b16 %v2946, %v2945
        %v2958 = vpack.c.b16 %v2948, %v2947
        %v2959 = vpack.c.b16 %v2950, %v2949
        %v2960 = vpack.c.b16 %v2952, %v2951
        %2969 = vmatpush.bf16.msra.mxu0 %v2960
        %2970 = vmatpush.bf16.msra.mxu0 %v2959
        %2971 = vmatpush.bf16.msra.mxu0 %v2958
        %2972 = vmatpush.bf16.msra.mxu0 %v2957
        %2973 = vmatpush.bf16.msra.mxu0 %v2956
        %2974 = vmatpush.bf16.msra.mxu0 %v2955
        %2975 = vmatpush.bf16.msra.mxu0 %v2954
        %2976 = vmatpush.bf16.msra.mxu0 %v2953
        %2977 = vmatmul.bf16.gmra.mxu0 %v2889
        %v2978 = vpop.f32.mrf.mxu0
        %v2979 = vadd.f32 0.0, %v2978
        %v2980 = vpop.f32.mrf.mxu0
        %v2981 = vadd.f32 0.0, %v2980
        %2982 = vmatmul.bf16.gmra.mxu0 %v2890
        %v2983 = vpop.f32.mrf.mxu0
        %v2984 = vadd.f32 0.0, %v2983
        %v2985 = vpop.f32.mrf.mxu0
        %v2986 = vadd.f32 0.0, %v2985
        %2987 = vmatmul.bf16.gmra.mxu0 %v2891
        %v2988 = vpop.f32.mrf.mxu0
        %v2989 = vadd.f32 0.0, %v2988
        %v2990 = vpop.f32.mrf.mxu0
        %v2991 = vadd.f32 0.0, %v2990
        %2992 = vmatmul.bf16.gmra.mxu0 %v2892
        %v2993 = vpop.f32.mrf.mxu0
        %v2994 = vadd.f32 0.0, %v2993
        %v2995 = vpop.f32.mrf.mxu0
        %v2996 = vadd.f32 0.0, %v2995
        %2997 = vmatmul.bf16.gmra.mxu0 %v2893
        %v2998 = vpop.f32.mrf.mxu0
        %v2999 = vadd.f32 0.0, %v2998
        %v3000 = vpop.f32.mrf.mxu0
        %v3001 = vadd.f32 0.0, %v3000
        %3002 = vmatmul.bf16.gmra.mxu0 %v2894
        %v3003 = vpop.f32.mrf.mxu0
        %v3004 = vadd.f32 0.0, %v3003
        %v3005 = vpop.f32.mrf.mxu0
        %v3006 = vadd.f32 0.0, %v3005
        %3007 = vmatmul.bf16.gmra.mxu0 %v2895
        %v3008 = vpop.f32.mrf.mxu0
        %v3009 = vadd.f32 0.0, %v3008
        %v3010 = vpop.f32.mrf.mxu0
        %v3011 = vadd.f32 0.0, %v3010
        %3012 = vmatmul.bf16.gmra.mxu0 %v2896
        %v3013 = vpop.f32.mrf.mxu0
        %v3014 = vadd.f32 0.0, %v3013
        %v3015 = vpop.f32.mrf.mxu0
        %v3016 = vadd.f32 0.0, %v3015
        %3017 = vmatmul.bf16.gmra.mxu0 %v2897
        %v3018 = vpop.f32.mrf.mxu0
        %v3019 = vadd.f32 0.0, %v3018
        %v3020 = vpop.f32.mrf.mxu0
        %v3021 = vadd.f32 0.0, %v3020
        %3022 = vmatmul.bf16.gmra.mxu0 %v2898
        %v3023 = vpop.f32.mrf.mxu0
        %v3024 = vadd.f32 0.0, %v3023
        %v3025 = vpop.f32.mrf.mxu0
        %v3026 = vadd.f32 0.0, %v3025
        %3027 = vmatmul.bf16.gmra.mxu0 %v2899
        %v3028 = vpop.f32.mrf.mxu0
        %v3029 = vadd.f32 0.0, %v3028
        %v3030 = vpop.f32.mrf.mxu0
        %v3031 = vadd.f32 0.0, %v3030
        %3032 = vmatmul.bf16.gmra.mxu0 %v2900
        %v3033 = vpop.f32.mrf.mxu0
        %v3034 = vadd.f32 0.0, %v3033
        %v3035 = vpop.f32.mrf.mxu0
        %v3036 = vadd.f32 0.0, %v3035
        %3037 = vmatmul.bf16.gmra.mxu0 %v2901
        %v3038 = vpop.f32.mrf.mxu0
        %v3039 = vadd.f32 0.0, %v3038
        %v3040 = vpop.f32.mrf.mxu0
        %v3041 = vadd.f32 0.0, %v3040
        %3042 = vmatmul.bf16.gmra.mxu0 %v2902
        %v3043 = vpop.f32.mrf.mxu0
        %v3044 = vadd.f32 0.0, %v3043
        %v3045 = vpop.f32.mrf.mxu0
        %v3046 = vadd.f32 0.0, %v3045
        %3047 = vmatmul.bf16.gmra.mxu0 %v2903
        %v3048 = vpop.f32.mrf.mxu0
        %v3049 = vadd.f32 0.0, %v3048
        %v3050 = vpop.f32.mrf.mxu0
        %v3051 = vadd.f32 0.0, %v3050
        %3052 = vmatmul.bf16.gmra.mxu0 %v2904
        %v3053 = vpop.f32.mrf.mxu0
        %v3054 = vadd.f32 0.0, %v3053
        %v3055 = vpop.f32.mrf.mxu0
        %v3056 = vadd.f32 0.0, %v3055
        %3057 = vdwg.mxu0
        %v3058 = vadd.f32 %v2424, %v2979
        %v3059 = vadd.f32 %v2425, %v2981
        %v3060 = vadd.f32 %v2426, %v2984
        %v3061 = vadd.f32 %v2427, %v2986
        %v3062 = vadd.f32 %v2428, %v2989
        %v3063 = vadd.f32 %v2429, %v2991
        %v3064 = vadd.f32 %v2430, %v2994
        %v3065 = vadd.f32 %v2431, %v2996
        %v3066 = vadd.f32 %v2432, %v2999
        %v3067 = vadd.f32 %v2433, %v3001
        %v3068 = vadd.f32 %v2434, %v3004
        %v3069 = vadd.f32 %v2435, %v3006
        %v3070 = vadd.f32 %v2436, %v3009
        %v3071 = vadd.f32 %v2437, %v3011
        %v3072 = vadd.f32 %v2438, %v3014
        %v3073 = vadd.f32 %v2439, %v3016
        %v3074 = vadd.f32 %v2440, %v3019
        %v3075 = vadd.f32 %v2441, %v3021
        %v3076 = vadd.f32 %v2442, %v3024
        %v3077 = vadd.f32 %v2443, %v3026
        %v3078 = vadd.f32 %v2444, %v3029
        %v3079 = vadd.f32 %v2445, %v3031
        %v3080 = vadd.f32 %v2446, %v3034
        %v3081 = vadd.f32 %v2447, %v3036
        %v3082 = vadd.f32 %v2448, %v3039
        %v3083 = vadd.f32 %v2449, %v3041
        %v3084 = vadd.f32 %v2450, %v3044
        %v3085 = vadd.f32 %v2451, %v3046
        %v3086 = vadd.f32 %v2452, %v3049
        %v3087 = vadd.f32 %v2453, %v3051
        %v3088 = vadd.f32 %v2454, %v3054
        %v3089 = vadd.f32 %v2455, %v3056
        %v3106 = vrot.slane %v2126, 5
        %v3107 = vrot.slane %v3106, 4
        %v3108 = vrot.slane %v2127, 5
        %v3109 = vsel %vm1763, %v3107, %v3108
        %v3110 = vrot.slane %v3108, 4
        %v3111 = vrot.slane %v2128, 5
        %v3112 = vsel %vm1763, %v3110, %v3111
        %v3113 = vrot.slane %v2129, 5
        %v3114 = vrot.slane %v3113, 4
        %v3115 = vrot.slane %v2130, 5
        %v3116 = vsel %vm1763, %v3114, %v3115
        %v3117 = vrot.slane %v3115, 4
        %v3118 = vrot.slane %v2131, 5
        %v3119 = vsel %vm1763, %v3117, %v3118
        %v3120 = vrot.slane %v2132, 5
        %v3121 = vrot.slane %v3120, 4
        %v3122 = vrot.slane %v2133, 5
        %v3123 = vsel %vm1763, %v3121, %v3122
        %v3124 = vrot.slane %v3122, 4
        %v3125 = vrot.slane %v2134, 5
        %v3126 = vsel %vm1763, %v3124, %v3125
        %v3127 = vrot.slane %v2135, 5
        %v3128 = vrot.slane %v3127, 4
        %v3129 = vrot.slane %v2136, 5
        %v3130 = vsel %vm1763, %v3128, %v3129
        %v3131 = vrot.slane %v3129, 4
        %v3132 = vrot.slane %v2137, 5
        %v3133 = vsel %vm1763, %v3131, %v3132
        %v3134 = vrot.slane %v2138, 5
        %v3135 = vrot.slane %v3134, 4
        %v3136 = vrot.slane %v2139, 5
        %v3137 = vsel %vm1763, %v3135, %v3136
        %v3138 = vrot.slane %v3136, 4
        %v3139 = vrot.slane %v2140, 5
        %v3140 = vsel %vm1763, %v3138, %v3139
        %v3141 = vrot.slane %v2141, 5
        %v3142 = vrot.slane %v3141, 4
        %v3143 = vrot.slane %v2142, 5
        %v3144 = vsel %vm1763, %v3142, %v3143
        %v3145 = vrot.slane %v3143, 4
        %v3146 = vrot.slane %v2143, 5
        %v3147 = vsel %vm1763, %v3145, %v3146
        %v3148 = vrot.slane %v2144, 5
        %v3149 = vrot.slane %v3148, 4
        %v3150 = vrot.slane %v2145, 5
        %v3151 = vsel %vm1763, %v3149, %v3150
        %v3152 = vrot.slane %v3150, 4
        %v3153 = vrot.slane %v2146, 5
        %v3154 = vsel %vm1763, %v3152, %v3153
        %v3155 = vrot.slane %v2147, 5
        %v3156 = vrot.slane %v3155, 4
        %v3157 = vrot.slane %v2148, 5
        %v3158 = vsel %vm1763, %v3156, %v3157
        %v3159 = vrot.slane %v3157, 4
        %v3160 = vrot.slane %v2149, 5
        %v3161 = vsel %vm1763, %v3159, %v3160
        %v3162 = vrot.slane %v2150, 5
        %v3163 = vrot.slane %v3162, 4
        %v3164 = vrot.slane %v2151, 5
        %v3165 = vsel %vm1763, %v3163, %v3164
        %v3166 = vrot.slane %v3164, 4
        %v3167 = vrot.slane %v2152, 5
        %v3168 = vsel %vm1763, %v3166, %v3167
        %v3169 = vrot.slane %v2153, 5
        %v3170 = vrot.slane %v3169, 4
        %v3171 = vrot.slane %v2154, 5
        %v3172 = vsel %vm1763, %v3170, %v3171
        %v3173 = vrot.slane %v3171, 4
        %v3174 = vrot.slane %v2155, 5
        %v3175 = vsel %vm1763, %v3173, %v3174
        %v3176 = vrot.slane %v2156, 5
        %v3177 = vrot.slane %v3176, 4
        %v3178 = vrot.slane %v2157, 5
        %v3179 = vsel %vm1763, %v3177, %v3178
        %v3180 = vrot.slane %v3178, 4
        %v3181 = vrot.slane %v2158, 5
        %v3182 = vsel %vm1763, %v3180, %v3181
        %v3183 = vrot.slane %v2159, 5
        %v3184 = vrot.slane %v3183, 4
        %v3185 = vrot.slane %v2160, 5
        %v3186 = vsel %vm1763, %v3184, %v3185
        %v3187 = vrot.slane %v3185, 4
        %v3188 = vrot.slane %v2161, 5
        %v3189 = vsel %vm1763, %v3187, %v3188
        %v3190 = vrot.slane %v2162, 5
        %v3191 = vrot.slane %v3190, 4
        %v3192 = vrot.slane %v2163, 5
        %v3193 = vsel %vm1763, %v3191, %v3192
        %v3194 = vrot.slane %v3192, 4
        %v3195 = vrot.slane %v2164, 5
        %v3196 = vsel %vm1763, %v3194, %v3195
        %v3197 = vrot.slane %v2165, 5
        %v3198 = vrot.slane %v3197, 4
        %v3199 = vrot.slane %v2166, 5
        %v3200 = vsel %vm1763, %v3198, %v3199
        %v3201 = vrot.slane %v3199, 4
        %v3202 = vrot.slane %v2167, 5
        %v3203 = vsel %vm1763, %v3201, %v3202
        %v3204 = vrot.slane %v2168, 5
        %v3205 = vrot.slane %v3204, 4
        %v3206 = vrot.slane %v2169, 5
        %v3207 = vsel %vm1763, %v3205, %v3206
        %v3208 = vrot.slane %v3206, 4
        %v3209 = vrot.slane %v2170, 5
        %v3210 = vsel %vm1763, %v3208, %v3209
        %v3211 = vrot.slane %v2171, 5
        %v3212 = vrot.slane %v3211, 4
        %v3213 = vrot.slane %v2172, 5
        %v3214 = vsel %vm1763, %v3212, %v3213
        %v3215 = vrot.slane %v3213, 4
        %v3216 = vrot.slane %v2173, 5
        %v3217 = vsel %vm1763, %v3215, %v3216
        %s3218 = scalar_lea.vmem [#allocation6], 320
        %v3219 = vld [vmem:[%s3218] sm:$0xf]
        %v3220 = vld [vmem:[%s3218 + $0x4] sm:$0xf]
        %v3221 = vld [vmem:[%s3218 + $0x8] sm:$0xf]
        %v3222 = vld [vmem:[%s3218 + $0xc] sm:$0xf]
        %v3223 = vld [vmem:[%s3218 + $0x10] sm:$0xf]
        %v3224 = vld [vmem:[%s3218 + $0x14] sm:$0xf]
        %v3225 = vld [vmem:[%s3218 + $0x18] sm:$0xf]
        %v3226 = vld [vmem:[%s3218 + $0x1c] sm:$0xf]
        %v3227 = vld [vmem:[%s3218 + $0x20] sm:$0xf]
        %v3228 = vld [vmem:[%s3218 + $0x24] sm:$0xf]
        %v3229 = vld [vmem:[%s3218 + $0x28] sm:$0xf]
        %v3230 = vld [vmem:[%s3218 + $0x2c] sm:$0xf]
        %v3231 = vld [vmem:[%s3218 + $0x30] sm:$0xf]
        %v3232 = vld [vmem:[%s3218 + $0x34] sm:$0xf]
        %v3233 = vld [vmem:[%s3218 + $0x38] sm:$0xf]
        %v3234 = vld [vmem:[%s3218 + $0x3c] sm:$0xf]
        %v3235 = vunpack.c.l.b16 %v3109
        %v3236 = vunpack.c.l.b16 %v3112
        %v3237 = vunpack.c.l.b16 %v3116
        %v3238 = vunpack.c.l.b16 %v3119
        %v3239 = vunpack.c.l.b16 %v3123
        %v3240 = vunpack.c.l.b16 %v3126
        %v3241 = vunpack.c.l.b16 %v3130
        %v3242 = vunpack.c.l.b16 %v3133
        %v3243 = vunpack.c.l.b16 %v3137
        %v3244 = vunpack.c.l.b16 %v3140
        %v3245 = vunpack.c.l.b16 %v3144
        %v3246 = vunpack.c.l.b16 %v3147
        %v3247 = vunpack.c.l.b16 %v3151
        %v3248 = vunpack.c.l.b16 %v3154
        %v3249 = vunpack.c.l.b16 %v3158
        %v3250 = vunpack.c.l.b16 %v3161
        %v3251 = vunpack.c.l.b16 %v3165
        %v3252 = vunpack.c.l.b16 %v3168
        %v3253 = vunpack.c.l.b16 %v3172
        %v3254 = vunpack.c.l.b16 %v3175
        %v3255 = vunpack.c.l.b16 %v3179
        %v3256 = vunpack.c.l.b16 %v3182
        %v3257 = vunpack.c.l.b16 %v3186
        %v3258 = vunpack.c.l.b16 %v3189
        %v3259 = vunpack.c.l.b16 %v3193
        %v3260 = vunpack.c.l.b16 %v3196
        %v3261 = vunpack.c.l.b16 %v3200
        %v3262 = vunpack.c.l.b16 %v3203
        %v3263 = vunpack.c.l.b16 %v3207
        %v3264 = vunpack.c.l.b16 %v3210
        %v3265 = vunpack.c.l.b16 %v3214
        %v3266 = vunpack.c.l.b16 %v3217
        %v3267 = vpack.c.b16 %v3236, %v3235
        %v3268 = vpack.c.b16 %v3238, %v3237
        %v3269 = vpack.c.b16 %v3240, %v3239
        %v3270 = vpack.c.b16 %v3242, %v3241
        %v3271 = vpack.c.b16 %v3244, %v3243
        %v3272 = vpack.c.b16 %v3246, %v3245
        %v3273 = vpack.c.b16 %v3248, %v3247
        %v3274 = vpack.c.b16 %v3250, %v3249
        %v3275 = vpack.c.b16 %v3252, %v3251
        %v3276 = vpack.c.b16 %v3254, %v3253
        %v3277 = vpack.c.b16 %v3256, %v3255
        %v3278 = vpack.c.b16 %v3258, %v3257
        %v3279 = vpack.c.b16 %v3260, %v3259
        %v3280 = vpack.c.b16 %v3262, %v3261
        %v3281 = vpack.c.b16 %v3264, %v3263
        %v3282 = vpack.c.b16 %v3266, %v3265
        %v3315 = vunpack.c.l.b16 %v3219
        %v3316 = vunpack.c.l.b16 %v3220
        %v3317 = vunpack.c.l.b16 %v3221
        %v3318 = vunpack.c.l.b16 %v3222
        %v3319 = vunpack.c.l.b16 %v3223
        %v3320 = vunpack.c.l.b16 %v3224
        %v3321 = vunpack.c.l.b16 %v3225
        %v3322 = vunpack.c.l.b16 %v3226
        %v3323 = vunpack.c.l.b16 %v3227
        %v3324 = vunpack.c.l.b16 %v3228
        %v3325 = vunpack.c.l.b16 %v3229
        %v3326 = vunpack.c.l.b16 %v3230
        %v3327 = vunpack.c.l.b16 %v3231
        %v3328 = vunpack.c.l.b16 %v3232
        %v3329 = vunpack.c.l.b16 %v3233
        %v3330 = vunpack.c.l.b16 %v3234
        %v3331 = vpack.c.b16 %v3316, %v3315
        %v3332 = vpack.c.b16 %v3318, %v3317
        %v3333 = vpack.c.b16 %v3320, %v3319
        %v3334 = vpack.c.b16 %v3322, %v3321
        %v3335 = vpack.c.b16 %v3324, %v3323
        %v3336 = vpack.c.b16 %v3326, %v3325
        %v3337 = vpack.c.b16 %v3328, %v3327
        %v3338 = vpack.c.b16 %v3330, %v3329
        %3347 = vmatpush.bf16.msra.mxu0 %v3338
        %3348 = vmatpush.bf16.msra.mxu0 %v3337
        %3349 = vmatpush.bf16.msra.mxu0 %v3336
        %3350 = vmatpush.bf16.msra.mxu0 %v3335
        %3351 = vmatpush.bf16.msra.mxu0 %v3334
        %3352 = vmatpush.bf16.msra.mxu0 %v3333
        %3353 = vmatpush.bf16.msra.mxu0 %v3332
        %3354 = vmatpush.bf16.msra.mxu0 %v3331
        %3355 = vmatmul.bf16.gmra.mxu0 %v3267
        %v3356 = vpop.f32.mrf.mxu0
        %v3357 = vadd.f32 0.0, %v3356
        %v3358 = vpop.f32.mrf.mxu0
        %v3359 = vadd.f32 0.0, %v3358
        %3360 = vmatmul.bf16.gmra.mxu0 %v3268
        %v3361 = vpop.f32.mrf.mxu0
        %v3362 = vadd.f32 0.0, %v3361
        %v3363 = vpop.f32.mrf.mxu0
        %v3364 = vadd.f32 0.0, %v3363
        %3365 = vmatmul.bf16.gmra.mxu0 %v3269
        %v3366 = vpop.f32.mrf.mxu0
        %v3367 = vadd.f32 0.0, %v3366
        %v3368 = vpop.f32.mrf.mxu0
        %v3369 = vadd.f32 0.0, %v3368
        %3370 = vmatmul.bf16.gmra.mxu0 %v3270
        %v3371 = vpop.f32.mrf.mxu0
        %v3372 = vadd.f32 0.0, %v3371
        %v3373 = vpop.f32.mrf.mxu0
        %v3374 = vadd.f32 0.0, %v3373
        %3375 = vmatmul.bf16.gmra.mxu0 %v3271
        %v3376 = vpop.f32.mrf.mxu0
        %v3377 = vadd.f32 0.0, %v3376
        %v3378 = vpop.f32.mrf.mxu0
        %v3379 = vadd.f32 0.0, %v3378
        %3380 = vmatmul.bf16.gmra.mxu0 %v3272
        %v3381 = vpop.f32.mrf.mxu0
        %v3382 = vadd.f32 0.0, %v3381
        %v3383 = vpop.f32.mrf.mxu0
        %v3384 = vadd.f32 0.0, %v3383
        %3385 = vmatmul.bf16.gmra.mxu0 %v3273
        %v3386 = vpop.f32.mrf.mxu0
        %v3387 = vadd.f32 0.0, %v3386
        %v3388 = vpop.f32.mrf.mxu0
        %v3389 = vadd.f32 0.0, %v3388
        %3390 = vmatmul.bf16.gmra.mxu0 %v3274
        %v3391 = vpop.f32.mrf.mxu0
        %v3392 = vadd.f32 0.0, %v3391
        %v3393 = vpop.f32.mrf.mxu0
        %v3394 = vadd.f32 0.0, %v3393
        %3395 = vmatmul.bf16.gmra.mxu0 %v3275
        %v3396 = vpop.f32.mrf.mxu0
        %v3397 = vadd.f32 0.0, %v3396
        %v3398 = vpop.f32.mrf.mxu0
        %v3399 = vadd.f32 0.0, %v3398
        %3400 = vmatmul.bf16.gmra.mxu0 %v3276
        %v3401 = vpop.f32.mrf.mxu0
        %v3402 = vadd.f32 0.0, %v3401
        %v3403 = vpop.f32.mrf.mxu0
        %v3404 = vadd.f32 0.0, %v3403
        %3405 = vmatmul.bf16.gmra.mxu0 %v3277
        %v3406 = vpop.f32.mrf.mxu0
        %v3407 = vadd.f32 0.0, %v3406
        %v3408 = vpop.f32.mrf.mxu0
        %v3409 = vadd.f32 0.0, %v3408
        %3410 = vmatmul.bf16.gmra.mxu0 %v3278
        %v3411 = vpop.f32.mrf.mxu0
        %v3412 = vadd.f32 0.0, %v3411
        %v3413 = vpop.f32.mrf.mxu0
        %v3414 = vadd.f32 0.0, %v3413
        %3415 = vmatmul.bf16.gmra.mxu0 %v3279
        %v3416 = vpop.f32.mrf.mxu0
        %v3417 = vadd.f32 0.0, %v3416
        %v3418 = vpop.f32.mrf.mxu0
        %v3419 = vadd.f32 0.0, %v3418
        %3420 = vmatmul.bf16.gmra.mxu0 %v3280
        %v3421 = vpop.f32.mrf.mxu0
        %v3422 = vadd.f32 0.0, %v3421
        %v3423 = vpop.f32.mrf.mxu0
        %v3424 = vadd.f32 0.0, %v3423
        %3425 = vmatmul.bf16.gmra.mxu0 %v3281
        %v3426 = vpop.f32.mrf.mxu0
        %v3427 = vadd.f32 0.0, %v3426
        %v3428 = vpop.f32.mrf.mxu0
        %v3429 = vadd.f32 0.0, %v3428
        %3430 = vmatmul.bf16.gmra.mxu0 %v3282
        %v3431 = vpop.f32.mrf.mxu0
        %v3432 = vadd.f32 0.0, %v3431
        %v3433 = vpop.f32.mrf.mxu0
        %v3434 = vadd.f32 0.0, %v3433
        %3435 = vdwg.mxu0
        %v3436 = vadd.f32 %v3058, %v3357
        %v3437 = vadd.f32 %v3059, %v3359
        %v3438 = vadd.f32 %v3060, %v3362
        %v3439 = vadd.f32 %v3061, %v3364
        %v3440 = vadd.f32 %v3062, %v3367
        %v3441 = vadd.f32 %v3063, %v3369
        %v3442 = vadd.f32 %v3064, %v3372
        %v3443 = vadd.f32 %v3065, %v3374
        %v3444 = vadd.f32 %v3066, %v3377
        %v3445 = vadd.f32 %v3067, %v3379
        %v3446 = vadd.f32 %v3068, %v3382
        %v3447 = vadd.f32 %v3069, %v3384
        %v3448 = vadd.f32 %v3070, %v3387
        %v3449 = vadd.f32 %v3071, %v3389
        %v3450 = vadd.f32 %v3072, %v3392
        %v3451 = vadd.f32 %v3073, %v3394
        %v3452 = vadd.f32 %v3074, %v3397
        %v3453 = vadd.f32 %v3075, %v3399
        %v3454 = vadd.f32 %v3076, %v3402
        %v3455 = vadd.f32 %v3077, %v3404
        %v3456 = vadd.f32 %v3078, %v3407
        %v3457 = vadd.f32 %v3079, %v3409
        %v3458 = vadd.f32 %v3080, %v3412
        %v3459 = vadd.f32 %v3081, %v3414
        %v3460 = vadd.f32 %v3082, %v3417
        %v3461 = vadd.f32 %v3083, %v3419
        %v3462 = vadd.f32 %v3084, %v3422
        %v3463 = vadd.f32 %v3085, %v3424
        %v3464 = vadd.f32 %v3086, %v3427
        %v3465 = vadd.f32 %v3087, %v3429
        %v3466 = vadd.f32 %v3088, %v3432
        %v3467 = vadd.f32 %v3089, %v3434
        %s3468 = scalar_lea.vmem [#allocation2], 32
        %v3469 = vld [vmem:[%s3468] sm:$0xf]
        %v3470 = vld [vmem:[%s3468 + $0x4] sm:$0xf]
        %v3471 = vld [vmem:[%s3468 + $0x8] sm:$0xf]
        %v3472 = vld [vmem:[%s3468 + $0x10] sm:$0xf]
        %v3473 = vld [vmem:[%s3468 + $0x14] sm:$0xf]
        %v3474 = vld [vmem:[%s3468 + $0x18] sm:$0xf]
        %v3475 = vld [vmem:[%s3468 + $0x20] sm:$0xf]
        %v3476 = vld [vmem:[%s3468 + $0x24] sm:$0xf]
        %v3477 = vld [vmem:[%s3468 + $0x28] sm:$0xf]
        %v3478 = vld [vmem:[%s3468 + $0x30] sm:$0xf]
        %v3479 = vld [vmem:[%s3468 + $0x34] sm:$0xf]
        %v3480 = vld [vmem:[%s3468 + $0x38] sm:$0xf]
        %v3481 = vld [vmem:[%s3468 + $0x40] sm:$0xf]
        %v3482 = vld [vmem:[%s3468 + $0x44] sm:$0xf]
        %v3483 = vld [vmem:[%s3468 + $0x48] sm:$0xf]
        %v3484 = vld [vmem:[%s3468 + $0x50] sm:$0xf]
        %v3485 = vld [vmem:[%s3468 + $0x54] sm:$0xf]
        %v3486 = vld [vmem:[%s3468 + $0x58] sm:$0xf]
        %v3487 = vld [vmem:[%s3468 + $0x60] sm:$0xf]
        %v3488 = vld [vmem:[%s3468 + $0x64] sm:$0xf]
        %v3489 = vld [vmem:[%s3468 + $0x68] sm:$0xf]
        %v3490 = vld [vmem:[%s3468 + $0x70] sm:$0xf]
        %v3491 = vld [vmem:[%s3468 + $0x74] sm:$0xf]
        %v3492 = vld [vmem:[%s3468 + $0x78] sm:$0xf]
        %v3493 = vld [vmem:[%s3468 + $0x80] sm:$0xf]
        %v3494 = vld [vmem:[%s3468 + $0x84] sm:$0xf]
        %v3495 = vld [vmem:[%s3468 + $0x88] sm:$0xf]
        %v3496 = vld [vmem:[%s3468 + $0x90] sm:$0xf]
        %v3497 = vld [vmem:[%s3468 + $0x94] sm:$0xf]
        %v3498 = vld [vmem:[%s3468 + $0x98] sm:$0xf]
        %v3499 = vld [vmem:[%s3468 + $0xa0] sm:$0xf]
        %v3500 = vld [vmem:[%s3468 + $0xa4] sm:$0xf]
        %v3501 = vld [vmem:[%s3468 + $0xa8] sm:$0xf]
        %v3502 = vld [vmem:[%s3468 + $0xb0] sm:$0xf]
        %v3503 = vld [vmem:[%s3468 + $0xb4] sm:$0xf]
        %v3504 = vld [vmem:[%s3468 + $0xb8] sm:$0xf]
        %v3505 = vld [vmem:[%s3468 + $0xc0] sm:$0xf]
        %v3506 = vld [vmem:[%s3468 + $0xc4] sm:$0xf]
        %v3507 = vld [vmem:[%s3468 + $0xc8] sm:$0xf]
        %v3508 = vld [vmem:[%s3468 + $0xd0] sm:$0xf]
        %v3509 = vld [vmem:[%s3468 + $0xd4] sm:$0xf]
        %v3510 = vld [vmem:[%s3468 + $0xd8] sm:$0xf]
        %v3511 = vld [vmem:[%s3468 + $0xe0] sm:$0xf]
        %v3512 = vld [vmem:[%s3468 + $0xe4] sm:$0xf]
        %v3513 = vld [vmem:[%s3468 + $0xe8] sm:$0xf]
        %v3514 = vld [vmem:[%s3468 + $0xf0] sm:$0xf]
        %v3515 = vld [vmem:[%s3468 + $0xf4] sm:$0xf]
        %v3516 = vld [vmem:[%s3468 + $0xf8] sm:$0xf]
        %s3517 = scalar_lea.vmem [#allocation6], 384
        %v3518 = vld [vmem:[%s3517] sm:$0xf]
        %v3519 = vld [vmem:[%s3517 + $0x4] sm:$0xf]
        %v3520 = vld [vmem:[%s3517 + $0x8] sm:$0xf]
        %v3521 = vld [vmem:[%s3517 + $0xc] sm:$0xf]
        %v3522 = vld [vmem:[%s3517 + $0x10] sm:$0xf]
        %v3523 = vld [vmem:[%s3517 + $0x14] sm:$0xf]
        %v3524 = vld [vmem:[%s3517 + $0x18] sm:$0xf]
        %v3525 = vld [vmem:[%s3517 + $0x1c] sm:$0xf]
        %v3526 = vld [vmem:[%s3517 + $0x20] sm:$0xf]
        %v3527 = vld [vmem:[%s3517 + $0x24] sm:$0xf]
        %v3528 = vld [vmem:[%s3517 + $0x28] sm:$0xf]
        %v3529 = vld [vmem:[%s3517 + $0x2c] sm:$0xf]
        %v3530 = vld [vmem:[%s3517 + $0x30] sm:$0xf]
        %v3531 = vld [vmem:[%s3517 + $0x34] sm:$0xf]
        %v3532 = vld [vmem:[%s3517 + $0x38] sm:$0xf]
        %v3533 = vld [vmem:[%s3517 + $0x3c] sm:$0xf]
        %v3566 = vunpack.c.l.b16 %v3469
        %v3567 = vunpack.c.l.b16 %v3470
        %v3568 = vunpack.c.l.b16 %v3472
        %v3569 = vunpack.c.l.b16 %v3473
        %v3570 = vunpack.c.l.b16 %v3475
        %v3571 = vunpack.c.l.b16 %v3476
        %v3572 = vunpack.c.l.b16 %v3478
        %v3573 = vunpack.c.l.b16 %v3479
        %v3574 = vunpack.c.l.b16 %v3481
        %v3575 = vunpack.c.l.b16 %v3482
        %v3576 = vunpack.c.l.b16 %v3484
        %v3577 = vunpack.c.l.b16 %v3485
        %v3578 = vunpack.c.l.b16 %v3487
        %v3579 = vunpack.c.l.b16 %v3488
        %v3580 = vunpack.c.l.b16 %v3490
        %v3581 = vunpack.c.l.b16 %v3491
        %v3582 = vunpack.c.l.b16 %v3493
        %v3583 = vunpack.c.l.b16 %v3494
        %v3584 = vunpack.c.l.b16 %v3496
        %v3585 = vunpack.c.l.b16 %v3497
        %v3586 = vunpack.c.l.b16 %v3499
        %v3587 = vunpack.c.l.b16 %v3500
        %v3588 = vunpack.c.l.b16 %v3502
        %v3589 = vunpack.c.l.b16 %v3503
        %v3590 = vunpack.c.l.b16 %v3505
        %v3591 = vunpack.c.l.b16 %v3506
        %v3592 = vunpack.c.l.b16 %v3508
        %v3593 = vunpack.c.l.b16 %v3509
        %v3594 = vunpack.c.l.b16 %v3511
        %v3595 = vunpack.c.l.b16 %v3512
        %v3596 = vunpack.c.l.b16 %v3514
        %v3597 = vunpack.c.l.b16 %v3515
        %v3598 = vpack.c.b16 %v3567, %v3566
        %v3599 = vpack.c.b16 %v3569, %v3568
        %v3600 = vpack.c.b16 %v3571, %v3570
        %v3601 = vpack.c.b16 %v3573, %v3572
        %v3602 = vpack.c.b16 %v3575, %v3574
        %v3603 = vpack.c.b16 %v3577, %v3576
        %v3604 = vpack.c.b16 %v3579, %v3578
        %v3605 = vpack.c.b16 %v3581, %v3580
        %v3606 = vpack.c.b16 %v3583, %v3582
        %v3607 = vpack.c.b16 %v3585, %v3584
        %v3608 = vpack.c.b16 %v3587, %v3586
        %v3609 = vpack.c.b16 %v3589, %v3588
        %v3610 = vpack.c.b16 %v3591, %v3590
        %v3611 = vpack.c.b16 %v3593, %v3592
        %v3612 = vpack.c.b16 %v3595, %v3594
        %v3613 = vpack.c.b16 %v3597, %v3596
        %v3646 = vunpack.c.l.b16 %v3518
        %v3647 = vunpack.c.l.b16 %v3519
        %v3648 = vunpack.c.l.b16 %v3520
        %v3649 = vunpack.c.l.b16 %v3521
        %v3650 = vunpack.c.l.b16 %v3522
        %v3651 = vunpack.c.l.b16 %v3523
        %v3652 = vunpack.c.l.b16 %v3524
        %v3653 = vunpack.c.l.b16 %v3525
        %v3654 = vunpack.c.l.b16 %v3526
        %v3655 = vunpack.c.l.b16 %v3527
        %v3656 = vunpack.c.l.b16 %v3528
        %v3657 = vunpack.c.l.b16 %v3529
        %v3658 = vunpack.c.l.b16 %v3530
        %v3659 = vunpack.c.l.b16 %v3531
        %v3660 = vunpack.c.l.b16 %v3532
        %v3661 = vunpack.c.l.b16 %v3533
        %v3662 = vpack.c.b16 %v3647, %v3646
        %v3663 = vpack.c.b16 %v3649, %v3648
        %v3664 = vpack.c.b16 %v3651, %v3650
        %v3665 = vpack.c.b16 %v3653, %v3652
        %v3666 = vpack.c.b16 %v3655, %v3654
        %v3667 = vpack.c.b16 %v3657, %v3656
        %v3668 = vpack.c.b16 %v3659, %v3658
        %v3669 = vpack.c.b16 %v3661, %v3660
        %3678 = vmatpush.bf16.msra.mxu0 %v3669
        %3679 = vmatpush.bf16.msra.mxu0 %v3668
        %3680 = vmatpush.bf16.msra.mxu0 %v3667
        %3681 = vmatpush.bf16.msra.mxu0 %v3666
        %3682 = vmatpush.bf16.msra.mxu0 %v3665
        %3683 = vmatpush.bf16.msra.mxu0 %v3664
        %3684 = vmatpush.bf16.msra.mxu0 %v3663
        %3685 = vmatpush.bf16.msra.mxu0 %v3662
        %3686 = vmatmul.bf16.gmra.mxu0 %v3598
        %v3687 = vpop.f32.mrf.mxu0
        %v3688 = vadd.f32 0.0, %v3687
        %v3689 = vpop.f32.mrf.mxu0
        %v3690 = vadd.f32 0.0, %v3689
        %3691 = vmatmul.bf16.gmra.mxu0 %v3599
        %v3692 = vpop.f32.mrf.mxu0
        %v3693 = vadd.f32 0.0, %v3692
        %v3694 = vpop.f32.mrf.mxu0
        %v3695 = vadd.f32 0.0, %v3694
        %3696 = vmatmul.bf16.gmra.mxu0 %v3600
        %v3697 = vpop.f32.mrf.mxu0
        %v3698 = vadd.f32 0.0, %v3697
        %v3699 = vpop.f32.mrf.mxu0
        %v3700 = vadd.f32 0.0, %v3699
        %3701 = vmatmul.bf16.gmra.mxu0 %v3601
        %v3702 = vpop.f32.mrf.mxu0
        %v3703 = vadd.f32 0.0, %v3702
        %v3704 = vpop.f32.mrf.mxu0
        %v3705 = vadd.f32 0.0, %v3704
        %3706 = vmatmul.bf16.gmra.mxu0 %v3602
        %v3707 = vpop.f32.mrf.mxu0
        %v3708 = vadd.f32 0.0, %v3707
        %v3709 = vpop.f32.mrf.mxu0
        %v3710 = vadd.f32 0.0, %v3709
        %3711 = vmatmul.bf16.gmra.mxu0 %v3603
        %v3712 = vpop.f32.mrf.mxu0
        %v3713 = vadd.f32 0.0, %v3712
        %v3714 = vpop.f32.mrf.mxu0
        %v3715 = vadd.f32 0.0, %v3714
        %3716 = vmatmul.bf16.gmra.mxu0 %v3604
        %v3717 = vpop.f32.mrf.mxu0
        %v3718 = vadd.f32 0.0, %v3717
        %v3719 = vpop.f32.mrf.mxu0
        %v3720 = vadd.f32 0.0, %v3719
        %3721 = vmatmul.bf16.gmra.mxu0 %v3605
        %v3722 = vpop.f32.mrf.mxu0
        %v3723 = vadd.f32 0.0, %v3722
        %v3724 = vpop.f32.mrf.mxu0
        %v3725 = vadd.f32 0.0, %v3724
        %3726 = vmatmul.bf16.gmra.mxu0 %v3606
        %v3727 = vpop.f32.mrf.mxu0
        %v3728 = vadd.f32 0.0, %v3727
        %v3729 = vpop.f32.mrf.mxu0
        %v3730 = vadd.f32 0.0, %v3729
        %3731 = vmatmul.bf16.gmra.mxu0 %v3607
        %v3732 = vpop.f32.mrf.mxu0
        %v3733 = vadd.f32 0.0, %v3732
        %v3734 = vpop.f32.mrf.mxu0
        %v3735 = vadd.f32 0.0, %v3734
        %3736 = vmatmul.bf16.gmra.mxu0 %v3608
        %v3737 = vpop.f32.mrf.mxu0
        %v3738 = vadd.f32 0.0, %v3737
        %v3739 = vpop.f32.mrf.mxu0
        %v3740 = vadd.f32 0.0, %v3739
        %3741 = vmatmul.bf16.gmra.mxu0 %v3609
        %v3742 = vpop.f32.mrf.mxu0
        %v3743 = vadd.f32 0.0, %v3742
        %v3744 = vpop.f32.mrf.mxu0
        %v3745 = vadd.f32 0.0, %v3744
        %3746 = vmatmul.bf16.gmra.mxu0 %v3610
        %v3747 = vpop.f32.mrf.mxu0
        %v3748 = vadd.f32 0.0, %v3747
        %v3749 = vpop.f32.mrf.mxu0
        %v3750 = vadd.f32 0.0, %v3749
        %3751 = vmatmul.bf16.gmra.mxu0 %v3611
        %v3752 = vpop.f32.mrf.mxu0
        %v3753 = vadd.f32 0.0, %v3752
        %v3754 = vpop.f32.mrf.mxu0
        %v3755 = vadd.f32 0.0, %v3754
        %3756 = vmatmul.bf16.gmra.mxu0 %v3612
        %v3757 = vpop.f32.mrf.mxu0
        %v3758 = vadd.f32 0.0, %v3757
        %v3759 = vpop.f32.mrf.mxu0
        %v3760 = vadd.f32 0.0, %v3759
        %3761 = vmatmul.bf16.gmra.mxu0 %v3613
        %v3762 = vpop.f32.mrf.mxu0
        %v3763 = vadd.f32 0.0, %v3762
        %v3764 = vpop.f32.mrf.mxu0
        %v3765 = vadd.f32 0.0, %v3764
        %3766 = vdwg.mxu0
        %v3767 = vadd.f32 %v3436, %v3688
        %v3768 = vadd.f32 %v3437, %v3690
        %v3769 = vadd.f32 %v3438, %v3693
        %v3770 = vadd.f32 %v3439, %v3695
        %v3771 = vadd.f32 %v3440, %v3698
        %v3772 = vadd.f32 %v3441, %v3700
        %v3773 = vadd.f32 %v3442, %v3703
        %v3774 = vadd.f32 %v3443, %v3705
        %v3775 = vadd.f32 %v3444, %v3708
        %v3776 = vadd.f32 %v3445, %v3710
        %v3777 = vadd.f32 %v3446, %v3713
        %v3778 = vadd.f32 %v3447, %v3715
        %v3779 = vadd.f32 %v3448, %v3718
        %v3780 = vadd.f32 %v3449, %v3720
        %v3781 = vadd.f32 %v3450, %v3723
        %v3782 = vadd.f32 %v3451, %v3725
        %v3783 = vadd.f32 %v3452, %v3728
        %v3784 = vadd.f32 %v3453, %v3730
        %v3785 = vadd.f32 %v3454, %v3733
        %v3786 = vadd.f32 %v3455, %v3735
        %v3787 = vadd.f32 %v3456, %v3738
        %v3788 = vadd.f32 %v3457, %v3740
        %v3789 = vadd.f32 %v3458, %v3743
        %v3790 = vadd.f32 %v3459, %v3745
        %v3791 = vadd.f32 %v3460, %v3748
        %v3792 = vadd.f32 %v3461, %v3750
        %v3793 = vadd.f32 %v3462, %v3753
        %v3794 = vadd.f32 %v3463, %v3755
        %v3795 = vadd.f32 %v3464, %v3758
        %v3796 = vadd.f32 %v3465, %v3760
        %v3797 = vadd.f32 %v3466, %v3763
        %v3798 = vadd.f32 %v3467, %v3765
        %v3800 = vshrl.u32 %v3469, 16
        %v3802 = vrot.slane %v3800, 4
        %v3803 = vshll.u32 %v3469, 16
        %v3805 = vrot.slane %v3803, 5
        %v3806 = vor.u32 %v3802, %v3805
        %v3807 = vrot.slane %v3806, 4
        %v3809 = vshll.u32 %v3470, 16
        %v3811 = vrot.slane %v3809, 5
        %v3812 = vsel %vm909, %v3807, %v3811
        %v3813 = vshrl.u32 %v3470, 16
        %v3815 = vrot.slane %v3813, 4
        %v3816 = vor.u32 %v3815, %v3811
        %v3817 = vrot.slane %v3816, 4
        %v3819 = vshll.u32 %v3471, 16
        %v3821 = vrot.slane %v3819, 5
        %v3822 = vsel %vm909, %v3817, %v3821
        %v3824 = vshrl.u32 %v3472, 16
        %v3826 = vrot.slane %v3824, 4
        %v3827 = vshll.u32 %v3472, 16
        %v3829 = vrot.slane %v3827, 5
        %v3830 = vor.u32 %v3826, %v3829
        %v3831 = vrot.slane %v3830, 4
        %v3833 = vshll.u32 %v3473, 16
        %v3835 = vrot.slane %v3833, 5
        %v3836 = vsel %vm909, %v3831, %v3835
        %v3837 = vshrl.u32 %v3473, 16
        %v3839 = vrot.slane %v3837, 4
        %v3840 = vor.u32 %v3839, %v3835
        %v3841 = vrot.slane %v3840, 4
        %v3843 = vshll.u32 %v3474, 16
        %v3845 = vrot.slane %v3843, 5
        %v3846 = vsel %vm909, %v3841, %v3845
        %v3848 = vshrl.u32 %v3475, 16
        %v3850 = vrot.slane %v3848, 4
        %v3851 = vshll.u32 %v3475, 16
        %v3853 = vrot.slane %v3851, 5
        %v3854 = vor.u32 %v3850, %v3853
        %v3855 = vrot.slane %v3854, 4
        %v3857 = vshll.u32 %v3476, 16
        %v3859 = vrot.slane %v3857, 5
        %v3860 = vsel %vm909, %v3855, %v3859
        %v3861 = vshrl.u32 %v3476, 16
        %v3863 = vrot.slane %v3861, 4
        %v3864 = vor.u32 %v3863, %v3859
        %v3865 = vrot.slane %v3864, 4
        %v3867 = vshll.u32 %v3477, 16
        %v3869 = vrot.slane %v3867, 5
        %v3870 = vsel %vm909, %v3865, %v3869
        %v3872 = vshrl.u32 %v3478, 16
        %v3874 = vrot.slane %v3872, 4
        %v3875 = vshll.u32 %v3478, 16
        %v3877 = vrot.slane %v3875, 5
        %v3878 = vor.u32 %v3874, %v3877
        %v3879 = vrot.slane %v3878, 4
        %v3881 = vshll.u32 %v3479, 16
        %v3883 = vrot.slane %v3881, 5
        %v3884 = vsel %vm909, %v3879, %v3883
        %v3885 = vshrl.u32 %v3479, 16
        %v3887 = vrot.slane %v3885, 4
        %v3888 = vor.u32 %v3887, %v3883
        %v3889 = vrot.slane %v3888, 4
        %v3891 = vshll.u32 %v3480, 16
        %v3893 = vrot.slane %v3891, 5
        %v3894 = vsel %vm909, %v3889, %v3893
        %v3896 = vshrl.u32 %v3481, 16
        %v3898 = vrot.slane %v3896, 4
        %v3899 = vshll.u32 %v3481, 16
        %v3901 = vrot.slane %v3899, 5
        %v3902 = vor.u32 %v3898, %v3901
        %v3903 = vrot.slane %v3902, 4
        %v3905 = vshll.u32 %v3482, 16
        %v3907 = vrot.slane %v3905, 5
        %v3908 = vsel %vm909, %v3903, %v3907
        %v3909 = vshrl.u32 %v3482, 16
        %v3911 = vrot.slane %v3909, 4
        %v3912 = vor.u32 %v3911, %v3907
        %v3913 = vrot.slane %v3912, 4
        %v3915 = vshll.u32 %v3483, 16
        %v3917 = vrot.slane %v3915, 5
        %v3918 = vsel %vm909, %v3913, %v3917
        %v3920 = vshrl.u32 %v3484, 16
        %v3922 = vrot.slane %v3920, 4
        %v3923 = vshll.u32 %v3484, 16
        %v3925 = vrot.slane %v3923, 5
        %v3926 = vor.u32 %v3922, %v3925
        %v3927 = vrot.slane %v3926, 4
        %v3929 = vshll.u32 %v3485, 16
        %v3931 = vrot.slane %v3929, 5
        %v3932 = vsel %vm909, %v3927, %v3931
        %v3933 = vshrl.u32 %v3485, 16
        %v3935 = vrot.slane %v3933, 4
        %v3936 = vor.u32 %v3935, %v3931
        %v3937 = vrot.slane %v3936, 4
        %v3939 = vshll.u32 %v3486, 16
        %v3941 = vrot.slane %v3939, 5
        %v3942 = vsel %vm909, %v3937, %v3941
        %v3944 = vshrl.u32 %v3487, 16
        %v3946 = vrot.slane %v3944, 4
        %v3947 = vshll.u32 %v3487, 16
        %v3949 = vrot.slane %v3947, 5
        %v3950 = vor.u32 %v3946, %v3949
        %v3951 = vrot.slane %v3950, 4
        %v3953 = vshll.u32 %v3488, 16
        %v3955 = vrot.slane %v3953, 5
        %v3956 = vsel %vm909, %v3951, %v3955
        %v3957 = vshrl.u32 %v3488, 16
        %v3959 = vrot.slane %v3957, 4
        %v3960 = vor.u32 %v3959, %v3955
        %v3961 = vrot.slane %v3960, 4
        %v3963 = vshll.u32 %v3489, 16
        %v3965 = vrot.slane %v3963, 5
        %v3966 = vsel %vm909, %v3961, %v3965
        %v3968 = vshrl.u32 %v3490, 16
        %v3970 = vrot.slane %v3968, 4
        %v3971 = vshll.u32 %v3490, 16
        %v3973 = vrot.slane %v3971, 5
        %v3974 = vor.u32 %v3970, %v3973
        %v3975 = vrot.slane %v3974, 4
        %v3977 = vshll.u32 %v3491, 16
        %v3979 = vrot.slane %v3977, 5
        %v3980 = vsel %vm909, %v3975, %v3979
        %v3981 = vshrl.u32 %v3491, 16
        %v3983 = vrot.slane %v3981, 4
        %v3984 = vor.u32 %v3983, %v3979
        %v3985 = vrot.slane %v3984, 4
        %v3987 = vshll.u32 %v3492, 16
        %v3989 = vrot.slane %v3987, 5
        %v3990 = vsel %vm909, %v3985, %v3989
        %v3992 = vshrl.u32 %v3493, 16
        %v3994 = vrot.slane %v3992, 4
        %v3995 = vshll.u32 %v3493, 16
        %v3997 = vrot.slane %v3995, 5
        %v3998 = vor.u32 %v3994, %v3997
        %v3999 = vrot.slane %v3998, 4
        %v4001 = vshll.u32 %v3494, 16
        %v4003 = vrot.slane %v4001, 5
        %v4004 = vsel %vm909, %v3999, %v4003
        %v4005 = vshrl.u32 %v3494, 16
        %v4007 = vrot.slane %v4005, 4
        %v4008 = vor.u32 %v4007, %v4003
        %v4009 = vrot.slane %v4008, 4
        %v4011 = vshll.u32 %v3495, 16
        %v4013 = vrot.slane %v4011, 5
        %v4014 = vsel %vm909, %v4009, %v4013
        %v4016 = vshrl.u32 %v3496, 16
        %v4018 = vrot.slane %v4016, 4
        %v4019 = vshll.u32 %v3496, 16
        %v4021 = vrot.slane %v4019, 5
        %v4022 = vor.u32 %v4018, %v4021
        %v4023 = vrot.slane %v4022, 4
        %v4025 = vshll.u32 %v3497, 16
        %v4027 = vrot.slane %v4025, 5
        %v4028 = vsel %vm909, %v4023, %v4027
        %v4029 = vshrl.u32 %v3497, 16
        %v4031 = vrot.slane %v4029, 4
        %v4032 = vor.u32 %v4031, %v4027
        %v4033 = vrot.slane %v4032, 4
        %v4035 = vshll.u32 %v3498, 16
        %v4037 = vrot.slane %v4035, 5
        %v4038 = vsel %vm909, %v4033, %v4037
        %v4040 = vshrl.u32 %v3499, 16
        %v4042 = vrot.slane %v4040, 4
        %v4043 = vshll.u32 %v3499, 16
        %v4045 = vrot.slane %v4043, 5
        %v4046 = vor.u32 %v4042, %v4045
        %v4047 = vrot.slane %v4046, 4
        %v4049 = vshll.u32 %v3500, 16
        %v4051 = vrot.slane %v4049, 5
        %v4052 = vsel %vm909, %v4047, %v4051
        %v4053 = vshrl.u32 %v3500, 16
        %v4055 = vrot.slane %v4053, 4
        %v4056 = vor.u32 %v4055, %v4051
        %v4057 = vrot.slane %v4056, 4
        %v4059 = vshll.u32 %v3501, 16
        %v4061 = vrot.slane %v4059, 5
        %v4062 = vsel %vm909, %v4057, %v4061
        %v4064 = vshrl.u32 %v3502, 16
        %v4066 = vrot.slane %v4064, 4
        %v4067 = vshll.u32 %v3502, 16
        %v4069 = vrot.slane %v4067, 5
        %v4070 = vor.u32 %v4066, %v4069
        %v4071 = vrot.slane %v4070, 4
        %v4073 = vshll.u32 %v3503, 16
        %v4075 = vrot.slane %v4073, 5
        %v4076 = vsel %vm909, %v4071, %v4075
        %v4077 = vshrl.u32 %v3503, 16
        %v4079 = vrot.slane %v4077, 4
        %v4080 = vor.u32 %v4079, %v4075
        %v4081 = vrot.slane %v4080, 4
        %v4083 = vshll.u32 %v3504, 16
        %v4085 = vrot.slane %v4083, 5
        %v4086 = vsel %vm909, %v4081, %v4085
        %v4088 = vshrl.u32 %v3505, 16
        %v4090 = vrot.slane %v4088, 4
        %v4091 = vshll.u32 %v3505, 16
        %v4093 = vrot.slane %v4091, 5
        %v4094 = vor.u32 %v4090, %v4093
        %v4095 = vrot.slane %v4094, 4
        %v4097 = vshll.u32 %v3506, 16
        %v4099 = vrot.slane %v4097, 5
        %v4100 = vsel %vm909, %v4095, %v4099
        %v4101 = vshrl.u32 %v3506, 16
        %v4103 = vrot.slane %v4101, 4
        %v4104 = vor.u32 %v4103, %v4099
        %v4105 = vrot.slane %v4104, 4
        %v4107 = vshll.u32 %v3507, 16
        %v4109 = vrot.slane %v4107, 5
        %v4110 = vsel %vm909, %v4105, %v4109
        %v4112 = vshrl.u32 %v3508, 16
        %v4114 = vrot.slane %v4112, 4
        %v4115 = vshll.u32 %v3508, 16
        %v4117 = vrot.slane %v4115, 5
        %v4118 = vor.u32 %v4114, %v4117
        %v4119 = vrot.slane %v4118, 4
        %v4121 = vshll.u32 %v3509, 16
        %v4123 = vrot.slane %v4121, 5
        %v4124 = vsel %vm909, %v4119, %v4123
        %v4125 = vshrl.u32 %v3509, 16
        %v4127 = vrot.slane %v4125, 4
        %v4128 = vor.u32 %v4127, %v4123
        %v4129 = vrot.slane %v4128, 4
        %v4131 = vshll.u32 %v3510, 16
        %v4133 = vrot.slane %v4131, 5
        %v4134 = vsel %vm909, %v4129, %v4133
        %v4136 = vshrl.u32 %v3511, 16
        %v4138 = vrot.slane %v4136, 4
        %v4139 = vshll.u32 %v3511, 16
        %v4141 = vrot.slane %v4139, 5
        %v4142 = vor.u32 %v4138, %v4141
        %v4143 = vrot.slane %v4142, 4
        %v4145 = vshll.u32 %v3512, 16
        %v4147 = vrot.slane %v4145, 5
        %v4148 = vsel %vm909, %v4143, %v4147
        %v4149 = vshrl.u32 %v3512, 16
        %v4151 = vrot.slane %v4149, 4
        %v4152 = vor.u32 %v4151, %v4147
        %v4153 = vrot.slane %v4152, 4
        %v4155 = vshll.u32 %v3513, 16
        %v4157 = vrot.slane %v4155, 5
        %v4158 = vsel %vm909, %v4153, %v4157
        %v4160 = vshrl.u32 %v3514, 16
        %v4162 = vrot.slane %v4160, 4
        %v4163 = vshll.u32 %v3514, 16
        %v4165 = vrot.slane %v4163, 5
        %v4166 = vor.u32 %v4162, %v4165
        %v4167 = vrot.slane %v4166, 4
        %v4169 = vshll.u32 %v3515, 16
        %v4171 = vrot.slane %v4169, 5
        %v4172 = vsel %vm909, %v4167, %v4171
        %v4173 = vshrl.u32 %v3515, 16
        %v4175 = vrot.slane %v4173, 4
        %v4176 = vor.u32 %v4175, %v4171
        %v4177 = vrot.slane %v4176, 4
        %v4179 = vshll.u32 %v3516, 16
        %v4181 = vrot.slane %v4179, 5
        %v4182 = vsel %vm909, %v4177, %v4181
        %s4183 = scalar_lea.vmem [#allocation6], 448
        %v4184 = vld [vmem:[%s4183] sm:$0xf]
        %v4185 = vld [vmem:[%s4183 + $0x4] sm:$0xf]
        %v4186 = vld [vmem:[%s4183 + $0x8] sm:$0xf]
        %v4187 = vld [vmem:[%s4183 + $0xc] sm:$0xf]
        %v4188 = vld [vmem:[%s4183 + $0x10] sm:$0xf]
        %v4189 = vld [vmem:[%s4183 + $0x14] sm:$0xf]
        %v4190 = vld [vmem:[%s4183 + $0x18] sm:$0xf]
        %v4191 = vld [vmem:[%s4183 + $0x1c] sm:$0xf]
        %v4192 = vld [vmem:[%s4183 + $0x20] sm:$0xf]
        %v4193 = vld [vmem:[%s4183 + $0x24] sm:$0xf]
        %v4194 = vld [vmem:[%s4183 + $0x28] sm:$0xf]
        %v4195 = vld [vmem:[%s4183 + $0x2c] sm:$0xf]
        %v4196 = vld [vmem:[%s4183 + $0x30] sm:$0xf]
        %v4197 = vld [vmem:[%s4183 + $0x34] sm:$0xf]
        %v4198 = vld [vmem:[%s4183 + $0x38] sm:$0xf]
        %v4199 = vld [vmem:[%s4183 + $0x3c] sm:$0xf]
        %v4200 = vunpack.c.l.b16 %v3812
        %v4201 = vunpack.c.l.b16 %v3822
        %v4202 = vunpack.c.l.b16 %v3836
        %v4203 = vunpack.c.l.b16 %v3846
        %v4204 = vunpack.c.l.b16 %v3860
        %v4205 = vunpack.c.l.b16 %v3870
        %v4206 = vunpack.c.l.b16 %v3884
        %v4207 = vunpack.c.l.b16 %v3894
        %v4208 = vunpack.c.l.b16 %v3908
        %v4209 = vunpack.c.l.b16 %v3918
        %v4210 = vunpack.c.l.b16 %v3932
        %v4211 = vunpack.c.l.b16 %v3942
        %v4212 = vunpack.c.l.b16 %v3956
        %v4213 = vunpack.c.l.b16 %v3966
        %v4214 = vunpack.c.l.b16 %v3980
        %v4215 = vunpack.c.l.b16 %v3990
        %v4216 = vunpack.c.l.b16 %v4004
        %v4217 = vunpack.c.l.b16 %v4014
        %v4218 = vunpack.c.l.b16 %v4028
        %v4219 = vunpack.c.l.b16 %v4038
        %v4220 = vunpack.c.l.b16 %v4052
        %v4221 = vunpack.c.l.b16 %v4062
        %v4222 = vunpack.c.l.b16 %v4076
        %v4223 = vunpack.c.l.b16 %v4086
        %v4224 = vunpack.c.l.b16 %v4100
        %v4225 = vunpack.c.l.b16 %v4110
        %v4226 = vunpack.c.l.b16 %v4124
        %v4227 = vunpack.c.l.b16 %v4134
        %v4228 = vunpack.c.l.b16 %v4148
        %v4229 = vunpack.c.l.b16 %v4158
        %v4230 = vunpack.c.l.b16 %v4172
        %v4231 = vunpack.c.l.b16 %v4182
        %v4232 = vpack.c.b16 %v4201, %v4200
        %v4233 = vpack.c.b16 %v4203, %v4202
        %v4234 = vpack.c.b16 %v4205, %v4204
        %v4235 = vpack.c.b16 %v4207, %v4206
        %v4236 = vpack.c.b16 %v4209, %v4208
        %v4237 = vpack.c.b16 %v4211, %v4210
        %v4238 = vpack.c.b16 %v4213, %v4212
        %v4239 = vpack.c.b16 %v4215, %v4214
        %v4240 = vpack.c.b16 %v4217, %v4216
        %v4241 = vpack.c.b16 %v4219, %v4218
        %v4242 = vpack.c.b16 %v4221, %v4220
        %v4243 = vpack.c.b16 %v4223, %v4222
        %v4244 = vpack.c.b16 %v4225, %v4224
        %v4245 = vpack.c.b16 %v4227, %v4226
        %v4246 = vpack.c.b16 %v4229, %v4228
        %v4247 = vpack.c.b16 %v4231, %v4230
        %v4280 = vunpack.c.l.b16 %v4184
        %v4281 = vunpack.c.l.b16 %v4185
        %v4282 = vunpack.c.l.b16 %v4186
        %v4283 = vunpack.c.l.b16 %v4187
        %v4284 = vunpack.c.l.b16 %v4188
        %v4285 = vunpack.c.l.b16 %v4189
        %v4286 = vunpack.c.l.b16 %v4190
        %v4287 = vunpack.c.l.b16 %v4191
        %v4288 = vunpack.c.l.b16 %v4192
        %v4289 = vunpack.c.l.b16 %v4193
        %v4290 = vunpack.c.l.b16 %v4194
        %v4291 = vunpack.c.l.b16 %v4195
        %v4292 = vunpack.c.l.b16 %v4196
        %v4293 = vunpack.c.l.b16 %v4197
        %v4294 = vunpack.c.l.b16 %v4198
        %v4295 = vunpack.c.l.b16 %v4199
        %v4296 = vpack.c.b16 %v4281, %v4280
        %v4297 = vpack.c.b16 %v4283, %v4282
        %v4298 = vpack.c.b16 %v4285, %v4284
        %v4299 = vpack.c.b16 %v4287, %v4286
        %v4300 = vpack.c.b16 %v4289, %v4288
        %v4301 = vpack.c.b16 %v4291, %v4290
        %v4302 = vpack.c.b16 %v4293, %v4292
        %v4303 = vpack.c.b16 %v4295, %v4294
        %4312 = vmatpush.bf16.msra.mxu0 %v4303
        %4313 = vmatpush.bf16.msra.mxu0 %v4302
        %4314 = vmatpush.bf16.msra.mxu0 %v4301
        %4315 = vmatpush.bf16.msra.mxu0 %v4300
        %4316 = vmatpush.bf16.msra.mxu0 %v4299
        %4317 = vmatpush.bf16.msra.mxu0 %v4298
        %4318 = vmatpush.bf16.msra.mxu0 %v4297
        %4319 = vmatpush.bf16.msra.mxu0 %v4296
        %4320 = vmatmul.bf16.gmra.mxu0 %v4232
        %v4321 = vpop.f32.mrf.mxu0
        %v4322 = vadd.f32 0.0, %v4321
        %v4323 = vpop.f32.mrf.mxu0
        %v4324 = vadd.f32 0.0, %v4323
        %4325 = vmatmul.bf16.gmra.mxu0 %v4233
        %v4326 = vpop.f32.mrf.mxu0
        %v4327 = vadd.f32 0.0, %v4326
        %v4328 = vpop.f32.mrf.mxu0
        %v4329 = vadd.f32 0.0, %v4328
        %4330 = vmatmul.bf16.gmra.mxu0 %v4234
        %v4331 = vpop.f32.mrf.mxu0
        %v4332 = vadd.f32 0.0, %v4331
        %v4333 = vpop.f32.mrf.mxu0
        %v4334 = vadd.f32 0.0, %v4333
        %4335 = vmatmul.bf16.gmra.mxu0 %v4235
        %v4336 = vpop.f32.mrf.mxu0
        %v4337 = vadd.f32 0.0, %v4336
        %v4338 = vpop.f32.mrf.mxu0
        %v4339 = vadd.f32 0.0, %v4338
        %4340 = vmatmul.bf16.gmra.mxu0 %v4236
        %v4341 = vpop.f32.mrf.mxu0
        %v4342 = vadd.f32 0.0, %v4341
        %v4343 = vpop.f32.mrf.mxu0
        %v4344 = vadd.f32 0.0, %v4343
        %4345 = vmatmul.bf16.gmra.mxu0 %v4237
        %v4346 = vpop.f32.mrf.mxu0
        %v4347 = vadd.f32 0.0, %v4346
        %v4348 = vpop.f32.mrf.mxu0
        %v4349 = vadd.f32 0.0, %v4348
        %4350 = vmatmul.bf16.gmra.mxu0 %v4238
        %v4351 = vpop.f32.mrf.mxu0
        %v4352 = vadd.f32 0.0, %v4351
        %v4353 = vpop.f32.mrf.mxu0
        %v4354 = vadd.f32 0.0, %v4353
        %4355 = vmatmul.bf16.gmra.mxu0 %v4239
        %v4356 = vpop.f32.mrf.mxu0
        %v4357 = vadd.f32 0.0, %v4356
        %v4358 = vpop.f32.mrf.mxu0
        %v4359 = vadd.f32 0.0, %v4358
        %4360 = vmatmul.bf16.gmra.mxu0 %v4240
        %v4361 = vpop.f32.mrf.mxu0
        %v4362 = vadd.f32 0.0, %v4361
        %v4363 = vpop.f32.mrf.mxu0
        %v4364 = vadd.f32 0.0, %v4363
        %4365 = vmatmul.bf16.gmra.mxu0 %v4241
        %v4366 = vpop.f32.mrf.mxu0
        %v4367 = vadd.f32 0.0, %v4366
        %v4368 = vpop.f32.mrf.mxu0
        %v4369 = vadd.f32 0.0, %v4368
        %4370 = vmatmul.bf16.gmra.mxu0 %v4242
        %v4371 = vpop.f32.mrf.mxu0
        %v4372 = vadd.f32 0.0, %v4371
        %v4373 = vpop.f32.mrf.mxu0
        %v4374 = vadd.f32 0.0, %v4373
        %4375 = vmatmul.bf16.gmra.mxu0 %v4243
        %v4376 = vpop.f32.mrf.mxu0
        %v4377 = vadd.f32 0.0, %v4376
        %v4378 = vpop.f32.mrf.mxu0
        %v4379 = vadd.f32 0.0, %v4378
        %4380 = vmatmul.bf16.gmra.mxu0 %v4244
        %v4381 = vpop.f32.mrf.mxu0
        %v4382 = vadd.f32 0.0, %v4381
        %v4383 = vpop.f32.mrf.mxu0
        %v4384 = vadd.f32 0.0, %v4383
        %4385 = vmatmul.bf16.gmra.mxu0 %v4245
        %v4386 = vpop.f32.mrf.mxu0
        %v4387 = vadd.f32 0.0, %v4386
        %v4388 = vpop.f32.mrf.mxu0
        %v4389 = vadd.f32 0.0, %v4388
        %4390 = vmatmul.bf16.gmra.mxu0 %v4246
        %v4391 = vpop.f32.mrf.mxu0
        %v4392 = vadd.f32 0.0, %v4391
        %v4393 = vpop.f32.mrf.mxu0
        %v4394 = vadd.f32 0.0, %v4393
        %4395 = vmatmul.bf16.gmra.mxu0 %v4247
        %v4396 = vpop.f32.mrf.mxu0
        %v4397 = vadd.f32 0.0, %v4396
        %v4398 = vpop.f32.mrf.mxu0
        %v4399 = vadd.f32 0.0, %v4398
        %4400 = vdwg.mxu0
        %v4401 = vadd.f32 %v3767, %v4322
        %v4402 = vadd.f32 %v3768, %v4324
        %v4403 = vadd.f32 %v3769, %v4327
        %v4404 = vadd.f32 %v3770, %v4329
        %v4405 = vadd.f32 %v3771, %v4332
        %v4406 = vadd.f32 %v3772, %v4334
        %v4407 = vadd.f32 %v3773, %v4337
        %v4408 = vadd.f32 %v3774, %v4339
        %v4409 = vadd.f32 %v3775, %v4342
        %v4410 = vadd.f32 %v3776, %v4344
        %v4411 = vadd.f32 %v3777, %v4347
        %v4412 = vadd.f32 %v3778, %v4349
        %v4413 = vadd.f32 %v3779, %v4352
        %v4414 = vadd.f32 %v3780, %v4354
        %v4415 = vadd.f32 %v3781, %v4357
        %v4416 = vadd.f32 %v3782, %v4359
        %v4417 = vadd.f32 %v3783, %v4362
        %v4418 = vadd.f32 %v3784, %v4364
        %v4419 = vadd.f32 %v3785, %v4367
        %v4420 = vadd.f32 %v3786, %v4369
        %v4421 = vadd.f32 %v3787, %v4372
        %v4422 = vadd.f32 %v3788, %v4374
        %v4423 = vadd.f32 %v3789, %v4377
        %v4424 = vadd.f32 %v3790, %v4379
        %v4425 = vadd.f32 %v3791, %v4382
        %v4426 = vadd.f32 %v3792, %v4384
        %v4427 = vadd.f32 %v3793, %v4387
        %v4428 = vadd.f32 %v3794, %v4389
        %v4429 = vadd.f32 %v3795, %v4392
        %v4430 = vadd.f32 %v3796, %v4394
        %v4431 = vadd.f32 %v3797, %v4397
        %v4432 = vadd.f32 %v3798, %v4399
        %v4449 = vrot.slane %v3469, 5
        %v4450 = vrot.slane %v4449, 4
        %v4451 = vrot.slane %v3470, 5
        %v4452 = vsel %vm1763, %v4450, %v4451
        %v4453 = vrot.slane %v4451, 4
        %v4454 = vrot.slane %v3471, 5
        %v4455 = vsel %vm1763, %v4453, %v4454
        %v4456 = vrot.slane %v3472, 5
        %v4457 = vrot.slane %v4456, 4
        %v4458 = vrot.slane %v3473, 5
        %v4459 = vsel %vm1763, %v4457, %v4458
        %v4460 = vrot.slane %v4458, 4
        %v4461 = vrot.slane %v3474, 5
        %v4462 = vsel %vm1763, %v4460, %v4461
        %v4463 = vrot.slane %v3475, 5
        %v4464 = vrot.slane %v4463, 4
        %v4465 = vrot.slane %v3476, 5
        %v4466 = vsel %vm1763, %v4464, %v4465
        %v4467 = vrot.slane %v4465, 4
        %v4468 = vrot.slane %v3477, 5
        %v4469 = vsel %vm1763, %v4467, %v4468
        %v4470 = vrot.slane %v3478, 5
        %v4471 = vrot.slane %v4470, 4
        %v4472 = vrot.slane %v3479, 5
        %v4473 = vsel %vm1763, %v4471, %v4472
        %v4474 = vrot.slane %v4472, 4
        %v4475 = vrot.slane %v3480, 5
        %v4476 = vsel %vm1763, %v4474, %v4475
        %v4477 = vrot.slane %v3481, 5
        %v4478 = vrot.slane %v4477, 4
        %v4479 = vrot.slane %v3482, 5
        %v4480 = vsel %vm1763, %v4478, %v4479
        %v4481 = vrot.slane %v4479, 4
        %v4482 = vrot.slane %v3483, 5
        %v4483 = vsel %vm1763, %v4481, %v4482
        %v4484 = vrot.slane %v3484, 5
        %v4485 = vrot.slane %v4484, 4
        %v4486 = vrot.slane %v3485, 5
        %v4487 = vsel %vm1763, %v4485, %v4486
        %v4488 = vrot.slane %v4486, 4
        %v4489 = vrot.slane %v3486, 5
        %v4490 = vsel %vm1763, %v4488, %v4489
        %v4491 = vrot.slane %v3487, 5
        %v4492 = vrot.slane %v4491, 4
        %v4493 = vrot.slane %v3488, 5
        %v4494 = vsel %vm1763, %v4492, %v4493
        %v4495 = vrot.slane %v4493, 4
        %v4496 = vrot.slane %v3489, 5
        %v4497 = vsel %vm1763, %v4495, %v4496
        %v4498 = vrot.slane %v3490, 5
        %v4499 = vrot.slane %v4498, 4
        %v4500 = vrot.slane %v3491, 5
        %v4501 = vsel %vm1763, %v4499, %v4500
        %v4502 = vrot.slane %v4500, 4
        %v4503 = vrot.slane %v3492, 5
        %v4504 = vsel %vm1763, %v4502, %v4503
        %v4505 = vrot.slane %v3493, 5
        %v4506 = vrot.slane %v4505, 4
        %v4507 = vrot.slane %v3494, 5
        %v4508 = vsel %vm1763, %v4506, %v4507
        %v4509 = vrot.slane %v4507, 4
        %v4510 = vrot.slane %v3495, 5
        %v4511 = vsel %vm1763, %v4509, %v4510
        %v4512 = vrot.slane %v3496, 5
        %v4513 = vrot.slane %v4512, 4
        %v4514 = vrot.slane %v3497, 5
        %v4515 = vsel %vm1763, %v4513, %v4514
        %v4516 = vrot.slane %v4514, 4
        %v4517 = vrot.slane %v3498, 5
        %v4518 = vsel %vm1763, %v4516, %v4517
        %v4519 = vrot.slane %v3499, 5
        %v4520 = vrot.slane %v4519, 4
        %v4521 = vrot.slane %v3500, 5
        %v4522 = vsel %vm1763, %v4520, %v4521
        %v4523 = vrot.slane %v4521, 4
        %v4524 = vrot.slane %v3501, 5
        %v4525 = vsel %vm1763, %v4523, %v4524
        %v4526 = vrot.slane %v3502, 5
        %v4527 = vrot.slane %v4526, 4
        %v4528 = vrot.slane %v3503, 5
        %v4529 = vsel %vm1763, %v4527, %v4528
        %v4530 = vrot.slane %v4528, 4
        %v4531 = vrot.slane %v3504, 5
        %v4532 = vsel %vm1763, %v4530, %v4531
        %v4533 = vrot.slane %v3505, 5
        %v4534 = vrot.slane %v4533, 4
        %v4535 = vrot.slane %v3506, 5
        %v4536 = vsel %vm1763, %v4534, %v4535
        %v4537 = vrot.slane %v4535, 4
        %v4538 = vrot.slane %v3507, 5
        %v4539 = vsel %vm1763, %v4537, %v4538
        %v4540 = vrot.slane %v3508, 5
        %v4541 = vrot.slane %v4540, 4
        %v4542 = vrot.slane %v3509, 5
        %v4543 = vsel %vm1763, %v4541, %v4542
        %v4544 = vrot.slane %v4542, 4
        %v4545 = vrot.slane %v3510, 5
        %v4546 = vsel %vm1763, %v4544, %v4545
        %v4547 = vrot.slane %v3511, 5
        %v4548 = vrot.slane %v4547, 4
        %v4549 = vrot.slane %v3512, 5
        %v4550 = vsel %vm1763, %v4548, %v4549
        %v4551 = vrot.slane %v4549, 4
        %v4552 = vrot.slane %v3513, 5
        %v4553 = vsel %vm1763, %v4551, %v4552
        %v4554 = vrot.slane %v3514, 5
        %v4555 = vrot.slane %v4554, 4
        %v4556 = vrot.slane %v3515, 5
        %v4557 = vsel %vm1763, %v4555, %v4556
        %v4558 = vrot.slane %v4556, 4
        %v4559 = vrot.slane %v3516, 5
        %v4560 = vsel %vm1763, %v4558, %v4559
        %s4561 = scalar_lea.vmem [#allocation6], 512
        %v4562 = vld [vmem:[%s4561] sm:$0xf]
        %v4563 = vld [vmem:[%s4561 + $0x4] sm:$0xf]
        %v4564 = vld [vmem:[%s4561 + $0x8] sm:$0xf]
        %v4565 = vld [vmem:[%s4561 + $0xc] sm:$0xf]
        %v4566 = vld [vmem:[%s4561 + $0x10] sm:$0xf]
        %v4567 = vld [vmem:[%s4561 + $0x14] sm:$0xf]
        %v4568 = vld [vmem:[%s4561 + $0x18] sm:$0xf]
        %v4569 = vld [vmem:[%s4561 + $0x1c] sm:$0xf]
        %v4570 = vld [vmem:[%s4561 + $0x20] sm:$0xf]
        %v4571 = vld [vmem:[%s4561 + $0x24] sm:$0xf]
        %v4572 = vld [vmem:[%s4561 + $0x28] sm:$0xf]
        %v4573 = vld [vmem:[%s4561 + $0x2c] sm:$0xf]
        %v4574 = vld [vmem:[%s4561 + $0x30] sm:$0xf]
        %v4575 = vld [vmem:[%s4561 + $0x34] sm:$0xf]
        %v4576 = vld [vmem:[%s4561 + $0x38] sm:$0xf]
        %v4577 = vld [vmem:[%s4561 + $0x3c] sm:$0xf]
        %v4578 = vunpack.c.l.b16 %v4452
        %v4579 = vunpack.c.l.b16 %v4455
        %v4580 = vunpack.c.l.b16 %v4459
        %v4581 = vunpack.c.l.b16 %v4462
        %v4582 = vunpack.c.l.b16 %v4466
        %v4583 = vunpack.c.l.b16 %v4469
        %v4584 = vunpack.c.l.b16 %v4473
        %v4585 = vunpack.c.l.b16 %v4476
        %v4586 = vunpack.c.l.b16 %v4480
        %v4587 = vunpack.c.l.b16 %v4483
        %v4588 = vunpack.c.l.b16 %v4487
        %v4589 = vunpack.c.l.b16 %v4490
        %v4590 = vunpack.c.l.b16 %v4494
        %v4591 = vunpack.c.l.b16 %v4497
        %v4592 = vunpack.c.l.b16 %v4501
        %v4593 = vunpack.c.l.b16 %v4504
        %v4594 = vunpack.c.l.b16 %v4508
        %v4595 = vunpack.c.l.b16 %v4511
        %v4596 = vunpack.c.l.b16 %v4515
        %v4597 = vunpack.c.l.b16 %v4518
        %v4598 = vunpack.c.l.b16 %v4522
        %v4599 = vunpack.c.l.b16 %v4525
        %v4600 = vunpack.c.l.b16 %v4529
        %v4601 = vunpack.c.l.b16 %v4532
        %v4602 = vunpack.c.l.b16 %v4536
        %v4603 = vunpack.c.l.b16 %v4539
        %v4604 = vunpack.c.l.b16 %v4543
        %v4605 = vunpack.c.l.b16 %v4546
        %v4606 = vunpack.c.l.b16 %v4550
        %v4607 = vunpack.c.l.b16 %v4553
        %v4608 = vunpack.c.l.b16 %v4557
        %v4609 = vunpack.c.l.b16 %v4560
        %v4610 = vpack.c.b16 %v4579, %v4578
        %v4611 = vpack.c.b16 %v4581, %v4580
        %v4612 = vpack.c.b16 %v4583, %v4582
        %v4613 = vpack.c.b16 %v4585, %v4584
        %v4614 = vpack.c.b16 %v4587, %v4586
        %v4615 = vpack.c.b16 %v4589, %v4588
        %v4616 = vpack.c.b16 %v4591, %v4590
        %v4617 = vpack.c.b16 %v4593, %v4592
        %v4618 = vpack.c.b16 %v4595, %v4594
        %v4619 = vpack.c.b16 %v4597, %v4596
        %v4620 = vpack.c.b16 %v4599, %v4598
        %v4621 = vpack.c.b16 %v4601, %v4600
        %v4622 = vpack.c.b16 %v4603, %v4602
        %v4623 = vpack.c.b16 %v4605, %v4604
        %v4624 = vpack.c.b16 %v4607, %v4606
        %v4625 = vpack.c.b16 %v4609, %v4608
        %v4658 = vunpack.c.l.b16 %v4562
        %v4659 = vunpack.c.l.b16 %v4563
        %v4660 = vunpack.c.l.b16 %v4564
        %v4661 = vunpack.c.l.b16 %v4565
        %v4662 = vunpack.c.l.b16 %v4566
        %v4663 = vunpack.c.l.b16 %v4567
        %v4664 = vunpack.c.l.b16 %v4568
        %v4665 = vunpack.c.l.b16 %v4569
        %v4666 = vunpack.c.l.b16 %v4570
        %v4667 = vunpack.c.l.b16 %v4571
        %v4668 = vunpack.c.l.b16 %v4572
        %v4669 = vunpack.c.l.b16 %v4573
        %v4670 = vunpack.c.l.b16 %v4574
        %v4671 = vunpack.c.l.b16 %v4575
        %v4672 = vunpack.c.l.b16 %v4576
        %v4673 = vunpack.c.l.b16 %v4577
        %v4674 = vpack.c.b16 %v4659, %v4658
        %v4675 = vpack.c.b16 %v4661, %v4660
        %v4676 = vpack.c.b16 %v4663, %v4662
        %v4677 = vpack.c.b16 %v4665, %v4664
        %v4678 = vpack.c.b16 %v4667, %v4666
        %v4679 = vpack.c.b16 %v4669, %v4668
        %v4680 = vpack.c.b16 %v4671, %v4670
        %v4681 = vpack.c.b16 %v4673, %v4672
        %4690 = vmatpush.bf16.msra.mxu0 %v4681
        %4691 = vmatpush.bf16.msra.mxu0 %v4680
        %4692 = vmatpush.bf16.msra.mxu0 %v4679
        %4693 = vmatpush.bf16.msra.mxu0 %v4678
        %4694 = vmatpush.bf16.msra.mxu0 %v4677
        %4695 = vmatpush.bf16.msra.mxu0 %v4676
        %4696 = vmatpush.bf16.msra.mxu0 %v4675
        %4697 = vmatpush.bf16.msra.mxu0 %v4674
        %4698 = vmatmul.bf16.gmra.mxu0 %v4610
        %v4699 = vpop.f32.mrf.mxu0
        %v4700 = vadd.f32 0.0, %v4699
        %v4701 = vpop.f32.mrf.mxu0
        %v4702 = vadd.f32 0.0, %v4701
        %4703 = vmatmul.bf16.gmra.mxu0 %v4611
        %v4704 = vpop.f32.mrf.mxu0
        %v4705 = vadd.f32 0.0, %v4704
        %v4706 = vpop.f32.mrf.mxu0
        %v4707 = vadd.f32 0.0, %v4706
        %4708 = vmatmul.bf16.gmra.mxu0 %v4612
        %v4709 = vpop.f32.mrf.mxu0
        %v4710 = vadd.f32 0.0, %v4709
        %v4711 = vpop.f32.mrf.mxu0
        %v4712 = vadd.f32 0.0, %v4711
        %4713 = vmatmul.bf16.gmra.mxu0 %v4613
        %v4714 = vpop.f32.mrf.mxu0
        %v4715 = vadd.f32 0.0, %v4714
        %v4716 = vpop.f32.mrf.mxu0
        %v4717 = vadd.f32 0.0, %v4716
        %4718 = vmatmul.bf16.gmra.mxu0 %v4614
        %v4719 = vpop.f32.mrf.mxu0
        %v4720 = vadd.f32 0.0, %v4719
        %v4721 = vpop.f32.mrf.mxu0
        %v4722 = vadd.f32 0.0, %v4721
        %4723 = vmatmul.bf16.gmra.mxu0 %v4615
        %v4724 = vpop.f32.mrf.mxu0
        %v4725 = vadd.f32 0.0, %v4724
        %v4726 = vpop.f32.mrf.mxu0
        %v4727 = vadd.f32 0.0, %v4726
        %4728 = vmatmul.bf16.gmra.mxu0 %v4616
        %v4729 = vpop.f32.mrf.mxu0
        %v4730 = vadd.f32 0.0, %v4729
        %v4731 = vpop.f32.mrf.mxu0
        %v4732 = vadd.f32 0.0, %v4731
        %4733 = vmatmul.bf16.gmra.mxu0 %v4617
        %v4734 = vpop.f32.mrf.mxu0
        %v4735 = vadd.f32 0.0, %v4734
        %v4736 = vpop.f32.mrf.mxu0
        %v4737 = vadd.f32 0.0, %v4736
        %4738 = vmatmul.bf16.gmra.mxu0 %v4618
        %v4739 = vpop.f32.mrf.mxu0
        %v4740 = vadd.f32 0.0, %v4739
        %v4741 = vpop.f32.mrf.mxu0
        %v4742 = vadd.f32 0.0, %v4741
        %4743 = vmatmul.bf16.gmra.mxu0 %v4619
        %v4744 = vpop.f32.mrf.mxu0
        %v4745 = vadd.f32 0.0, %v4744
        %v4746 = vpop.f32.mrf.mxu0
        %v4747 = vadd.f32 0.0, %v4746
        %4748 = vmatmul.bf16.gmra.mxu0 %v4620
        %v4749 = vpop.f32.mrf.mxu0
        %v4750 = vadd.f32 0.0, %v4749
        %v4751 = vpop.f32.mrf.mxu0
        %v4752 = vadd.f32 0.0, %v4751
        %4753 = vmatmul.bf16.gmra.mxu0 %v4621
        %v4754 = vpop.f32.mrf.mxu0
        %v4755 = vadd.f32 0.0, %v4754
        %v4756 = vpop.f32.mrf.mxu0
        %v4757 = vadd.f32 0.0, %v4756
        %4758 = vmatmul.bf16.gmra.mxu0 %v4622
        %v4759 = vpop.f32.mrf.mxu0
        %v4760 = vadd.f32 0.0, %v4759
        %v4761 = vpop.f32.mrf.mxu0
        %v4762 = vadd.f32 0.0, %v4761
        %4763 = vmatmul.bf16.gmra.mxu0 %v4623
        %v4764 = vpop.f32.mrf.mxu0
        %v4765 = vadd.f32 0.0, %v4764
        %v4766 = vpop.f32.mrf.mxu0
        %v4767 = vadd.f32 0.0, %v4766
        %4768 = vmatmul.bf16.gmra.mxu0 %v4624
        %v4769 = vpop.f32.mrf.mxu0
        %v4770 = vadd.f32 0.0, %v4769
        %v4771 = vpop.f32.mrf.mxu0
        %v4772 = vadd.f32 0.0, %v4771
        %4773 = vmatmul.bf16.gmra.mxu0 %v4625
        %v4774 = vpop.f32.mrf.mxu0
        %v4775 = vadd.f32 0.0, %v4774
        %v4776 = vpop.f32.mrf.mxu0
        %v4777 = vadd.f32 0.0, %v4776
        %4778 = vdwg.mxu0
        %v4779 = vadd.f32 %v4401, %v4700
        %v4780 = vadd.f32 %v4402, %v4702
        %v4781 = vadd.f32 %v4403, %v4705
        %v4782 = vadd.f32 %v4404, %v4707
        %v4783 = vadd.f32 %v4405, %v4710
        %v4784 = vadd.f32 %v4406, %v4712
        %v4785 = vadd.f32 %v4407, %v4715
        %v4786 = vadd.f32 %v4408, %v4717
        %v4787 = vadd.f32 %v4409, %v4720
        %v4788 = vadd.f32 %v4410, %v4722
        %v4789 = vadd.f32 %v4411, %v4725
        %v4790 = vadd.f32 %v4412, %v4727
        %v4791 = vadd.f32 %v4413, %v4730
        %v4792 = vadd.f32 %v4414, %v4732
        %v4793 = vadd.f32 %v4415, %v4735
        %v4794 = vadd.f32 %v4416, %v4737
        %v4795 = vadd.f32 %v4417, %v4740
        %v4796 = vadd.f32 %v4418, %v4742
        %v4797 = vadd.f32 %v4419, %v4745
        %v4798 = vadd.f32 %v4420, %v4747
        %v4799 = vadd.f32 %v4421, %v4750
        %v4800 = vadd.f32 %v4422, %v4752
        %v4801 = vadd.f32 %v4423, %v4755
        %v4802 = vadd.f32 %v4424, %v4757
        %v4803 = vadd.f32 %v4425, %v4760
        %v4804 = vadd.f32 %v4426, %v4762
        %v4805 = vadd.f32 %v4427, %v4765
        %v4806 = vadd.f32 %v4428, %v4767
        %v4807 = vadd.f32 %v4429, %v4770
        %v4808 = vadd.f32 %v4430, %v4772
        %v4809 = vadd.f32 %v4431, %v4775
        %v4810 = vadd.f32 %v4432, %v4777
        %v4811 = vpack.c.bf16 %v4779, %v4779
        %v4812 = vpack.c.bf16 %v4780, %v4780
        %v4813 = vpack.c.bf16 %v4781, %v4781
        %v4814 = vpack.c.bf16 %v4782, %v4782
        %v4815 = vpack.c.bf16 %v4783, %v4783
        %v4816 = vpack.c.bf16 %v4784, %v4784
        %v4817 = vpack.c.bf16 %v4785, %v4785
        %v4818 = vpack.c.bf16 %v4786, %v4786
        %v4819 = vpack.c.bf16 %v4787, %v4787
        %v4820 = vpack.c.bf16 %v4788, %v4788
        %v4821 = vpack.c.bf16 %v4789, %v4789
        %v4822 = vpack.c.bf16 %v4790, %v4790
        %v4823 = vpack.c.bf16 %v4791, %v4791
        %v4824 = vpack.c.bf16 %v4792, %v4792
        %v4825 = vpack.c.bf16 %v4793, %v4793
        %v4826 = vpack.c.bf16 %v4794, %v4794
        %v4827 = vpack.c.bf16 %v4795, %v4795
        %v4828 = vpack.c.bf16 %v4796, %v4796
        %v4829 = vpack.c.bf16 %v4797, %v4797
        %v4830 = vpack.c.bf16 %v4798, %v4798
        %v4831 = vpack.c.bf16 %v4799, %v4799
        %v4832 = vpack.c.bf16 %v4800, %v4800
        %v4833 = vpack.c.bf16 %v4801, %v4801
        %v4834 = vpack.c.bf16 %v4802, %v4802
        %v4835 = vpack.c.bf16 %v4803, %v4803
        %v4836 = vpack.c.bf16 %v4804, %v4804
        %v4837 = vpack.c.bf16 %v4805, %v4805
        %v4838 = vpack.c.bf16 %v4806, %v4806
        %v4839 = vpack.c.bf16 %v4807, %v4807
        %v4840 = vpack.c.bf16 %v4808, %v4808
        %v4841 = vpack.c.bf16 %v4809, %v4809
        %v4842 = vpack.c.bf16 %v4810, %v4810
        %4843 = vst [vmem:[%s211] sm:$0xf] %v4811
        %4844 = vst [vmem:[%s211 + $0x4] sm:$0xf] %v4812
        %4845 = vst [vmem:[%s211 + $0x8] sm:$0xf] %v4813
        %4846 = vst [vmem:[%s211 + $0xc] sm:$0xf] %v4814
        %4847 = vst [vmem:[%s211 + $0x10] sm:$0xf] %v4815
        %4848 = vst [vmem:[%s211 + $0x14] sm:$0xf] %v4816
        %4849 = vst [vmem:[%s211 + $0x18] sm:$0xf] %v4817
        %4850 = vst [vmem:[%s211 + $0x1c] sm:$0xf] %v4818
        %4851 = vst [vmem:[%s211 + $0x20] sm:$0xf] %v4819
        %4852 = vst [vmem:[%s211 + $0x24] sm:$0xf] %v4820
        %4853 = vst [vmem:[%s211 + $0x28] sm:$0xf] %v4821
        %4854 = vst [vmem:[%s211 + $0x2c] sm:$0xf] %v4822
        %4855 = vst [vmem:[%s211 + $0x30] sm:$0xf] %v4823
        %4856 = vst [vmem:[%s211 + $0x34] sm:$0xf] %v4824
        %4857 = vst [vmem:[%s211 + $0x38] sm:$0xf] %v4825
        %4858 = vst [vmem:[%s211 + $0x3c] sm:$0xf] %v4826
        %4859 = vst [vmem:[%s211 + $0x40] sm:$0xf] %v4827
        %4860 = vst [vmem:[%s211 + $0x44] sm:$0xf] %v4828
        %4861 = vst [vmem:[%s211 + $0x48] sm:$0xf] %v4829
        %4862 = vst [vmem:[%s211 + $0x4c] sm:$0xf] %v4830
        %4863 = vst [vmem:[%s211 + $0x50] sm:$0xf] %v4831
        %4864 = vst [vmem:[%s211 + $0x54] sm:$0xf] %v4832
        %4865 = vst [vmem:[%s211 + $0x58] sm:$0xf] %v4833
        %4866 = vst [vmem:[%s211 + $0x5c] sm:$0xf] %v4834
        %4867 = vst [vmem:[%s211 + $0x60] sm:$0xf] %v4835
        %4868 = vst [vmem:[%s211 + $0x64] sm:$0xf] %v4836
        %4869 = vst [vmem:[%s211 + $0x68] sm:$0xf] %v4837
        %4870 = vst [vmem:[%s211 + $0x6c] sm:$0xf] %v4838
        %4871 = vst [vmem:[%s211 + $0x70] sm:$0xf] %v4839
        %4872 = vst [vmem:[%s211 + $0x74] sm:$0xf] %v4840
        %4873 = vst [vmem:[%s211 + $0x78] sm:$0xf] %v4841
        %4874 = vst [vmem:[%s211 + $0x7c] sm:$0xf] %v4842
        %v4875 = vadd.f32 %v4779, %v4780
        %v4876 = vadd.f32 %v4875, %v4781
        %v4877 = vadd.f32 %v4876, %v4782
        %v4878 = vadd.f32 %v4877, %v4783
        %v4879 = vadd.f32 %v4878, %v4784
        %v4880 = vadd.f32 %v4879, %v4785
        %v4881 = vadd.f32 %v4880, %v4786
        %v4882 = vadd.f32 %v4881, %v4787
        %v4883 = vadd.f32 %v4882, %v4788
        %v4884 = vadd.f32 %v4883, %v4789
        %v4885 = vadd.f32 %v4884, %v4790
        %v4886 = vadd.f32 %v4885, %v4791
        %v4887 = vadd.f32 %v4886, %v4792
        %v4888 = vadd.f32 %v4887, %v4793
        %v4889 = vadd.f32 %v4888, %v4794
        %v4890 = vadd.f32 %v4889, %v4795
        %v4891 = vadd.f32 %v4890, %v4796
        %v4892 = vadd.f32 %v4891, %v4797
        %v4893 = vadd.f32 %v4892, %v4798
        %v4894 = vadd.f32 %v4893, %v4799
        %v4895 = vadd.f32 %v4894, %v4800
        %v4896 = vadd.f32 %v4895, %v4801
        %v4897 = vadd.f32 %v4896, %v4802
        %v4898 = vadd.f32 %v4897, %v4803
        %v4899 = vadd.f32 %v4898, %v4804
        %v4900 = vadd.f32 %v4899, %v4805
        %v4901 = vadd.f32 %v4900, %v4806
        %v4902 = vadd.f32 %v4901, %v4807
        %v4903 = vadd.f32 %v4902, %v4808
        %v4904 = vadd.f32 %v4903, %v4809
        %v4905 = vadd.f32 %v4904, %v4810
        %v4906 = vrot.slane %v4905, 4
        %v4907 = vadd.f32 %v4905, %v4906
        %v4908 = vrot.slane %v4907, 2
        %v4909 = vadd.f32 %v4907, %v4908
        %v4910 = vrot.slane %v4909, 1
        %v4911 = vadd.f32 %v4909, %v4910
        %4912 = vst [vmem:[%s218] sm:$0x1] %v4911
        %v4913 = vmul.f32 %v4779, %v4779
        %v4914 = vmul.f32 %v4780, %v4780
        %v4915 = vmul.f32 %v4781, %v4781
        %v4916 = vmul.f32 %v4782, %v4782
        %v4917 = vmul.f32 %v4783, %v4783
        %v4918 = vmul.f32 %v4784, %v4784
        %v4919 = vmul.f32 %v4785, %v4785
        %v4920 = vmul.f32 %v4786, %v4786
        %v4921 = vmul.f32 %v4787, %v4787
        %v4922 = vmul.f32 %v4788, %v4788
        %v4923 = vmul.f32 %v4789, %v4789
        %v4924 = vmul.f32 %v4790, %v4790
        %v4925 = vmul.f32 %v4791, %v4791
        %v4926 = vmul.f32 %v4792, %v4792
        %v4927 = vmul.f32 %v4793, %v4793
        %v4928 = vmul.f32 %v4794, %v4794
        %v4929 = vmul.f32 %v4795, %v4795
        %v4930 = vmul.f32 %v4796, %v4796
        %v4931 = vmul.f32 %v4797, %v4797
        %v4932 = vmul.f32 %v4798, %v4798
        %v4933 = vmul.f32 %v4799, %v4799
        %v4934 = vmul.f32 %v4800, %v4800
        %v4935 = vmul.f32 %v4801, %v4801
        %v4936 = vmul.f32 %v4802, %v4802
        %v4937 = vmul.f32 %v4803, %v4803
        %v4938 = vmul.f32 %v4804, %v4804
        %v4939 = vmul.f32 %v4805, %v4805
        %v4940 = vmul.f32 %v4806, %v4806
        %v4941 = vmul.f32 %v4807, %v4807
        %v4942 = vmul.f32 %v4808, %v4808
        %v4943 = vmul.f32 %v4809, %v4809
        %v4944 = vmul.f32 %v4810, %v4810
        %v4945 = vadd.f32 %v4913, %v4914
        %v4946 = vadd.f32 %v4945, %v4915
        %v4947 = vadd.f32 %v4946, %v4916
        %v4948 = vadd.f32 %v4947, %v4917
        %v4949 = vadd.f32 %v4948, %v4918
        %v4950 = vadd.f32 %v4949, %v4919
        %v4951 = vadd.f32 %v4950, %v4920
        %v4952 = vadd.f32 %v4951, %v4921
        %v4953 = vadd.f32 %v4952, %v4922
        %v4954 = vadd.f32 %v4953, %v4923
        %v4955 = vadd.f32 %v4954, %v4924
        %v4956 = vadd.f32 %v4955, %v4925
        %v4957 = vadd.f32 %v4956, %v4926
        %v4958 = vadd.f32 %v4957, %v4927
        %v4959 = vadd.f32 %v4958, %v4928
        %v4960 = vadd.f32 %v4959, %v4929
        %v4961 = vadd.f32 %v4960, %v4930
        %v4962 = vadd.f32 %v4961, %v4931
        %v4963 = vadd.f32 %v4962, %v4932
        %v4964 = vadd.f32 %v4963, %v4933
        %v4965 = vadd.f32 %v4964, %v4934
        %v4966 = vadd.f32 %v4965, %v4935
        %v4967 = vadd.f32 %v4966, %v4936
        %v4968 = vadd.f32 %v4967, %v4937
        %v4969 = vadd.f32 %v4968, %v4938
        %v4970 = vadd.f32 %v4969, %v4939
        %v4971 = vadd.f32 %v4970, %v4940
        %v4972 = vadd.f32 %v4971, %v4941
        %v4973 = vadd.f32 %v4972, %v4942
        %v4974 = vadd.f32 %v4973, %v4943
        %v4975 = vadd.f32 %v4974, %v4944
        %v4976 = vrot.slane %v4975, 4
        %v4977 = vadd.f32 %v4975, %v4976
        %v4978 = vrot.slane %v4977, 2
        %v4979 = vadd.f32 %v4977, %v4978
        %v4980 = vrot.slane %v4979, 1
        %v4981 = vadd.f32 %v4979, %v4980
        %4982 = vst [vmem:[%s218 + $0x1] sm:$0x1] %v4981
        %s4983 = sand.u32 %s80, 1
        %s4984 = scalar_lea.sflag [#allocation5], %s4983
        %s4985 = sand.u32 %s80, 1
        %s4986 = smul.addr %s4985, 128
        %s4987 = scalar_lea.vmem [#allocation8], %s4986
        %s4988 = sand.u32 %s106, 1
        %s4989 = scalar_lea.sflag [#allocation10], %s4988
        %s4990 = sand.u32 %s106, 1
        %s4991 = smul.addr %s4990, 2
        %s4992 = scalar_lea.vmem [#allocation9], %s4991
        // Predicated region
        $region37: #{tpu_custom_call.1} parent=27 // pred_check
          %p4993 = pneg %p90
        $region38: #{tpu_custom_call.1} parent=27 // pred_check_branch
          %4995 = sbr.rel (%p4993) target = $region40
        $region39: #{tpu_custom_call.1} parent=27 // pred_region
          %4997 = vsyncadd %s4984, 0
          %s4998 = smul.addr %s25, 32
          %s4999 = smul.addr %s4998, 4
          %s5000 = scalar_lea.hbm %s2, %s4999
          %s5001 = sshll.u32 %s4987, 4
          %s5002 = int_to_ptr.vmem [resolvable:$true] %s5001
          %s5003 = sshll.u32 %s5000, 4
          %s5004 = int_to_ptr.hbm [resolvable:$true] %s5003
          %5009 = dma.vmem_to_hbm [thread:$0]  %s5002, 2048, %s5004, %s4984, 64, 64, 4
        $region40: #{tpu_custom_call.1} parent=27 // pred_fallthru
          _
        // Predicated region
        $region41: #{tpu_custom_call.1} parent=27 // pred_check
          %p5010 = pneg %p116
        $region42: #{tpu_custom_call.1} parent=27 // pred_check_branch
          %5012 = sbr.rel (%p5010) target = $region44
        $region43: #{tpu_custom_call.1} parent=27 // pred_region
          %5014 = vsyncadd %s4989, 0
          %s5015 = smul.addr %s25, 2
          %s5016 = scalar_lea.hbm %s3, %s5015
          %s5018 = sshll.u32 %s4992, 4
          %s5019 = int_to_ptr.vmem [resolvable:$true] %s5018
          %s5020 = sshll.u32 %s5016, 4
          %s5021 = int_to_ptr.hbm [resolvable:$true] %s5020
          %5023 = dma.vmem_to_hbm [thread:$0]  %s5019, 32, %s5021, %s4989
        $region44: #{tpu_custom_call.1} parent=27 // pred_fallthru
          _
      $region28: #{tpu_custom_call.1} parent=5 // pred_fallthru
        _
      %p5024 = scmp.le.s32.totalorder 2, %s20
      // Predicated region
      $region45: #{tpu_custom_call.1} parent=5 // pred_check
        %p5025 = pneg %p5024
      $region46: #{tpu_custom_call.1} parent=5 // pred_check_branch
        %5027 = sbr.rel (%p5025) target = $region48
      $region47: #{tpu_custom_call.1} parent=5 // pred_region
        %s5028 = ssub.s32 %s20, 2
        // Predicated region
        $region49: #{tpu_custom_call.1} parent=47 // pred_check
          %p5029 = pneg %p96
        $region50: #{tpu_custom_call.1} parent=47 // pred_check_branch
          %5031 = sbr.rel (%p5029) target = $region52
        $region51: #{tpu_custom_call.1} parent=47 // pred_region
          %s5032 = sand.u32 %s81, 1
          %s5033 = scalar_lea.sflag [#allocation5], %s5032
          %s5034 = sand.u32 %s81, 1
          %s5035 = smul.addr %s5034, 128
          %s5036 = scalar_lea.vmem [#allocation8], %s5035
          %5038 = dma.done %s5033, 2048
        $region52: #{tpu_custom_call.1} parent=47 // pred_fallthru
          _
        // Predicated region
        $region53: #{tpu_custom_call.1} parent=47 // pred_check
          %p5039 = pneg %p122
        $region54: #{tpu_custom_call.1} parent=47 // pred_check_branch
          %5041 = sbr.rel (%p5039) target = $region56
        $region55: #{tpu_custom_call.1} parent=47 // pred_region
          %s5042 = sand.u32 %s107, 1
          %s5043 = scalar_lea.sflag [#allocation10], %s5042
          %s5044 = sand.u32 %s107, 1
          %s5045 = smul.addr %s5044, 2
          %s5046 = scalar_lea.vmem [#allocation9], %s5045
          %5048 = dma.done %s5043, 32
        $region56: #{tpu_custom_call.1} parent=47 // pred_fallthru
          _
      $region48: #{tpu_custom_call.1} parent=5 // pred_fallthru
        _
    $region6: #{tpu_custom_call.1} parent=1 // loop_footer
      %s24 = sadd.s32 1, %s20
    $region7: #{tpu_custom_call.1} parent=1 // loop_footer_branch
      %19 = sbr.rel target = $region3
    $region8: #{tpu_custom_call.1} parent=1 // loop_exit
      _
    %5049 = vsyncpa [#allocation4], 1
    %s5050 = scalar_lea.sflag [#allocation4], 1
    %5051 = vsyncpa %s5050, 1
    %5052 = vsyncpa [#allocation7], 1
    %5053 = vsyncpa [#allocation5], 1
    %s5054 = scalar_lea.sflag [#allocation5], 1
    %5055 = vsyncpa %s5054, 1
    %5056 = vsyncpa [#allocation10], 1
    %s5057 = scalar_lea.sflag [#allocation10], 1
    %5058 = vsyncpa %s5057, 1

</llo_original>
